<compile_context>
chip_gen: v7x
topology: tpu7x:2x2x1
jax: 0.10.0
libtpu: 0.0.40
codegen_flags: <defaults>
</compile_context>

<pallas_src>
import functools
import math

import jax
import jax.numpy as jnp
from jax.experimental import pallas as pl
from jax.experimental.pallas import tpu as pltpu


def _layernorm(x, gamma, beta, eps):
    mu = jnp.mean(x, axis=-1, keepdims=True)
    xc = x - mu
    var = jnp.mean(xc * xc, axis=-1, keepdims=True)
    inv = jax.lax.rsqrt(var + eps)
    return xc * inv * gamma + beta


def _gelu(x):
    # TODO(synk): HF "gelu" is the exact erf form; the tanh approximation is
    # used (intentional ~1e-3 divergence) because tanh is guaranteed to lower
    # on the TPU EUP while erf is not.
    c = math.sqrt(2.0 / math.pi)
    return 0.5 * x * (1.0 + jnp.tanh(c * (x + 0.044715 * x * x * x)))


def bert_layer_kernel(
    x_ref,                                                # (1, S, H) full-seq input
    wq_ref, bq_ref, wk_ref, bk_ref, wv_ref, bv_ref,       # self-attention Q/K/V
    wao_ref, bao_ref, g1_ref, b1_ref,                     # attention output dense + LN
    wi_ref, bi_ref,                                       # intermediate dense
    wo_ref, bo_ref, g2_ref, b2_ref,                       # output dense + LN
    out_ref,                                              # (1, TQ, H)
    k_sc, v_sc,                                           # (S, H) bf16 K/V caches
    *, eps, ffn_chunk, q_tile,
):
    f32 = jnp.float32
    bf16 = jnp.bfloat16
    qi = pl.program_id(1)

    # --- K/V projection of the FULL sequence, once per batch (q == 0) ---
    @pl.when(qi == 0)
    def _():
        xkv_b = x_ref[0].astype(bf16)                     # (S, H)
        k = jnp.dot(xkv_b, wk_ref[...], preferred_element_type=f32) + bk_ref[...]
        v = jnp.dot(xkv_b, wv_ref[...], preferred_element_type=f32) + bv_ref[...]
        k_sc[...] = k.astype(bf16)
        v_sc[...] = v.astype(bf16)

    # Query-row residual tile sliced out of the resident full-seq VMEM block.
    row0 = pl.multiple_of(qi * q_tile, q_tile)
    xq = x_ref[0, pl.ds(row0, q_tile), :].astype(f32)     # (TQ, H)
    xq_b = xq.astype(bf16)

    # --- BertSelfAttention (single head; 1/sqrt(H) folded into wq/bq) ---
    q = jnp.dot(xq_b, wq_ref[...], preferred_element_type=f32) + bq_ref[...]

    # scores[i, j] = sum_h q[i, h] * k[j, h]   (no explicit k.T transpose)
    scores = jax.lax.dot_general(
        q.astype(bf16), k_sc[...],
        dimension_numbers=(((1,), (1,)), ((), ())),
        preferred_element_type=f32)                       # (TQ, S)

    scores = scores - jnp.max(scores, axis=-1, keepdims=True)
    e = jnp.exp(scores)                                   # f32 on the EUP
    probs = e * pl.reciprocal(jnp.sum(e, axis=-1, keepdims=True), approx=True)

    ctx = jnp.dot(probs.astype(bf16), v_sc[...],
                  preferred_element_type=f32)             # (TQ, H)

    # --- BertSelfOutput: dense + residual + LayerNorm (f32) ---
    attn = jnp.dot(ctx.astype(bf16), wao_ref[...],
                   preferred_element_type=f32) + bao_ref[...]
    attn = _layernorm(attn + xq, g1_ref[...], b1_ref[...], eps)

    # --- BertIntermediate + BertOutput, chunked over the 4H dimension so the
    #     full (TQ, 4H) f32 intermediate is never materialized ---
    attn_b = attn.astype(bf16)                            # hoisted cast
    n_chunks = wi_ref.shape[1] // ffn_chunk               # static
    ffn = jnp.zeros(attn.shape, f32)
    for c in range(n_chunks):                             # static unroll (small)
        lo = c * ffn_chunk
        h = jnp.dot(attn_b, wi_ref[:, lo:lo + ffn_chunk],
                    preferred_element_type=f32) + bi_ref[:, lo:lo + ffn_chunk]
        h = _gelu(h)                                      # f32
        ffn = ffn + jnp.dot(h.astype(bf16), wo_ref[lo:lo + ffn_chunk, :],
                            preferred_element_type=f32)

    out = _layernorm(ffn + bo_ref[...] + attn, g2_ref[...], b2_ref[...], eps)
    out_ref[0] = out.astype(out_ref.dtype)


def _pick_q_tile(S):
    # 256 feeds the v6e/v7x MXU natively; 128 matches v5e's 4x128^2 MXU.
    for t in (256, 128):
        if S % t == 0:
            return t
    return S          # small/odd S: whole sequence (full-dim block is legal)


def _pick_ffn_chunk(I):
    for c in (1024, 512):
        if I % c == 0:
            return c
    return I


def _vmem_limit_bytes(S, H, I, TQ, ffn_chunk):
    bf16, f32 = 2, 4
    weights = (4 * H * H + 2 * H * I) * bf16          # bf16, ideally single-buffered
    biases = (5 * H + I) * f32 * 2
    io_tiles = (S * H + 2 * TQ * H) * f32 * 2         # x (full S) + out tile (dbl-buf)
    kv_cache = 2 * S * H * bf16                       # K/V scratch
    temps = (2 * S * H + 2 * TQ * S + TQ * ffn_chunk + 8 * TQ * H) * f32
    est = int((weights + biases + io_tiles + kv_cache + temps) * 1.5)
    try:
        cap = int(pltpu.get_tpu_info().vmem_capacity_bytes * 3 // 4)
    except Exception:  # pragma: no cover - conservative fallback (v7x-safe)
        cap = 48 * 1024 * 1024
    return max(min(est, cap), 32 * 1024 * 1024)


def bert_layer(x, params, *, eps=1e-12, q_tile=None):
    """x: (B, S, H) float32.  params: weights in (in, out) layout, biases (1, dim).

    Note: at production sizes H (and 4H) should be multiples of 128 so the
    output store is lane-dense (unmasked vst); the toy demo shapes are exempt
    because full-dim blocks are used.
    """
    B, S, H = x.shape
    I = params["wi"].shape[1]                     # 4*H
    scale = 1.0 / math.sqrt(H)

    TQ = q_tile if q_tile is not None else _pick_q_tile(S)
    assert S % TQ == 0
    ffn_chunk = _pick_ffn_chunk(I)

    bf16, f32 = jnp.bfloat16, jnp.float32
    # Fold the 1/sqrt(H) attention scale into the query projection; cast all
    # weight matrices to bf16 (biases / LN params stay f32).
    flat = (
        (params["wq"] * scale).astype(bf16), (params["bq"] * scale).astype(f32),
        params["wk"].astype(bf16), params["bk"].astype(f32),
        params["wv"].astype(bf16), params["bv"].astype(f32),
        params["wao"].astype(bf16), params["bao"].astype(f32),
        params["g1"].astype(f32), params["b1"].astype(f32),
        params["wi"].astype(bf16), params["bi"].astype(f32),
        params["wo"].astype(bf16), params["bo"].astype(f32),
        params["g2"].astype(f32), params["b2"].astype(f32),
    )

    def call(single_buffer_weights):
        w_kwargs = (
            dict(pipeline_mode=pl.Buffered(1)) if single_buffer_weights else {}
        )

        def wspec(shape):
            # Constant index_map across the whole grid -> fetched once.
            return pl.BlockSpec(shape, lambda b, q: (0,) * len(shape), **w_kwargs)

        in_specs = [
            pl.BlockSpec((1, S, H), lambda b, q: (b, 0, 0)),    # full seq (x)
            wspec((H, H)), wspec((1, H)),        # wq, bq
            wspec((H, H)), wspec((1, H)),        # wk, bk
            wspec((H, H)), wspec((1, H)),        # wv, bv
            wspec((H, H)), wspec((1, H)),        # attention output dense
            wspec((1, H)), wspec((1, H)),        # LN1 gamma, beta
            wspec((H, I)), wspec((1, I)),        # intermediate dense
            wspec((I, H)), wspec((1, H)),        # output dense
            wspec((1, H)), wspec((1, H)),        # LN2 gamma, beta
        ]

        kernel = functools.partial(
            bert_layer_kernel, eps=eps, ffn_chunk=ffn_chunk, q_tile=TQ)

        return pl.pallas_call(
            kernel,
            out_shape=jax.ShapeDtypeStruct((B, S, H), x.dtype),
            grid_spec=pltpu.PrefetchScalarGridSpec(
                num_scalar_prefetch=0,
                grid=(B, S // TQ),
                in_specs=in_specs,
                out_specs=pl.BlockSpec((1, TQ, H), lambda b, q: (b, q, 0)),
                scratch_shapes=[
                    pltpu.VMEM((S, H), jnp.bfloat16),   # K cache
                    pltpu.VMEM((S, H), jnp.bfloat16),   # V cache
                ],
            ),
            compiler_params=pltpu.CompilerParams(
                # K/V scratch carried across q steps -> q axis is "arbitrary";
                # batch axis shards across TensorCores.
                dimension_semantics=("parallel", "arbitrary"),
                vmem_limit_bytes=_vmem_limit_bytes(S, H, I, TQ, ffn_chunk),
            ),
        )(x, *flat)

    try:
        out = call(single_buffer_weights=True)
        return jax.block_until_ready(out)
    except Exception:
        # TODO(synk): pl.Buffered(1) (single-buffered constant-index weight
        # specs) rejected by this JAX build; fall back to default buffering.
        return call(single_buffer_weights=False)


def bert_layer_ref(x, params, *, eps=1e-12):
    """Pure-JAX f32 reference (same math as the PyTorch module in eval mode)."""
    H = x.shape[-1]
    q = x @ params["wq"] + params["bq"]
    k = x @ params["wk"] + params["bk"]
    v = x @ params["wv"] + params["bv"]
    scores = jnp.einsum("bqd,bkd->bqk", q, k) / math.sqrt(H)
    probs = jax.nn.softmax(scores, axis=-1)
    ctx = jnp.einsum("bqk,bkd->bqd", probs, v)
    attn = ctx @ params["wao"] + params["bao"]
    attn = _layernorm(attn + x, params["g1"], params["b1"], eps)
    inter = _gelu(attn @ params["wi"] + params["bi"])
    out = inter @ params["wo"] + params["bo"]
    out = _layernorm(out + attn, params["g2"], params["b2"], eps)
    return out


def make_params(key, H):
    I = 4 * H
    keys = jax.random.split(key, 8)
    s = 0.02
    return {
        "wq": s * jax.random.normal(keys[0], (H, H), jnp.float32),
        "wk": s * jax.random.normal(keys[1], (H, H), jnp.float32),
        "wv": s * jax.random.normal(keys[2], (H, H), jnp.float32),
        "wao": s * jax.random.normal(keys[3], (H, H), jnp.float32),
        "wi": s * jax.random.normal(keys[4], (H, I), jnp.float32),
        "wo": s * jax.random.normal(keys[5], (I, H), jnp.float32),
        "bq": 0.01 * jax.random.normal(keys[6], (1, H), jnp.float32),
        "bk": jnp.zeros((1, H), jnp.float32),
        "bv": jnp.zeros((1, H), jnp.float32),
        "bao": jnp.zeros((1, H), jnp.float32),
        "bi": 0.01 * jax.random.normal(keys[7], (1, I), jnp.float32),
        "bo": jnp.zeros((1, H), jnp.float32),
        "g1": jnp.ones((1, H), jnp.float32),
        "b1": jnp.zeros((1, H), jnp.float32),
        "g2": jnp.ones((1, H), jnp.float32),
        "b2": jnp.zeros((1, H), jnp.float32),
    }


if __name__ == "__main__":
    B, S, H = 2, 8, 32

    key = jax.random.PRNGKey(0)
    kx, kp = jax.random.split(key)
    x = jax.random.normal(kx, (B, S, H), jnp.float32)
    params = make_params(kp, H)

    out = jax.block_until_ready(bert_layer(x, params))
    ref = bert_layer_ref(x, params)

    assert out.shape == (B, S, H)
    err = float(jnp.max(jnp.abs(out - ref)))
    # bf16 matmul inputs (f32 accumulation) + approx reciprocal -> allow a few
    # bf16 ulps of drift vs. the all-f32 reference.
    assert err < 2e-2, err
    print("KERNEL_OK")
</pallas_src>

<mosaic_0001>
module attributes {stable_mosaic.version = 11 : i64} {
  func.func @bert_layer_kernel(%arg0: i32, %arg1: i32, %arg2: memref<1x8x32xf32, #tpu.memory_space<vmem>>, %arg3: memref<32x32xbf16, #tpu.memory_space<vmem>>, %arg4: memref<1x32xf32, #tpu.memory_space<vmem>>, %arg5: memref<32x32xbf16, #tpu.memory_space<vmem>>, %arg6: memref<1x32xf32, #tpu.memory_space<vmem>>, %arg7: memref<32x32xbf16, #tpu.memory_space<vmem>>, %arg8: memref<1x32xf32, #tpu.memory_space<vmem>>, %arg9: memref<32x32xbf16, #tpu.memory_space<vmem>>, %arg10: memref<1x32xf32, #tpu.memory_space<vmem>>, %arg11: memref<1x32xf32, #tpu.memory_space<vmem>>, %arg12: memref<1x32xf32, #tpu.memory_space<vmem>>, %arg13: memref<32x128xbf16, #tpu.memory_space<vmem>>, %arg14: memref<1x128xf32, #tpu.memory_space<vmem>>, %arg15: memref<128x32xbf16, #tpu.memory_space<vmem>>, %arg16: memref<1x32xf32, #tpu.memory_space<vmem>>, %arg17: memref<1x32xf32, #tpu.memory_space<vmem>>, %arg18: memref<1x32xf32, #tpu.memory_space<vmem>>, %arg19: memref<1x8x32xf32, #tpu.memory_space<vmem>>, %arg20: memref<8x32xbf16, #tpu.memory_space<vmem>>, %arg21: memref<8x32xbf16, #tpu.memory_space<vmem>>) attributes {dimension_semantics = [#tpu.dimension_semantics<parallel>, #tpu.dimension_semantics<arbitrary>], iteration_bounds = array<i64: 2, 1>, scalar_prefetch = 0 : i64, scratch_operands = 2 : i64, tpu.core_type = #tpu.core_type<tc>, window_params = [{transform_indices = @transform_0, window_bounds = array<i64: 1, 8, 32>}, {pipeline_mode = #tpu.pipeline_mode<synchronous>, transform_indices = @transform_1, window_bounds = array<i64: 32, 32>}, {pipeline_mode = #tpu.pipeline_mode<synchronous>, transform_indices = @transform_2, window_bounds = array<i64: 1, 32>}, {pipeline_mode = #tpu.pipeline_mode<synchronous>, transform_indices = @transform_3, window_bounds = array<i64: 32, 32>}, {pipeline_mode = #tpu.pipeline_mode<synchronous>, transform_indices = @transform_4, window_bounds = array<i64: 1, 32>}, {pipeline_mode = #tpu.pipeline_mode<synchronous>, transform_indices = @transform_5, window_bounds = array<i64: 32, 32>}, {pipeline_mode = #tpu.pipeline_mode<synchronous>, transform_indices = @transform_6, window_bounds = array<i64: 1, 32>}, {pipeline_mode = #tpu.pipeline_mode<synchronous>, transform_indices = @transform_7, window_bounds = array<i64: 32, 32>}, {pipeline_mode = #tpu.pipeline_mode<synchronous>, transform_indices = @transform_8, window_bounds = array<i64: 1, 32>}, {pipeline_mode = #tpu.pipeline_mode<synchronous>, transform_indices = @transform_9, window_bounds = array<i64: 1, 32>}, {pipeline_mode = #tpu.pipeline_mode<synchronous>, transform_indices = @transform_10, window_bounds = array<i64: 1, 32>}, {pipeline_mode = #tpu.pipeline_mode<synchronous>, transform_indices = @transform_11, window_bounds = array<i64: 32, 128>}, {pipeline_mode = #tpu.pipeline_mode<synchronous>, transform_indices = @transform_12, window_bounds = array<i64: 1, 128>}, {pipeline_mode = #tpu.pipeline_mode<synchronous>, transform_indices = @transform_13, window_bounds = array<i64: 128, 32>}, {pipeline_mode = #tpu.pipeline_mode<synchronous>, transform_indices = @transform_14, window_bounds = array<i64: 1, 32>}, {pipeline_mode = #tpu.pipeline_mode<synchronous>, transform_indices = @transform_15, window_bounds = array<i64: 1, 32>}, {pipeline_mode = #tpu.pipeline_mode<synchronous>, transform_indices = @transform_16, window_bounds = array<i64: 1, 32>}, {transform_indices = @transform_17, window_bounds = array<i64: 1, 8, 32>}]} {
    %c0_i32 = arith.constant 0 : i32
    %0 = arith.cmpi eq, %arg1, %c0_i32 : i32
    %1 = arith.extui %0 : i1 to i32
    %c0_i32_0 = arith.constant 0 : i32
    %2 = arith.cmpi ne, %1, %c0_i32_0 : i32
    scf.if %2 {
      %c0_55 = arith.constant 0 : index
      %c0_56 = arith.constant 0 : index
      %c0_57 = arith.constant 0 : index
      %112 = vector.load %arg2[%c0_55, %c0_56, %c0_57] : memref<1x8x32xf32, #tpu.memory_space<vmem>>, vector<1x8x32xf32>
      %113 = vector.shape_cast %112 : vector<1x8x32xf32> to vector<8x32xf32>
      %114 = arith.truncf %113 : vector<8x32xf32> to vector<8x32xbf16>
      %c0_58 = arith.constant 0 : index
      %c0_59 = arith.constant 0 : index
      %115 = vector.load %arg5[%c0_58, %c0_59] : memref<32x32xbf16, #tpu.memory_space<vmem>>, vector<32x32xbf16>
      %cst_60 = arith.constant dense<0.000000e+00> : vector<8x32xf32>
      %116 = tpu.matmul %114, %115, %cst_60 {dimension_numbers = #tpu.dot_dimension_numbers<[1], [0], [0], [1], [0, 0, 1, 1], [], []>} : vector<8x32xbf16>, vector<32x32xbf16>, vector<8x32xf32> -> vector<8x32xf32>
      %c0_61 = arith.constant 0 : index
      %c0_62 = arith.constant 0 : index
      %117 = vector.load %arg6[%c0_61, %c0_62] : memref<1x32xf32, #tpu.memory_space<vmem>>, vector<1x32xf32>
      %118 = vector.broadcast %117 : vector<1x32xf32> to vector<8x32xf32>
      %119 = arith.addf %116, %118 : vector<8x32xf32>
      %c0_63 = arith.constant 0 : index
      %c0_64 = arith.constant 0 : index
      %120 = vector.load %arg7[%c0_63, %c0_64] : memref<32x32xbf16, #tpu.memory_space<vmem>>, vector<32x32xbf16>
      %cst_65 = arith.constant dense<0.000000e+00> : vector<8x32xf32>
      %121 = tpu.matmul %114, %120, %cst_65 {dimension_numbers = #tpu.dot_dimension_numbers<[1], [0], [0], [1], [0, 0, 1, 1], [], []>} : vector<8x32xbf16>, vector<32x32xbf16>, vector<8x32xf32> -> vector<8x32xf32>
      %c0_66 = arith.constant 0 : index
      %c0_67 = arith.constant 0 : index
      %122 = vector.load %arg8[%c0_66, %c0_67] : memref<1x32xf32, #tpu.memory_space<vmem>>, vector<1x32xf32>
      %123 = vector.broadcast %122 : vector<1x32xf32> to vector<8x32xf32>
      %124 = arith.addf %121, %123 : vector<8x32xf32>
      %125 = arith.truncf %119 : vector<8x32xf32> to vector<8x32xbf16>
      %c0_68 = arith.constant 0 : index
      %c0_69 = arith.constant 0 : index
      %126 = vector.load %arg20[%c0_68, %c0_69] : memref<8x32xbf16, #tpu.memory_space<vmem>>, vector<8x32xbf16>
      tpu.vector_store %arg20[%c0_68, %c0_69], %125 {strides = array<i32>} : memref<8x32xbf16, #tpu.memory_space<vmem>>, vector<8x32xbf16>,
      %127 = arith.truncf %124 : vector<8x32xf32> to vector<8x32xbf16>
      %c0_70 = arith.constant 0 : index
      %c0_71 = arith.constant 0 : index
      %128 = vector.load %arg21[%c0_70, %c0_71] : memref<8x32xbf16, #tpu.memory_space<vmem>>, vector<8x32xbf16>
      tpu.vector_store %arg21[%c0_70, %c0_71], %127 {strides = array<i32>} : memref<8x32xbf16, #tpu.memory_space<vmem>>, vector<8x32xbf16>,
    } else {
    }
    %c8_i32 = arith.constant 8 : i32
    %3 = arith.muli %arg1, %c8_i32 : i32
    %4 = tpu.assume_multiple %3, 8 : i32
    %c0 = arith.constant 0 : index
    %5 = arith.index_cast %4 : i32 to index
    %c0_1 = arith.constant 0 : index
    %6 = vector.load %arg2[%c0, %5, %c0_1] : memref<1x8x32xf32, #tpu.memory_space<vmem>>, vector<1x8x32xf32>
    %7 = vector.shape_cast %6 : vector<1x8x32xf32> to vector<8x32xf32>
    %8 = arith.truncf %7 : vector<8x32xf32> to vector<8x32xbf16>
    %c0_2 = arith.constant 0 : index
    %c0_3 = arith.constant 0 : index
    %9 = vector.load %arg3[%c0_2, %c0_3] : memref<32x32xbf16, #tpu.memory_space<vmem>>, vector<32x32xbf16>
    %cst = arith.constant dense<0.000000e+00> : vector<8x32xf32>
    %10 = tpu.matmul %8, %9, %cst {dimension_numbers = #tpu.dot_dimension_numbers<[1], [0], [0], [1], [0, 0, 1, 1], [], []>} : vector<8x32xbf16>, vector<32x32xbf16>, vector<8x32xf32> -> vector<8x32xf32>
    %c0_4 = arith.constant 0 : index
    %c0_5 = arith.constant 0 : index
    %11 = vector.load %arg4[%c0_4, %c0_5] : memref<1x32xf32, #tpu.memory_space<vmem>>, vector<1x32xf32>
    %12 = vector.broadcast %11 : vector<1x32xf32> to vector<8x32xf32>
    %13 = arith.addf %10, %12 : vector<8x32xf32>
    %14 = arith.truncf %13 : vector<8x32xf32> to vector<8x32xbf16>
    %c0_6 = arith.constant 0 : index
    %c0_7 = arith.constant 0 : index
    %15 = vector.load %arg20[%c0_6, %c0_7] : memref<8x32xbf16, #tpu.memory_space<vmem>>, vector<8x32xbf16>
    %cst_8 = arith.constant dense<0.000000e+00> : vector<8x8xf32>
    %16 = tpu.matmul %14, %15, %cst_8 {dimension_numbers = #tpu.dot_dimension_numbers<[1], [1], [0], [0], [0, 0, 1, 0], [], []>} : vector<8x32xbf16>, vector<8x32xbf16>, vector<8x8xf32> -> vector<8x8xf32>
    %cst_9 = arith.constant dense<0xFF800000> : vector<8xf32>
    %17 = vector.multi_reduction <maximumf>, %16, %cst_9 [1] : vector<8x8xf32> to vector<8xf32>
    %18 = vector.shape_cast %17 : vector<8xf32> to vector<8x1xf32>
    %19 = vector.broadcast %18 : vector<8x1xf32> to vector<8x8xf32>
    %20 = arith.subf %16, %19 : vector<8x8xf32>
    %21 = math.exp %20 : vector<8x8xf32>
    %cst_10 = arith.constant dense<0.000000e+00> : vector<8xf32>
    %22 = vector.multi_reduction <add>, %21, %cst_10 [1] : vector<8x8xf32> to vector<8xf32>
    %23 = vector.shape_cast %22 : vector<8xf32> to vector<8x1xf32>
    %24 = tpu.reciprocal %23 {approx = true} : vector<8x1xf32> -> vector<8x1xf32>
    %25 = vector.broadcast %24 : vector<8x1xf32> to vector<8x8xf32>
    %26 = arith.mulf %21, %25 : vector<8x8xf32>
    %27 = arith.truncf %26 : vector<8x8xf32> to vector<8x8xbf16>
    %c0_11 = arith.constant 0 : index
    %c0_12 = arith.constant 0 : index
    %28 = vector.load %arg21[%c0_11, %c0_12] : memref<8x32xbf16, #tpu.memory_space<vmem>>, vector<8x32xbf16>
    %cst_13 = arith.constant dense<0.000000e+00> : vector<8x32xf32>
    %29 = tpu.matmul %27, %28, %cst_13 {dimension_numbers = #tpu.dot_dimension_numbers<[1], [0], [0], [1], [0, 0, 1, 1], [], []>} : vector<8x8xbf16>, vector<8x32xbf16>, vector<8x32xf32> -> vector<8x32xf32>
    %30 = arith.truncf %29 : vector<8x32xf32> to vector<8x32xbf16>
    %c0_14 = arith.constant 0 : index
    %c0_15 = arith.constant 0 : index
    %31 = vector.load %arg9[%c0_14, %c0_15] : memref<32x32xbf16, #tpu.memory_space<vmem>>, vector<32x32xbf16>
    %cst_16 = arith.constant dense<0.000000e+00> : vector<8x32xf32>
    %32 = tpu.matmul %30, %31, %cst_16 {dimension_numbers = #tpu.dot_dimension_numbers<[1], [0], [0], [1], [0, 0, 1, 1], [], []>} : vector<8x32xbf16>, vector<32x32xbf16>, vector<8x32xf32> -> vector<8x32xf32>
    %c0_17 = arith.constant 0 : index
    %c0_18 = arith.constant 0 : index
    %33 = vector.load %arg10[%c0_17, %c0_18] : memref<1x32xf32, #tpu.memory_space<vmem>>, vector<1x32xf32>
    %34 = vector.broadcast %33 : vector<1x32xf32> to vector<8x32xf32>
    %35 = arith.addf %32, %34 : vector<8x32xf32>
    %36 = arith.addf %35, %7 : vector<8x32xf32>
    %c0_19 = arith.constant 0 : index
    %c0_20 = arith.constant 0 : index
    %37 = vector.load %arg11[%c0_19, %c0_20] : memref<1x32xf32, #tpu.memory_space<vmem>>, vector<1x32xf32>
    %c0_21 = arith.constant 0 : index
    %c0_22 = arith.constant 0 : index
    %38 = vector.load %arg12[%c0_21, %c0_22] : memref<1x32xf32, #tpu.memory_space<vmem>>, vector<1x32xf32>
    %cst_23 = arith.constant dense<0.000000e+00> : vector<8xf32>
    %39 = vector.multi_reduction <add>, %36, %cst_23 [1] : vector<8x32xf32> to vector<8xf32>
    %40 = vector.shape_cast %39 : vector<8xf32> to vector<8x1xf32>
    %cst_24 = arith.constant 3.200000e+01 : f32
    %41 = vector.broadcast %cst_24 : f32 to vector<8x1xf32>
    %42 = arith.divf %40, %41 : vector<8x1xf32>
    %43 = vector.broadcast %42 : vector<8x1xf32> to vector<8x32xf32>
    %44 = arith.subf %36, %43 : vector<8x32xf32>
    %45 = arith.mulf %44, %44 : vector<8x32xf32>
    %cst_25 = arith.constant dense<0.000000e+00> : vector<8xf32>
    %46 = vector.multi_reduction <add>, %45, %cst_25 [1] : vector<8x32xf32> to vector<8xf32>
    %47 = vector.shape_cast %46 : vector<8xf32> to vector<8x1xf32>
    %cst_26 = arith.constant 3.200000e+01 : f32
    %48 = vector.broadcast %cst_26 : f32 to vector<8x1xf32>
    %49 = arith.divf %47, %48 : vector<8x1xf32>
    %cst_27 = arith.constant 9.99999996E-13 : f32
    %50 = vector.broadcast %cst_27 : f32 to vector<8x1xf32>
    %51 = arith.addf %49, %50 : vector<8x1xf32>
    %52 = math.rsqrt %51 : vector<8x1xf32>
    %53 = vector.broadcast %52 : vector<8x1xf32> to vector<8x32xf32>
    %54 = arith.mulf %44, %53 : vector<8x32xf32>
    %55 = vector.broadcast %37 : vector<1x32xf32> to vector<8x32xf32>
    %56 = arith.mulf %54, %55 : vector<8x32xf32>
    %57 = vector.broadcast %38 : vector<1x32xf32> to vector<8x32xf32>
    %58 = arith.addf %56, %57 : vector<8x32xf32>
    %59 = arith.truncf %58 : vector<8x32xf32> to vector<8x32xbf16>
    %cst_28 = arith.constant 0.000000e+00 : f32
    %60 = vector.broadcast %cst_28 : f32 to vector<8x32xf32>
    %c0_29 = arith.constant 0 : index
    %c0_30 = arith.constant 0 : index
    %61 = vector.load %arg13[%c0_29, %c0_30] : memref<32x128xbf16, #tpu.memory_space<vmem>>, vector<32x128xbf16>
    %cst_31 = arith.constant dense<0.000000e+00> : vector<8x128xf32>
    %62 = tpu.matmul %59, %61, %cst_31 {dimension_numbers = #tpu.dot_dimension_numbers<[1], [0], [0], [1], [0, 0, 1, 1], [], []>} : vector<8x32xbf16>, vector<32x128xbf16>, vector<8x128xf32> -> vector<8x128xf32>
    %c0_32 = arith.constant 0 : index
    %c0_33 = arith.constant 0 : index
    %63 = vector.load %arg14[%c0_32, %c0_33] : memref<1x128xf32, #tpu.memory_space<vmem>>, vector<1x128xf32>
    %64 = vector.broadcast %63 : vector<1x128xf32> to vector<8x128xf32>
    %65 = arith.addf %62, %64 : vector<8x128xf32>
    %cst_34 = arith.constant 5.000000e-01 : f32
    %66 = vector.broadcast %cst_34 : f32 to vector<8x128xf32>
    %67 = arith.mulf %66, %65 : vector<8x128xf32>
    %cst_35 = arith.constant 4.471500e-02 : f32
    %68 = vector.broadcast %cst_35 : f32 to vector<8x128xf32>
    %69 = arith.mulf %68, %65 : vector<8x128xf32>
    %70 = arith.mulf %69, %65 : vector<8x128xf32>
    %71 = arith.mulf %70, %65 : vector<8x128xf32>
    %72 = arith.addf %65, %71 : vector<8x128xf32>
    %cst_36 = arith.constant 0.797884583 : f32
    %73 = vector.broadcast %cst_36 : f32 to vector<8x128xf32>
    %74 = arith.mulf %73, %72 : vector<8x128xf32>
    %75 = math.tanh %74 : vector<8x128xf32>
    %cst_37 = arith.constant 1.000000e+00 : f32
    %76 = vector.broadcast %cst_37 : f32 to vector<8x128xf32>
    %77 = arith.addf %76, %75 : vector<8x128xf32>
    %78 = arith.mulf %67, %77 : vector<8x128xf32>
    %79 = arith.truncf %78 : vector<8x128xf32> to vector<8x128xbf16>
    %c0_38 = arith.constant 0 : index
    %c0_39 = arith.constant 0 : index
    %80 = vector.load %arg15[%c0_38, %c0_39] : memref<128x32xbf16, #tpu.memory_space<vmem>>, vector<128x32xbf16>
    %cst_40 = arith.constant dense<0.000000e+00> : vector<8x32xf32>
    %81 = tpu.matmul %79, %80, %cst_40 {dimension_numbers = #tpu.dot_dimension_numbers<[1], [0], [0], [1], [0, 0, 1, 1], [], []>} : vector<8x128xbf16>, vector<128x32xbf16>, vector<8x32xf32> -> vector<8x32xf32>
    %82 = arith.addf %60, %81 : vector<8x32xf32>
    %c0_41 = arith.constant 0 : index
    %c0_42 = arith.constant 0 : index
    %83 = vector.load %arg16[%c0_41, %c0_42] : memref<1x32xf32, #tpu.memory_space<vmem>>, vector<1x32xf32>
    %84 = vector.broadcast %83 : vector<1x32xf32> to vector<8x32xf32>
    %85 = arith.addf %82, %84 : vector<8x32xf32>
    %86 = arith.addf %85, %58 : vector<8x32xf32>
    %c0_43 = arith.constant 0 : index
    %c0_44 = arith.constant 0 : index
    %87 = vector.load %arg17[%c0_43, %c0_44] : memref<1x32xf32, #tpu.memory_space<vmem>>, vector<1x32xf32>
    %c0_45 = arith.constant 0 : index
    %c0_46 = arith.constant 0 : index
    %88 = vector.load %arg18[%c0_45, %c0_46] : memref<1x32xf32, #tpu.memory_space<vmem>>, vector<1x32xf32>
    %cst_47 = arith.constant dense<0.000000e+00> : vector<8xf32>
    %89 = vector.multi_reduction <add>, %86, %cst_47 [1] : vector<8x32xf32> to vector<8xf32>
    %90 = vector.shape_cast %89 : vector<8xf32> to vector<8x1xf32>
    %cst_48 = arith.constant 3.200000e+01 : f32
    %91 = vector.broadcast %cst_48 : f32 to vector<8x1xf32>
    %92 = arith.divf %90, %91 : vector<8x1xf32>
    %93 = vector.broadcast %92 : vector<8x1xf32> to vector<8x32xf32>
    %94 = arith.subf %86, %93 : vector<8x32xf32>
    %95 = arith.mulf %94, %94 : vector<8x32xf32>
    %cst_49 = arith.constant dense<0.000000e+00> : vector<8xf32>
    %96 = vector.multi_reduction <add>, %95, %cst_49 [1] : vector<8x32xf32> to vector<8xf32>
    %97 = vector.shape_cast %96 : vector<8xf32> to vector<8x1xf32>
    %cst_50 = arith.constant 3.200000e+01 : f32
    %98 = vector.broadcast %cst_50 : f32 to vector<8x1xf32>
    %99 = arith.divf %97, %98 : vector<8x1xf32>
    %cst_51 = arith.constant 9.99999996E-13 : f32
    %100 = vector.broadcast %cst_51 : f32 to vector<8x1xf32>
    %101 = arith.addf %99, %100 : vector<8x1xf32>
    %102 = math.rsqrt %101 : vector<8x1xf32>
    %103 = vector.broadcast %102 : vector<8x1xf32> to vector<8x32xf32>
    %104 = arith.mulf %94, %103 : vector<8x32xf32>
    %105 = vector.broadcast %87 : vector<1x32xf32> to vector<8x32xf32>
    %106 = arith.mulf %104, %105 : vector<8x32xf32>
    %107 = vector.broadcast %88 : vector<1x32xf32> to vector<8x32xf32>
    %108 = arith.addf %106, %107 : vector<8x32xf32>
    %c0_52 = arith.constant 0 : index
    %c0_53 = arith.constant 0 : index
    %c0_54 = arith.constant 0 : index
    %109 = vector.load %arg19[%c0_52, %c0_53, %c0_54] : memref<1x8x32xf32, #tpu.memory_space<vmem>>, vector<1x8x32xf32>
    %110 = vector.shape_cast %109 : vector<1x8x32xf32> to vector<8x32xf32>
    %111 = vector.shape_cast %108 : vector<8x32xf32> to vector<1x8x32xf32>
    tpu.vector_store %arg19[%c0_52, %c0_53, %c0_54], %111 {strides = array<i32>} : memref<1x8x32xf32, #tpu.memory_space<vmem>>, vector<1x8x32xf32>,
    return
  }
  func.func @transform_0(%arg0: i32, %arg1: i32) -> (i32, i32, i32) {
    %c0_i32 = arith.constant 0 : i32
    %c0_i32_0 = arith.constant 0 : i32
    %c0_i32_1 = arith.constant 0 : i32
    return %arg0, %c0_i32, %c0_i32_0 : i32, i32, i32
  }
  func.func @transform_1(%arg0: i32, %arg1: i32) -> (i32, i32) {
    %c0_i32 = arith.constant 0 : i32
    %c0_i32_0 = arith.constant 0 : i32
    %c0_i32_1 = arith.constant 0 : i32
    return %c0_i32, %c0_i32_0 : i32, i32
  }
  func.func @transform_2(%arg0: i32, %arg1: i32) -> (i32, i32) {
    %c0_i32 = arith.constant 0 : i32
    %c0_i32_0 = arith.constant 0 : i32
    %c0_i32_1 = arith.constant 0 : i32
    return %c0_i32, %c0_i32_0 : i32, i32
  }
  func.func @transform_3(%arg0: i32, %arg1: i32) -> (i32, i32) {
    %c0_i32 = arith.constant 0 : i32
    %c0_i32_0 = arith.constant 0 : i32
    %c0_i32_1 = arith.constant 0 : i32
    return %c0_i32, %c0_i32_0 : i32, i32
  }
  func.func @transform_4(%arg0: i32, %arg1: i32) -> (i32, i32) {
    %c0_i32 = arith.constant 0 : i32
    %c0_i32_0 = arith.constant 0 : i32
    %c0_i32_1 = arith.constant 0 : i32
    return %c0_i32, %c0_i32_0 : i32, i32
  }
  func.func @transform_5(%arg0: i32, %arg1: i32) -> (i32, i32) {
    %c0_i32 = arith.constant 0 : i32
    %c0_i32_0 = arith.constant 0 : i32
    %c0_i32_1 = arith.constant 0 : i32
    return %c0_i32, %c0_i32_0 : i32, i32
  }
  func.func @transform_6(%arg0: i32, %arg1: i32) -> (i32, i32) {
    %c0_i32 = arith.constant 0 : i32
    %c0_i32_0 = arith.constant 0 : i32
    %c0_i32_1 = arith.constant 0 : i32
    return %c0_i32, %c0_i32_0 : i32, i32
  }
  func.func @transform_7(%arg0: i32, %arg1: i32) -> (i32, i32) {
    %c0_i32 = arith.constant 0 : i32
    %c0_i32_0 = arith.constant 0 : i32
    %c0_i32_1 = arith.constant 0 : i32
    return %c0_i32, %c0_i32_0 : i32, i32
  }
  func.func @transform_8(%arg0: i32, %arg1: i32) -> (i32, i32) {
    %c0_i32 = arith.constant 0 : i32
    %c0_i32_0 = arith.constant 0 : i32
    %c0_i32_1 = arith.constant 0 : i32
    return %c0_i32, %c0_i32_0 : i32, i32
  }
  func.func @transform_9(%arg0: i32, %arg1: i32) -> (i32, i32) {
    %c0_i32 = arith.constant 0 : i32
    %c0_i32_0 = arith.constant 0 : i32
    %c0_i32_1 = arith.constant 0 : i32
    return %c0_i32, %c0_i32_0 : i32, i32
  }
  func.func @transform_10(%arg0: i32, %arg1: i32) -> (i32, i32) {
    %c0_i32 = arith.constant 0 : i32
    %c0_i32_0 = arith.constant 0 : i32
    %c0_i32_1 = arith.constant 0 : i32
    return %c0_i32, %c0_i32_0 : i32, i32
  }
  func.func @transform_11(%arg0: i32, %arg1: i32) -> (i32, i32) {
    %c0_i32 = arith.constant 0 : i32
    %c0_i32_0 = arith.constant 0 : i32
    %c0_i32_1 = arith.constant 0 : i32
    return %c0_i32, %c0_i32_0 : i32, i32
  }
  func.func @transform_12(%arg0: i32, %arg1: i32) -> (i32, i32) {
    %c0_i32 = arith.constant 0 : i32
    %c0_i32_0 = arith.constant 0 : i32
    %c0_i32_1 = arith.constant 0 : i32
    return %c0_i32, %c0_i32_0 : i32, i32
  }
  func.func @transform_13(%arg0: i32, %arg1: i32) -> (i32, i32) {
    %c0_i32 = arith.constant 0 : i32
    %c0_i32_0 = arith.constant 0 : i32
    %c0_i32_1 = arith.constant 0 : i32
    return %c0_i32, %c0_i32_0 : i32, i32
  }
  func.func @transform_14(%arg0: i32, %arg1: i32) -> (i32, i32) {
    %c0_i32 = arith.constant 0 : i32
    %c0_i32_0 = arith.constant 0 : i32
    %c0_i32_1 = arith.constant 0 : i32
    return %c0_i32, %c0_i32_0 : i32, i32
  }
  func.func @transform_15(%arg0: i32, %arg1: i32) -> (i32, i32) {
    %c0_i32 = arith.constant 0 : i32
    %c0_i32_0 = arith.constant 0 : i32
    %c0_i32_1 = arith.constant 0 : i32
    return %c0_i32, %c0_i32_0 : i32, i32
  }
  func.func @transform_16(%arg0: i32, %arg1: i32) -> (i32, i32) {
    %c0_i32 = arith.constant 0 : i32
    %c0_i32_0 = arith.constant 0 : i32
    %c0_i32_1 = arith.constant 0 : i32
    return %c0_i32, %c0_i32_0 : i32, i32
  }
  func.func @transform_17(%arg0: i32, %arg1: i32) -> (i32, i32, i32) {
    %c0_i32 = arith.constant 0 : i32
    %c0_i32_0 = arith.constant 0 : i32
    return %arg0, %arg1, %c0_i32 : i32, i32, i32
  }
}

module attributes {stable_mosaic.version = 11 : i64} {
  func.func @bert_layer_kernel(%arg0: i32, %arg1: i32, %arg2: memref<1x8x32xf32, #tpu.memory_space<vmem>>, %arg3: memref<32x32xbf16, #tpu.memory_space<vmem>>, %arg4: memref<1x32xf32, #tpu.memory_space<vmem>>, %arg5: memref<32x32xbf16, #tpu.memory_space<vmem>>, %arg6: memref<1x32xf32, #tpu.memory_space<vmem>>, %arg7: memref<32x32xbf16, #tpu.memory_space<vmem>>, %arg8: memref<1x32xf32, #tpu.memory_space<vmem>>, %arg9: memref<32x32xbf16, #tpu.memory_space<vmem>>, %arg10: memref<1x32xf32, #tpu.memory_space<vmem>>, %arg11: memref<1x32xf32, #tpu.memory_space<vmem>>, %arg12: memref<1x32xf32, #tpu.memory_space<vmem>>, %arg13: memref<32x128xbf16, #tpu.memory_space<vmem>>, %arg14: memref<1x128xf32, #tpu.memory_space<vmem>>, %arg15: memref<128x32xbf16, #tpu.memory_space<vmem>>, %arg16: memref<1x32xf32, #tpu.memory_space<vmem>>, %arg17: memref<1x32xf32, #tpu.memory_space<vmem>>, %arg18: memref<1x32xf32, #tpu.memory_space<vmem>>, %arg19: memref<1x8x32xf32, #tpu.memory_space<vmem>>, %arg20: memref<8x32xbf16, #tpu.memory_space<vmem>>, %arg21: memref<8x32xbf16, #tpu.memory_space<vmem>>) attributes {dimension_semantics = [#tpu.dimension_semantics<parallel>, #tpu.dimension_semantics<arbitrary>], iteration_bounds = array<i64: 2, 1>, scalar_prefetch = 0 : i64, scratch_operands = 2 : i64, tpu.core_type = #tpu.core_type<tc>, window_params = [{transform_indices = @transform_0, window_bounds = array<i64: 1, 8, 32>}, {pipeline_mode = #tpu.pipeline_mode<synchronous>, transform_indices = @transform_1, window_bounds = array<i64: 32, 32>}, {pipeline_mode = #tpu.pipeline_mode<synchronous>, transform_indices = @transform_2, window_bounds = array<i64: 1, 32>}, {pipeline_mode = #tpu.pipeline_mode<synchronous>, transform_indices = @transform_3, window_bounds = array<i64: 32, 32>}, {pipeline_mode = #tpu.pipeline_mode<synchronous>, transform_indices = @transform_4, window_bounds = array<i64: 1, 32>}, {pipeline_mode = #tpu.pipeline_mode<synchronous>, transform_indices = @transform_5, window_bounds = array<i64: 32, 32>}, {pipeline_mode = #tpu.pipeline_mode<synchronous>, transform_indices = @transform_6, window_bounds = array<i64: 1, 32>}, {pipeline_mode = #tpu.pipeline_mode<synchronous>, transform_indices = @transform_7, window_bounds = array<i64: 32, 32>}, {pipeline_mode = #tpu.pipeline_mode<synchronous>, transform_indices = @transform_8, window_bounds = array<i64: 1, 32>}, {pipeline_mode = #tpu.pipeline_mode<synchronous>, transform_indices = @transform_9, window_bounds = array<i64: 1, 32>}, {pipeline_mode = #tpu.pipeline_mode<synchronous>, transform_indices = @transform_10, window_bounds = array<i64: 1, 32>}, {pipeline_mode = #tpu.pipeline_mode<synchronous>, transform_indices = @transform_11, window_bounds = array<i64: 32, 128>}, {pipeline_mode = #tpu.pipeline_mode<synchronous>, transform_indices = @transform_12, window_bounds = array<i64: 1, 128>}, {pipeline_mode = #tpu.pipeline_mode<synchronous>, transform_indices = @transform_13, window_bounds = array<i64: 128, 32>}, {pipeline_mode = #tpu.pipeline_mode<synchronous>, transform_indices = @transform_14, window_bounds = array<i64: 1, 32>}, {pipeline_mode = #tpu.pipeline_mode<synchronous>, transform_indices = @transform_15, window_bounds = array<i64: 1, 32>}, {pipeline_mode = #tpu.pipeline_mode<synchronous>, transform_indices = @transform_16, window_bounds = array<i64: 1, 32>}, {transform_indices = @transform_17, window_bounds = array<i64: 1, 8, 32>}]} {
    %c0_i32 = arith.constant 0 : i32
    %0 = arith.cmpi eq, %arg1, %c0_i32 : i32
    %1 = arith.extui %0 : i1 to i32
    %c0_i32_0 = arith.constant 0 : i32
    %2 = arith.cmpi ne, %1, %c0_i32_0 : i32
    scf.if %2 {
      %c0_55 = arith.constant 0 : index
      %c0_56 = arith.constant 0 : index
      %c0_57 = arith.constant 0 : index
      %112 = vector.load %arg2[%c0_55, %c0_56, %c0_57] : memref<1x8x32xf32, #tpu.memory_space<vmem>>, vector<1x8x32xf32>
      %113 = vector.shape_cast %112 : vector<1x8x32xf32> to vector<8x32xf32>
      %114 = arith.truncf %113 : vector<8x32xf32> to vector<8x32xbf16>
      %c0_58 = arith.constant 0 : index
      %c0_59 = arith.constant 0 : index
      %115 = vector.load %arg5[%c0_58, %c0_59] : memref<32x32xbf16, #tpu.memory_space<vmem>>, vector<32x32xbf16>
      %cst_60 = arith.constant dense<0.000000e+00> : vector<8x32xf32>
      %116 = tpu.matmul %114, %115, %cst_60 {dimension_numbers = #tpu.dot_dimension_numbers<[1], [0], [0], [1], [0, 0, 1, 1], [], []>} : vector<8x32xbf16>, vector<32x32xbf16>, vector<8x32xf32> -> vector<8x32xf32>
      %c0_61 = arith.constant 0 : index
      %c0_62 = arith.constant 0 : index
      %117 = vector.load %arg6[%c0_61, %c0_62] : memref<1x32xf32, #tpu.memory_space<vmem>>, vector<1x32xf32>
      %118 = vector.broadcast %117 : vector<1x32xf32> to vector<8x32xf32>
      %119 = arith.addf %116, %118 : vector<8x32xf32>
      %c0_63 = arith.constant 0 : index
      %c0_64 = arith.constant 0 : index
      %120 = vector.load %arg7[%c0_63, %c0_64] : memref<32x32xbf16, #tpu.memory_space<vmem>>, vector<32x32xbf16>
      %cst_65 = arith.constant dense<0.000000e+00> : vector<8x32xf32>
      %121 = tpu.matmul %114, %120, %cst_65 {dimension_numbers = #tpu.dot_dimension_numbers<[1], [0], [0], [1], [0, 0, 1, 1], [], []>} : vector<8x32xbf16>, vector<32x32xbf16>, vector<8x32xf32> -> vector<8x32xf32>
      %c0_66 = arith.constant 0 : index
      %c0_67 = arith.constant 0 : index
      %122 = vector.load %arg8[%c0_66, %c0_67] : memref<1x32xf32, #tpu.memory_space<vmem>>, vector<1x32xf32>
      %123 = vector.broadcast %122 : vector<1x32xf32> to vector<8x32xf32>
      %124 = arith.addf %121, %123 : vector<8x32xf32>
      %125 = arith.truncf %119 : vector<8x32xf32> to vector<8x32xbf16>
      %c0_68 = arith.constant 0 : index
      %c0_69 = arith.constant 0 : index
      %126 = vector.load %arg20[%c0_68, %c0_69] : memref<8x32xbf16, #tpu.memory_space<vmem>>, vector<8x32xbf16>
      tpu.vector_store %arg20[%c0_68, %c0_69], %125 {strides = array<i32>} : memref<8x32xbf16, #tpu.memory_space<vmem>>, vector<8x32xbf16>,
      %127 = arith.truncf %124 : vector<8x32xf32> to vector<8x32xbf16>
      %c0_70 = arith.constant 0 : index
      %c0_71 = arith.constant 0 : index
      %128 = vector.load %arg21[%c0_70, %c0_71] : memref<8x32xbf16, #tpu.memory_space<vmem>>, vector<8x32xbf16>
      tpu.vector_store %arg21[%c0_70, %c0_71], %127 {strides = array<i32>} : memref<8x32xbf16, #tpu.memory_space<vmem>>, vector<8x32xbf16>,
    } else {
    }
    %c8_i32 = arith.constant 8 : i32
    %3 = arith.muli %arg1, %c8_i32 : i32
    %4 = tpu.assume_multiple %3, 8 : i32
    %c0 = arith.constant 0 : index
    %5 = arith.index_cast %4 : i32 to index
    %c0_1 = arith.constant 0 : index
    %6 = vector.load %arg2[%c0, %5, %c0_1] : memref<1x8x32xf32, #tpu.memory_space<vmem>>, vector<1x8x32xf32>
    %7 = vector.shape_cast %6 : vector<1x8x32xf32> to vector<8x32xf32>
    %8 = arith.truncf %7 : vector<8x32xf32> to vector<8x32xbf16>
    %c0_2 = arith.constant 0 : index
    %c0_3 = arith.constant 0 : index
    %9 = vector.load %arg3[%c0_2, %c0_3] : memref<32x32xbf16, #tpu.memory_space<vmem>>, vector<32x32xbf16>
    %cst = arith.constant dense<0.000000e+00> : vector<8x32xf32>
    %10 = tpu.matmul %8, %9, %cst {dimension_numbers = #tpu.dot_dimension_numbers<[1], [0], [0], [1], [0, 0, 1, 1], [], []>} : vector<8x32xbf16>, vector<32x32xbf16>, vector<8x32xf32> -> vector<8x32xf32>
    %c0_4 = arith.constant 0 : index
    %c0_5 = arith.constant 0 : index
    %11 = vector.load %arg4[%c0_4, %c0_5] : memref<1x32xf32, #tpu.memory_space<vmem>>, vector<1x32xf32>
    %12 = vector.broadcast %11 : vector<1x32xf32> to vector<8x32xf32>
    %13 = arith.addf %10, %12 : vector<8x32xf32>
    %14 = arith.truncf %13 : vector<8x32xf32> to vector<8x32xbf16>
    %c0_6 = arith.constant 0 : index
    %c0_7 = arith.constant 0 : index
    %15 = vector.load %arg20[%c0_6, %c0_7] : memref<8x32xbf16, #tpu.memory_space<vmem>>, vector<8x32xbf16>
    %cst_8 = arith.constant dense<0.000000e+00> : vector<8x8xf32>
    %16 = tpu.matmul %14, %15, %cst_8 {dimension_numbers = #tpu.dot_dimension_numbers<[1], [1], [0], [0], [0, 0, 1, 0], [], []>} : vector<8x32xbf16>, vector<8x32xbf16>, vector<8x8xf32> -> vector<8x8xf32>
    %cst_9 = arith.constant dense<0xFF800000> : vector<8xf32>
    %17 = vector.multi_reduction <maximumf>, %16, %cst_9 [1] : vector<8x8xf32> to vector<8xf32>
    %18 = vector.shape_cast %17 : vector<8xf32> to vector<8x1xf32>
    %19 = vector.broadcast %18 : vector<8x1xf32> to vector<8x8xf32>
    %20 = arith.subf %16, %19 : vector<8x8xf32>
    %21 = math.exp %20 : vector<8x8xf32>
    %cst_10 = arith.constant dense<0.000000e+00> : vector<8xf32>
    %22 = vector.multi_reduction <add>, %21, %cst_10 [1] : vector<8x8xf32> to vector<8xf32>
    %23 = vector.shape_cast %22 : vector<8xf32> to vector<8x1xf32>
    %24 = tpu.reciprocal %23 {approx = true} : vector<8x1xf32> -> vector<8x1xf32>
    %25 = vector.broadcast %24 : vector<8x1xf32> to vector<8x8xf32>
    %26 = arith.mulf %21, %25 : vector<8x8xf32>
    %27 = arith.truncf %26 : vector<8x8xf32> to vector<8x8xbf16>
    %c0_11 = arith.constant 0 : index
    %c0_12 = arith.constant 0 : index
    %28 = vector.load %arg21[%c0_11, %c0_12] : memref<8x32xbf16, #tpu.memory_space<vmem>>, vector<8x32xbf16>
    %cst_13 = arith.constant dense<0.000000e+00> : vector<8x32xf32>
    %29 = tpu.matmul %27, %28, %cst_13 {dimension_numbers = #tpu.dot_dimension_numbers<[1], [0], [0], [1], [0, 0, 1, 1], [], []>} : vector<8x8xbf16>, vector<8x32xbf16>, vector<8x32xf32> -> vector<8x32xf32>
    %30 = arith.truncf %29 : vector<8x32xf32> to vector<8x32xbf16>
    %c0_14 = arith.constant 0 : index
    %c0_15 = arith.constant 0 : index
    %31 = vector.load %arg9[%c0_14, %c0_15] : memref<32x32xbf16, #tpu.memory_space<vmem>>, vector<32x32xbf16>
    %cst_16 = arith.constant dense<0.000000e+00> : vector<8x32xf32>
    %32 = tpu.matmul %30, %31, %cst_16 {dimension_numbers = #tpu.dot_dimension_numbers<[1], [0], [0], [1], [0, 0, 1, 1], [], []>} : vector<8x32xbf16>, vector<32x32xbf16>, vector<8x32xf32> -> vector<8x32xf32>
    %c0_17 = arith.constant 0 : index
    %c0_18 = arith.constant 0 : index
    %33 = vector.load %arg10[%c0_17, %c0_18] : memref<1x32xf32, #tpu.memory_space<vmem>>, vector<1x32xf32>
    %34 = vector.broadcast %33 : vector<1x32xf32> to vector<8x32xf32>
    %35 = arith.addf %32, %34 : vector<8x32xf32>
    %36 = arith.addf %35, %7 : vector<8x32xf32>
    %c0_19 = arith.constant 0 : index
    %c0_20 = arith.constant 0 : index
    %37 = vector.load %arg11[%c0_19, %c0_20] : memref<1x32xf32, #tpu.memory_space<vmem>>, vector<1x32xf32>
    %c0_21 = arith.constant 0 : index
    %c0_22 = arith.constant 0 : index
    %38 = vector.load %arg12[%c0_21, %c0_22] : memref<1x32xf32, #tpu.memory_space<vmem>>, vector<1x32xf32>
    %cst_23 = arith.constant dense<0.000000e+00> : vector<8xf32>
    %39 = vector.multi_reduction <add>, %36, %cst_23 [1] : vector<8x32xf32> to vector<8xf32>
    %40 = vector.shape_cast %39 : vector<8xf32> to vector<8x1xf32>
    %cst_24 = arith.constant 3.200000e+01 : f32
    %41 = vector.broadcast %cst_24 : f32 to vector<8x1xf32>
    %42 = arith.divf %40, %41 : vector<8x1xf32>
    %43 = vector.broadcast %42 : vector<8x1xf32> to vector<8x32xf32>
    %44 = arith.subf %36, %43 : vector<8x32xf32>
    %45 = arith.mulf %44, %44 : vector<8x32xf32>
    %cst_25 = arith.constant dense<0.000000e+00> : vector<8xf32>
    %46 = vector.multi_reduction <add>, %45, %cst_25 [1] : vector<8x32xf32> to vector<8xf32>
    %47 = vector.shape_cast %46 : vector<8xf32> to vector<8x1xf32>
    %cst_26 = arith.constant 3.200000e+01 : f32
    %48 = vector.broadcast %cst_26 : f32 to vector<8x1xf32>
    %49 = arith.divf %47, %48 : vector<8x1xf32>
    %cst_27 = arith.constant 9.99999996E-13 : f32
    %50 = vector.broadcast %cst_27 : f32 to vector<8x1xf32>
    %51 = arith.addf %49, %50 : vector<8x1xf32>
    %52 = math.rsqrt %51 : vector<8x1xf32>
    %53 = vector.broadcast %52 : vector<8x1xf32> to vector<8x32xf32>
    %54 = arith.mulf %44, %53 : vector<8x32xf32>
    %55 = vector.broadcast %37 : vector<1x32xf32> to vector<8x32xf32>
    %56 = arith.mulf %54, %55 : vector<8x32xf32>
    %57 = vector.broadcast %38 : vector<1x32xf32> to vector<8x32xf32>
    %58 = arith.addf %56, %57 : vector<8x32xf32>
    %59 = arith.truncf %58 : vector<8x32xf32> to vector<8x32xbf16>
    %cst_28 = arith.constant 0.000000e+00 : f32
    %60 = vector.broadcast %cst_28 : f32 to vector<8x32xf32>
    %c0_29 = arith.constant 0 : index
    %c0_30 = arith.constant 0 : index
    %61 = vector.load %arg13[%c0_29, %c0_30] : memref<32x128xbf16, #tpu.memory_space<vmem>>, vector<32x128xbf16>
    %cst_31 = arith.constant dense<0.000000e+00> : vector<8x128xf32>
    %62 = tpu.matmul %59, %61, %cst_31 {dimension_numbers = #tpu.dot_dimension_numbers<[1], [0], [0], [1], [0, 0, 1, 1], [], []>} : vector<8x32xbf16>, vector<32x128xbf16>, vector<8x128xf32> -> vector<8x128xf32>
    %c0_32 = arith.constant 0 : index
    %c0_33 = arith.constant 0 : index
    %63 = vector.load %arg14[%c0_32, %c0_33] : memref<1x128xf32, #tpu.memory_space<vmem>>, vector<1x128xf32>
    %64 = vector.broadcast %63 : vector<1x128xf32> to vector<8x128xf32>
    %65 = arith.addf %62, %64 : vector<8x128xf32>
    %cst_34 = arith.constant 5.000000e-01 : f32
    %66 = vector.broadcast %cst_34 : f32 to vector<8x128xf32>
    %67 = arith.mulf %66, %65 : vector<8x128xf32>
    %cst_35 = arith.constant 4.471500e-02 : f32
    %68 = vector.broadcast %cst_35 : f32 to vector<8x128xf32>
    %69 = arith.mulf %68, %65 : vector<8x128xf32>
    %70 = arith.mulf %69, %65 : vector<8x128xf32>
    %71 = arith.mulf %70, %65 : vector<8x128xf32>
    %72 = arith.addf %65, %71 : vector<8x128xf32>
    %cst_36 = arith.constant 0.797884583 : f32
    %73 = vector.broadcast %cst_36 : f32 to vector<8x128xf32>
    %74 = arith.mulf %73, %72 : vector<8x128xf32>
    %75 = math.tanh %74 : vector<8x128xf32>
    %cst_37 = arith.constant 1.000000e+00 : f32
    %76 = vector.broadcast %cst_37 : f32 to vector<8x128xf32>
    %77 = arith.addf %76, %75 : vector<8x128xf32>
    %78 = arith.mulf %67, %77 : vector<8x128xf32>
    %79 = arith.truncf %78 : vector<8x128xf32> to vector<8x128xbf16>
    %c0_38 = arith.constant 0 : index
    %c0_39 = arith.constant 0 : index
    %80 = vector.load %arg15[%c0_38, %c0_39] : memref<128x32xbf16, #tpu.memory_space<vmem>>, vector<128x32xbf16>
    %cst_40 = arith.constant dense<0.000000e+00> : vector<8x32xf32>
    %81 = tpu.matmul %79, %80, %cst_40 {dimension_numbers = #tpu.dot_dimension_numbers<[1], [0], [0], [1], [0, 0, 1, 1], [], []>} : vector<8x128xbf16>, vector<128x32xbf16>, vector<8x32xf32> -> vector<8x32xf32>
    %82 = arith.addf %60, %81 : vector<8x32xf32>
    %c0_41 = arith.constant 0 : index
    %c0_42 = arith.constant 0 : index
    %83 = vector.load %arg16[%c0_41, %c0_42] : memref<1x32xf32, #tpu.memory_space<vmem>>, vector<1x32xf32>
    %84 = vector.broadcast %83 : vector<1x32xf32> to vector<8x32xf32>
    %85 = arith.addf %82, %84 : vector<8x32xf32>
    %86 = arith.addf %85, %58 : vector<8x32xf32>
    %c0_43 = arith.constant 0 : index
    %c0_44 = arith.constant 0 : index
    %87 = vector.load %arg17[%c0_43, %c0_44] : memref<1x32xf32, #tpu.memory_space<vmem>>, vector<1x32xf32>
    %c0_45 = arith.constant 0 : index
    %c0_46 = arith.constant 0 : index
    %88 = vector.load %arg18[%c0_45, %c0_46] : memref<1x32xf32, #tpu.memory_space<vmem>>, vector<1x32xf32>
    %cst_47 = arith.constant dense<0.000000e+00> : vector<8xf32>
    %89 = vector.multi_reduction <add>, %86, %cst_47 [1] : vector<8x32xf32> to vector<8xf32>
    %90 = vector.shape_cast %89 : vector<8xf32> to vector<8x1xf32>
    %cst_48 = arith.constant 3.200000e+01 : f32
    %91 = vector.broadcast %cst_48 : f32 to vector<8x1xf32>
    %92 = arith.divf %90, %91 : vector<8x1xf32>
    %93 = vector.broadcast %92 : vector<8x1xf32> to vector<8x32xf32>
    %94 = arith.subf %86, %93 : vector<8x32xf32>
    %95 = arith.mulf %94, %94 : vector<8x32xf32>
    %cst_49 = arith.constant dense<0.000000e+00> : vector<8xf32>
    %96 = vector.multi_reduction <add>, %95, %cst_49 [1] : vector<8x32xf32> to vector<8xf32>
    %97 = vector.shape_cast %96 : vector<8xf32> to vector<8x1xf32>
    %cst_50 = arith.constant 3.200000e+01 : f32
    %98 = vector.broadcast %cst_50 : f32 to vector<8x1xf32>
    %99 = arith.divf %97, %98 : vector<8x1xf32>
    %cst_51 = arith.constant 9.99999996E-13 : f32
    %100 = vector.broadcast %cst_51 : f32 to vector<8x1xf32>
    %101 = arith.addf %99, %100 : vector<8x1xf32>
    %102 = math.rsqrt %101 : vector<8x1xf32>
    %103 = vector.broadcast %102 : vector<8x1xf32> to vector<8x32xf32>
    %104 = arith.mulf %94, %103 : vector<8x32xf32>
    %105 = vector.broadcast %87 : vector<1x32xf32> to vector<8x32xf32>
    %106 = arith.mulf %104, %105 : vector<8x32xf32>
    %107 = vector.broadcast %88 : vector<1x32xf32> to vector<8x32xf32>
    %108 = arith.addf %106, %107 : vector<8x32xf32>
    %c0_52 = arith.constant 0 : index
    %c0_53 = arith.constant 0 : index
    %c0_54 = arith.constant 0 : index
    %109 = vector.load %arg19[%c0_52, %c0_53, %c0_54] : memref<1x8x32xf32, #tpu.memory_space<vmem>>, vector<1x8x32xf32>
    %110 = vector.shape_cast %109 : vector<1x8x32xf32> to vector<8x32xf32>
    %111 = vector.shape_cast %108 : vector<8x32xf32> to vector<1x8x32xf32>
    tpu.vector_store %arg19[%c0_52, %c0_53, %c0_54], %111 {strides = array<i32>} : memref<1x8x32xf32, #tpu.memory_space<vmem>>, vector<1x8x32xf32>,
    return
  }
  func.func @transform_0(%arg0: i32, %arg1: i32) -> (i32, i32, i32) {
    %c0_i32 = arith.constant 0 : i32
    %c0_i32_0 = arith.constant 0 : i32
    %c0_i32_1 = arith.constant 0 : i32
    return %arg0, %c0_i32, %c0_i32_0 : i32, i32, i32
  }
  func.func @transform_1(%arg0: i32, %arg1: i32) -> (i32, i32) {
    %c0_i32 = arith.constant 0 : i32
    %c0_i32_0 = arith.constant 0 : i32
    %c0_i32_1 = arith.constant 0 : i32
    return %c0_i32, %c0_i32_0 : i32, i32
  }
  func.func @transform_2(%arg0: i32, %arg1: i32) -> (i32, i32) {
    %c0_i32 = arith.constant 0 : i32
    %c0_i32_0 = arith.constant 0 : i32
    %c0_i32_1 = arith.constant 0 : i32
    return %c0_i32, %c0_i32_0 : i32, i32
  }
  func.func @transform_3(%arg0: i32, %arg1: i32) -> (i32, i32) {
    %c0_i32 = arith.constant 0 : i32
    %c0_i32_0 = arith.constant 0 : i32
    %c0_i32_1 = arith.constant 0 : i32
    return %c0_i32, %c0_i32_0 : i32, i32
  }
  func.func @transform_4(%arg0: i32, %arg1: i32) -> (i32, i32) {
    %c0_i32 = arith.constant 0 : i32
    %c0_i32_0 = arith.constant 0 : i32
    %c0_i32_1 = arith.constant 0 : i32
    return %c0_i32, %c0_i32_0 : i32, i32
  }
  func.func @transform_5(%arg0: i32, %arg1: i32) -> (i32, i32) {
    %c0_i32 = arith.constant 0 : i32
    %c0_i32_0 = arith.constant 0 : i32
    %c0_i32_1 = arith.constant 0 : i32
    return %c0_i32, %c0_i32_0 : i32, i32
  }
  func.func @transform_6(%arg0: i32, %arg1: i32) -> (i32, i32) {
    %c0_i32 = arith.constant 0 : i32
    %c0_i32_0 = arith.constant 0 : i32
    %c0_i32_1 = arith.constant 0 : i32
    return %c0_i32, %c0_i32_0 : i32, i32
  }
  func.func @transform_7(%arg0: i32, %arg1: i32) -> (i32, i32) {
    %c0_i32 = arith.constant 0 : i32
    %c0_i32_0 = arith.constant 0 : i32
    %c0_i32_1 = arith.constant 0 : i32
    return %c0_i32, %c0_i32_0 : i32, i32
  }
  func.func @transform_8(%arg0: i32, %arg1: i32) -> (i32, i32) {
    %c0_i32 = arith.constant 0 : i32
    %c0_i32_0 = arith.constant 0 : i32
    %c0_i32_1 = arith.constant 0 : i32
    return %c0_i32, %c0_i32_0 : i32, i32
  }
  func.func @transform_9(%arg0: i32, %arg1: i32) -> (i32, i32) {
    %c0_i32 = arith.constant 0 : i32
    %c0_i32_0 = arith.constant 0 : i32
    %c0_i32_1 = arith.constant 0 : i32
    return %c0_i32, %c0_i32_0 : i32, i32
  }
  func.func @transform_10(%arg0: i32, %arg1: i32) -> (i32, i32) {
    %c0_i32 = arith.constant 0 : i32
    %c0_i32_0 = arith.constant 0 : i32
    %c0_i32_1 = arith.constant 0 : i32
    return %c0_i32, %c0_i32_0 : i32, i32
  }
  func.func @transform_11(%arg0: i32, %arg1: i32) -> (i32, i32) {
    %c0_i32 = arith.constant 0 : i32
    %c0_i32_0 = arith.constant 0 : i32
    %c0_i32_1 = arith.constant 0 : i32
    return %c0_i32, %c0_i32_0 : i32, i32
  }
  func.func @transform_12(%arg0: i32, %arg1: i32) -> (i32, i32) {
    %c0_i32 = arith.constant 0 : i32
    %c0_i32_0 = arith.constant 0 : i32
    %c0_i32_1 = arith.constant 0 : i32
    return %c0_i32, %c0_i32_0 : i32, i32
  }
  func.func @transform_13(%arg0: i32, %arg1: i32) -> (i32, i32) {
    %c0_i32 = arith.constant 0 : i32
    %c0_i32_0 = arith.constant 0 : i32
    %c0_i32_1 = arith.constant 0 : i32
    return %c0_i32, %c0_i32_0 : i32, i32
  }
  func.func @transform_14(%arg0: i32, %arg1: i32) -> (i32, i32) {
    %c0_i32 = arith.constant 0 : i32
    %c0_i32_0 = arith.constant 0 : i32
    %c0_i32_1 = arith.constant 0 : i32
    return %c0_i32, %c0_i32_0 : i32, i32
  }
  func.func @transform_15(%arg0: i32, %arg1: i32) -> (i32, i32) {
    %c0_i32 = arith.constant 0 : i32
    %c0_i32_0 = arith.constant 0 : i32
    %c0_i32_1 = arith.constant 0 : i32
    return %c0_i32, %c0_i32_0 : i32, i32
  }
  func.func @transform_16(%arg0: i32, %arg1: i32) -> (i32, i32) {
    %c0_i32 = arith.constant 0 : i32
    %c0_i32_0 = arith.constant 0 : i32
    %c0_i32_1 = arith.constant 0 : i32
    return %c0_i32, %c0_i32_0 : i32, i32
  }
  func.func @transform_17(%arg0: i32, %arg1: i32) -> (i32, i32, i32) {
    %c0_i32 = arith.constant 0 : i32
    %c0_i32_0 = arith.constant 0 : i32
    return %arg0, %arg1, %c0_i32 : i32, i32, i32
  }
}

</mosaic_0001>

<llo_original>
// kernel: tpu_custom_call.1
$region0: #{tpu_custom_call.1}
  #allocation0 [shape = 'u32[]', space=smem, size = 0x4, offset = 0x4, fixed_abs, tag = 'smem constant byte address 0x4 - core index']
  #allocation1 [shape = 'u32[144,128]{1,0:T(1,128)}', space=vmem, size = 0x12000, scoped, tag = 'internal scratch']
  #allocation2 [shape = 'bf16[8,32]{1,0:T(8,128)(2,1)}', space=vmem, size = 0x800, scoped, tag = 'scratch operand']
  #allocation3 [shape = 'bf16[8,32]{1,0:T(8,128)(2,1)}', space=vmem, size = 0x800, scoped, tag = 'scratch operand']
  %s0 = inlined_call_operand.vmem [shape: f32[2,8,32], index: 0, kind: input, shape index: {}]
  %s1 = inlined_call_operand.vmem [shape: bf16[32,32], index: 1, kind: input, shape index: {}]
  %s2 = inlined_call_operand.vmem [shape: f32[1,32], index: 2, kind: input, shape index: {}]
  %s3 = inlined_call_operand.vmem [shape: bf16[32,32], index: 3, kind: input, shape index: {}]
  %s4 = inlined_call_operand.vmem [shape: f32[1,32], index: 4, kind: input, shape index: {}]
  %s5 = inlined_call_operand.vmem [shape: bf16[32,32], index: 5, kind: input, shape index: {}]
  %s6 = inlined_call_operand.hbm [shape: f32[1,32], index: 6, kind: input, shape index: {}]
  %s7 = inlined_call_operand.vmem [shape: bf16[32,32], index: 7, kind: input, shape index: {}]
  %s8 = inlined_call_operand.hbm [shape: f32[1,32], index: 8, kind: input, shape index: {}]
  %s9 = inlined_call_operand.hbm [shape: f32[1,32], index: 9, kind: input, shape index: {}]
  %s10 = inlined_call_operand.vmem [shape: f32[1,32], index: 10, kind: input, shape index: {}]
  %s11 = inlined_call_operand.vmem [shape: bf16[32,128], index: 11, kind: input, shape index: {}]
  %s12 = inlined_call_operand.vmem [shape: f32[1,128], index: 12, kind: input, shape index: {}]
  %s13 = inlined_call_operand.vmem [shape: bf16[128,32], index: 13, kind: input, shape index: {}]
  %s14 = inlined_call_operand.vmem [shape: f32[1,32], index: 14, kind: input, shape index: {}]
  %s15 = inlined_call_operand.vmem [shape: f32[1,32], index: 15, kind: input, shape index: {}]
  %s16 = inlined_call_operand.vmem [shape: f32[1,32], index: 16, kind: input, shape index: {}]
  %s17 = inlined_call_operand.hbm [shape: f32[2,8,32], index: 17, kind: output, shape index: {}]
  %s18 = sld [smem:[#allocation0]]
  $region117: #{tpu_custom_call.1} parent=0
    _
  %s20 = ssub.s32 1, %s18
  %s21 = scalar_select 0, %s20, %s18
  $region1: #{tpu_custom_call.1} parent=0
    #allocation4 [shape = 'u8[512]{0}', space=vmem, size = 0x400, scoped, tag = 'input window, operand 6, single buffered']
    #allocation5 [shape = 's32[2]{0}', space=sflag, size = 0x8, scoped, tag = 'scoped memory for tpu_custom_call.1']
    #allocation6 [shape = 's32[2]{0}', space=sflag, size = 0x8, scoped, tag = 'scoped memory for tpu_custom_call.1']
    #allocation7 [shape = 'u8[512]{0}', space=vmem, size = 0x400, scoped, tag = 'input window, operand 8, single buffered']
    #allocation8 [shape = 's32[1]{0}', space=sflag, size = 0x4, scoped, tag = 'scoped memory for tpu_custom_call.1']
    #allocation9 [shape = 'u8[512]{0}', space=vmem, size = 0x400, scoped, tag = 'input window, operand 9, single buffered']
    #allocation10 [shape = 'u8[8192]{0}', space=vmem, size = 0x2000, scoped, tag = 'output window, operand 0']
    %22 = vsyncpa [#allocation5], 0
    %23 = vsyncpa [#allocation8], 0
    %24 = vsyncpa [#allocation6], 0
    %s25 = scalar_lea.sflag [#allocation6], 1
    %26 = vsyncpa %s25, 0
    loop: start=0, step=1, limit=4
    $region2: #{tpu_custom_call.1} parent=1 // loop_pre_header
      _
    $region3: #{tpu_custom_call.1} parent=1 // loop_header
      %s28 = sphi 0, %s32
      %p29 = scmp.ge.s32.totalorder %s28, 4
      %s35 = sphi 0, %s47
      %s36 = sphi 0, %s43
      %s37 = sphi 0, %s35
      %s38 = sphi 0, %s36
      %s39 = sphi 0, %s37
      %s40 = sphi 0, %s38
      %s50 = sphi 0, %s52
      %s53 = sphi 0, %s50
      %s54 = sphi 0, %s53
      %s70 = sphi 0, %s54
      %s74 = sphi 0, %s74
      %s76 = sphi 0, %s74
      %s77 = sphi 0, %s76
      %s91 = sphi 0, %s77
      %s95 = sphi 0, %s95
      %s97 = sphi 0, %s95
      %s98 = sphi 0, %s97
      %s112 = sphi 0, %s98
      %s116 = sphi 0, %s116
      %s118 = sphi 0, %s116
      %s119 = sphi 0, %s118
      %s133 = sphi 0, %s119
      %s137 = sphi 0, %s137
      %s139 = sphi 0, %s137
      %s140 = sphi 0, %s139
      %s154 = sphi 0, %s140
      %s158 = sphi 0, %s158
      %s160 = sphi 0, %s158
      %s161 = sphi 0, %s160
      %s175 = sphi 0, %s161
      %s179 = sphi 0, %s179
      %s181 = sphi 0, %s179
      %s182 = sphi 0, %s181
      %s196 = sphi 0, %s182
      %s200 = sphi 0, %s200
      %s202 = sphi 0, %s200
      %s203 = sphi 0, %s202
      %s217 = sphi 0, %s203
      %s221 = sphi 0, %s221
      %s223 = sphi 0, %s221
      %s224 = sphi 0, %s223
      %s238 = sphi 0, %s224
      %s242 = sphi 0, %s242
      %s244 = sphi 0, %s242
      %s245 = sphi 0, %s244
      %s259 = sphi 0, %s245
      %s263 = sphi 0, %s263
      %s265 = sphi 0, %s263
      %s266 = sphi 0, %s265
      %s280 = sphi 0, %s266
      %s284 = sphi 0, %s284
      %s286 = sphi 0, %s284
      %s287 = sphi 0, %s286
      %s301 = sphi 0, %s287
      %s305 = sphi 0, %s305
      %s307 = sphi 0, %s305
      %s308 = sphi 0, %s307
      %s322 = sphi 0, %s308
      %s326 = sphi 0, %s326
      %s328 = sphi 0, %s326
      %s329 = sphi 0, %s328
      %s343 = sphi 0, %s329
      %s347 = sphi 0, %s347
      %s349 = sphi 0, %s347
      %s350 = sphi 0, %s349
      %s364 = sphi 0, %s350
      %s368 = sphi 0, %s368
      %s370 = sphi 0, %s368
      %s371 = sphi 0, %s370
      %s385 = sphi 0, %s371
      %s389 = sphi 0, %s389
      %s391 = sphi 0, %s389
      %s392 = sphi 0, %s391
      %s406 = sphi 0, %s392
      %s414 = sphi 0, %s416
      %s417 = sphi 0, %s414
      %s418 = sphi 0, %s417
      %s434 = sphi 0, %s418
    $region4: #{tpu_custom_call.1} parent=1 // loop_header_branch
      %31 = sbr.rel (%p29) target = $region8
    $region5: #{tpu_custom_call.1} parent=1 // loop_body
      %s33 = ssub.s32 %s28, 1
      %s34 = ssub.s32 %s28, 2
      %s41 = sadd.s32 1, %s36
      %p42 = scmp.ge.s32.totalorder %s41, 1
      %s43 = scalar_select %p42, 0, %s41
      %s44 = sadd.s32 1, %s35
      %s45 = scalar_select %p42, %s44, %s35
      %p46 = scmp.ge.s32.totalorder %s45, 2
      %s47 = scalar_select %p46, 0, %s45
      %s48 = ssub.s32 %s35, %s47
      %p49 = scmp.eq.s32.totalorder %s48, 0
      %s51 = sadd.s32 %s50, 1
      %s52 = scalar_select %p49, %s50, %s51
      %p55 = pneg %p49
      %p56 = scmp.eq.s32.totalorder %s28, 1
      %p57 = por %p55, %p56
      %p58 = scmp.ne.s32.totalorder %s50, %s53
      %p59 = scmp.eq.s32.totalorder %s28, 0
      %p60 = por %p58, %p59
      %p61 = scmp.ne.s32.totalorder %s50, %s53
      %p62 = scmp.eq.s32.totalorder %s33, 1
      %p63 = por %p61, %p62
      %p64 = scmp.ne.s32.totalorder %s53, %s54
      %p65 = scmp.eq.s32.totalorder %s33, 0
      %p66 = por %p64, %p65
      %p67 = scmp.ne.s32.totalorder %s53, %s54
      %p68 = scmp.eq.s32.totalorder %s34, 1
      %p69 = por %p67, %p68
      %p71 = scmp.ne.s32.totalorder %s54, %s70
      %p72 = scmp.eq.s32.totalorder %s34, 0
      %p73 = por %p71, %p72
      %s75 = sadd.s32 %s74, 1
      %p78 = scmp.eq.s32.totalorder %s28, 1
      %p79 = scmp.ne.s32.totalorder %s74, %s76
      %p80 = scmp.eq.s32.totalorder %s28, 0
      %p81 = por %p79, %p80
      %p82 = scmp.ne.s32.totalorder %s74, %s76
      %p83 = scmp.eq.s32.totalorder %s33, 1
      %p84 = por %p82, %p83
      %p85 = scmp.ne.s32.totalorder %s76, %s77
      %p86 = scmp.eq.s32.totalorder %s33, 0
      %p87 = por %p85, %p86
      %p88 = scmp.ne.s32.totalorder %s76, %s77
      %p89 = scmp.eq.s32.totalorder %s34, 1
      %p90 = por %p88, %p89
      %p92 = scmp.ne.s32.totalorder %s77, %s91
      %p93 = scmp.eq.s32.totalorder %s34, 0
      %p94 = por %p92, %p93
      %s96 = sadd.s32 %s95, 1
      %p99 = scmp.eq.s32.totalorder %s28, 1
      %p100 = scmp.ne.s32.totalorder %s95, %s97
      %p101 = scmp.eq.s32.totalorder %s28, 0
      %p102 = por %p100, %p101
      %p103 = scmp.ne.s32.totalorder %s95, %s97
      %p104 = scmp.eq.s32.totalorder %s33, 1
      %p105 = por %p103, %p104
      %p106 = scmp.ne.s32.totalorder %s97, %s98
      %p107 = scmp.eq.s32.totalorder %s33, 0
      %p108 = por %p106, %p107
      %p109 = scmp.ne.s32.totalorder %s97, %s98
      %p110 = scmp.eq.s32.totalorder %s34, 1
      %p111 = por %p109, %p110
      %p113 = scmp.ne.s32.totalorder %s98, %s112
      %p114 = scmp.eq.s32.totalorder %s34, 0
      %p115 = por %p113, %p114
      %s117 = sadd.s32 %s116, 1
      %p120 = scmp.eq.s32.totalorder %s28, 1
      %p121 = scmp.ne.s32.totalorder %s116, %s118
      %p122 = scmp.eq.s32.totalorder %s28, 0
      %p123 = por %p121, %p122
      %p124 = scmp.ne.s32.totalorder %s116, %s118
      %p125 = scmp.eq.s32.totalorder %s33, 1
      %p126 = por %p124, %p125
      %p127 = scmp.ne.s32.totalorder %s118, %s119
      %p128 = scmp.eq.s32.totalorder %s33, 0
      %p129 = por %p127, %p128
      %p130 = scmp.ne.s32.totalorder %s118, %s119
      %p131 = scmp.eq.s32.totalorder %s34, 1
      %p132 = por %p130, %p131
      %p134 = scmp.ne.s32.totalorder %s119, %s133
      %p135 = scmp.eq.s32.totalorder %s34, 0
      %p136 = por %p134, %p135
      %s138 = sadd.s32 %s137, 1
      %p141 = scmp.eq.s32.totalorder %s28, 1
      %p142 = scmp.ne.s32.totalorder %s137, %s139
      %p143 = scmp.eq.s32.totalorder %s28, 0
      %p144 = por %p142, %p143
      %p145 = scmp.ne.s32.totalorder %s137, %s139
      %p146 = scmp.eq.s32.totalorder %s33, 1
      %p147 = por %p145, %p146
      %p148 = scmp.ne.s32.totalorder %s139, %s140
      %p149 = scmp.eq.s32.totalorder %s33, 0
      %p150 = por %p148, %p149
      %p151 = scmp.ne.s32.totalorder %s139, %s140
      %p152 = scmp.eq.s32.totalorder %s34, 1
      %p153 = por %p151, %p152
      %p155 = scmp.ne.s32.totalorder %s140, %s154
      %p156 = scmp.eq.s32.totalorder %s34, 0
      %p157 = por %p155, %p156
      %s159 = sadd.s32 %s158, 1
      %p162 = scmp.eq.s32.totalorder %s28, 1
      %p163 = scmp.ne.s32.totalorder %s158, %s160
      %p164 = scmp.eq.s32.totalorder %s28, 0
      %p165 = por %p163, %p164
      %p166 = scmp.ne.s32.totalorder %s158, %s160
      %p167 = scmp.eq.s32.totalorder %s33, 1
      %p168 = por %p166, %p167
      %p169 = scmp.ne.s32.totalorder %s160, %s161
      %p170 = scmp.eq.s32.totalorder %s33, 0
      %p171 = por %p169, %p170
      %p172 = scmp.ne.s32.totalorder %s160, %s161
      %p173 = scmp.eq.s32.totalorder %s34, 1
      %p174 = por %p172, %p173
      %p176 = scmp.ne.s32.totalorder %s161, %s175
      %p177 = scmp.eq.s32.totalorder %s34, 0
      %p178 = por %p176, %p177
      %s180 = sadd.s32 %s179, 1
      %p183 = scmp.eq.s32.totalorder %s28, 1
      %p184 = scmp.ne.s32.totalorder %s179, %s181
      %p185 = scmp.eq.s32.totalorder %s28, 0
      %p186 = por %p184, %p185
      %p187 = scmp.ne.s32.totalorder %s179, %s181
      %p188 = scmp.eq.s32.totalorder %s33, 1
      %p189 = por %p187, %p188
      %p190 = scmp.ne.s32.totalorder %s181, %s182
      %p191 = scmp.eq.s32.totalorder %s33, 0
      %p192 = por %p190, %p191
      %p193 = scmp.ne.s32.totalorder %s181, %s182
      %p194 = scmp.eq.s32.totalorder %s34, 1
      %p195 = por %p193, %p194
      %p197 = scmp.ne.s32.totalorder %s182, %s196
      %p198 = scmp.eq.s32.totalorder %s34, 0
      %p199 = por %p197, %p198
      %s201 = sadd.s32 %s200, 1
      %p204 = scmp.eq.s32.totalorder %s28, 1
      %p205 = scmp.ne.s32.totalorder %s200, %s202
      %p206 = scmp.eq.s32.totalorder %s28, 0
      %p207 = por %p205, %p206
      %p208 = scmp.ne.s32.totalorder %s200, %s202
      %p209 = scmp.eq.s32.totalorder %s33, 1
      %p210 = por %p208, %p209
      %p211 = scmp.ne.s32.totalorder %s202, %s203
      %p212 = scmp.eq.s32.totalorder %s33, 0
      %p213 = por %p211, %p212
      %p214 = scmp.ne.s32.totalorder %s202, %s203
      %p215 = scmp.eq.s32.totalorder %s34, 1
      %p216 = por %p214, %p215
      %p218 = scmp.ne.s32.totalorder %s203, %s217
      %p219 = scmp.eq.s32.totalorder %s34, 0
      %p220 = por %p218, %p219
      %s222 = sadd.s32 %s221, 1
      %p225 = scmp.eq.s32.totalorder %s28, 1
      %p226 = scmp.ne.s32.totalorder %s221, %s223
      %p227 = scmp.eq.s32.totalorder %s28, 0
      %p228 = por %p226, %p227
      %p229 = scmp.ne.s32.totalorder %s221, %s223
      %p230 = scmp.eq.s32.totalorder %s33, 1
      %p231 = por %p229, %p230
      %p232 = scmp.ne.s32.totalorder %s223, %s224
      %p233 = scmp.eq.s32.totalorder %s33, 0
      %p234 = por %p232, %p233
      %p235 = scmp.ne.s32.totalorder %s223, %s224
      %p236 = scmp.eq.s32.totalorder %s34, 1
      %p237 = por %p235, %p236
      %p239 = scmp.ne.s32.totalorder %s224, %s238
      %p240 = scmp.eq.s32.totalorder %s34, 0
      %p241 = por %p239, %p240
      %s243 = sadd.s32 %s242, 1
      %p246 = scmp.eq.s32.totalorder %s28, 1
      %p247 = scmp.ne.s32.totalorder %s242, %s244
      %p248 = scmp.eq.s32.totalorder %s28, 0
      %p249 = por %p247, %p248
      %p250 = scmp.ne.s32.totalorder %s242, %s244
      %p251 = scmp.eq.s32.totalorder %s33, 1
      %p252 = por %p250, %p251
      %p253 = scmp.ne.s32.totalorder %s244, %s245
      %p254 = scmp.eq.s32.totalorder %s33, 0
      %p255 = por %p253, %p254
      %p256 = scmp.ne.s32.totalorder %s244, %s245
      %p257 = scmp.eq.s32.totalorder %s34, 1
      %p258 = por %p256, %p257
      %p260 = scmp.ne.s32.totalorder %s245, %s259
      %p261 = scmp.eq.s32.totalorder %s34, 0
      %p262 = por %p260, %p261
      %s264 = sadd.s32 %s263, 1
      %p267 = scmp.eq.s32.totalorder %s28, 1
      %p268 = scmp.ne.s32.totalorder %s263, %s265
      %p269 = scmp.eq.s32.totalorder %s28, 0
      %p270 = por %p268, %p269
      %p271 = scmp.ne.s32.totalorder %s263, %s265
      %p272 = scmp.eq.s32.totalorder %s33, 1
      %p273 = por %p271, %p272
      %p274 = scmp.ne.s32.totalorder %s265, %s266
      %p275 = scmp.eq.s32.totalorder %s33, 0
      %p276 = por %p274, %p275
      %p277 = scmp.ne.s32.totalorder %s265, %s266
      %p278 = scmp.eq.s32.totalorder %s34, 1
      %p279 = por %p277, %p278
      %p281 = scmp.ne.s32.totalorder %s266, %s280
      %p282 = scmp.eq.s32.totalorder %s34, 0
      %p283 = por %p281, %p282
      %s285 = sadd.s32 %s284, 1
      %p288 = scmp.eq.s32.totalorder %s28, 1
      %p289 = scmp.ne.s32.totalorder %s284, %s286
      %p290 = scmp.eq.s32.totalorder %s28, 0
      %p291 = por %p289, %p290
      %p292 = scmp.ne.s32.totalorder %s284, %s286
      %p293 = scmp.eq.s32.totalorder %s33, 1
      %p294 = por %p292, %p293
      %p295 = scmp.ne.s32.totalorder %s286, %s287
      %p296 = scmp.eq.s32.totalorder %s33, 0
      %p297 = por %p295, %p296
      %p298 = scmp.ne.s32.totalorder %s286, %s287
      %p299 = scmp.eq.s32.totalorder %s34, 1
      %p300 = por %p298, %p299
      %p302 = scmp.ne.s32.totalorder %s287, %s301
      %p303 = scmp.eq.s32.totalorder %s34, 0
      %p304 = por %p302, %p303
      %s306 = sadd.s32 %s305, 1
      %p309 = scmp.eq.s32.totalorder %s28, 1
      %p310 = scmp.ne.s32.totalorder %s305, %s307
      %p311 = scmp.eq.s32.totalorder %s28, 0
      %p312 = por %p310, %p311
      %p313 = scmp.ne.s32.totalorder %s305, %s307
      %p314 = scmp.eq.s32.totalorder %s33, 1
      %p315 = por %p313, %p314
      %p316 = scmp.ne.s32.totalorder %s307, %s308
      %p317 = scmp.eq.s32.totalorder %s33, 0
      %p318 = por %p316, %p317
      %p319 = scmp.ne.s32.totalorder %s307, %s308
      %p320 = scmp.eq.s32.totalorder %s34, 1
      %p321 = por %p319, %p320
      %p323 = scmp.ne.s32.totalorder %s308, %s322
      %p324 = scmp.eq.s32.totalorder %s34, 0
      %p325 = por %p323, %p324
      %s327 = sadd.s32 %s326, 1
      %p330 = scmp.eq.s32.totalorder %s28, 1
      %p331 = scmp.ne.s32.totalorder %s326, %s328
      %p332 = scmp.eq.s32.totalorder %s28, 0
      %p333 = por %p331, %p332
      %p334 = scmp.ne.s32.totalorder %s326, %s328
      %p335 = scmp.eq.s32.totalorder %s33, 1
      %p336 = por %p334, %p335
      %p337 = scmp.ne.s32.totalorder %s328, %s329
      %p338 = scmp.eq.s32.totalorder %s33, 0
      %p339 = por %p337, %p338
      %p340 = scmp.ne.s32.totalorder %s328, %s329
      %p341 = scmp.eq.s32.totalorder %s34, 1
      %p342 = por %p340, %p341
      %p344 = scmp.ne.s32.totalorder %s329, %s343
      %p345 = scmp.eq.s32.totalorder %s34, 0
      %p346 = por %p344, %p345
      %s348 = sadd.s32 %s347, 1
      %p351 = scmp.eq.s32.totalorder %s28, 1
      %p352 = scmp.ne.s32.totalorder %s347, %s349
      %p353 = scmp.eq.s32.totalorder %s28, 0
      %p354 = por %p352, %p353
      %p355 = scmp.ne.s32.totalorder %s347, %s349
      %p356 = scmp.eq.s32.totalorder %s33, 1
      %p357 = por %p355, %p356
      %p358 = scmp.ne.s32.totalorder %s349, %s350
      %p359 = scmp.eq.s32.totalorder %s33, 0
      %p360 = por %p358, %p359
      %p361 = scmp.ne.s32.totalorder %s349, %s350
      %p362 = scmp.eq.s32.totalorder %s34, 1
      %p363 = por %p361, %p362
      %p365 = scmp.ne.s32.totalorder %s350, %s364
      %p366 = scmp.eq.s32.totalorder %s34, 0
      %p367 = por %p365, %p366
      %s369 = sadd.s32 %s368, 1
      %p372 = scmp.eq.s32.totalorder %s28, 1
      %p373 = scmp.ne.s32.totalorder %s368, %s370
      %p374 = scmp.eq.s32.totalorder %s28, 0
      %p375 = por %p373, %p374
      %p376 = scmp.ne.s32.totalorder %s368, %s370
      %p377 = scmp.eq.s32.totalorder %s33, 1
      %p378 = por %p376, %p377
      %p379 = scmp.ne.s32.totalorder %s370, %s371
      %p380 = scmp.eq.s32.totalorder %s33, 0
      %p381 = por %p379, %p380
      %p382 = scmp.ne.s32.totalorder %s370, %s371
      %p383 = scmp.eq.s32.totalorder %s34, 1
      %p384 = por %p382, %p383
      %p386 = scmp.ne.s32.totalorder %s371, %s385
      %p387 = scmp.eq.s32.totalorder %s34, 0
      %p388 = por %p386, %p387
      %s390 = sadd.s32 %s389, 1
      %p393 = scmp.eq.s32.totalorder %s28, 1
      %p394 = scmp.ne.s32.totalorder %s389, %s391
      %p395 = scmp.eq.s32.totalorder %s28, 0
      %p396 = por %p394, %p395
      %p397 = scmp.ne.s32.totalorder %s389, %s391
      %p398 = scmp.eq.s32.totalorder %s33, 1
      %p399 = por %p397, %p398
      %p400 = scmp.ne.s32.totalorder %s391, %s392
      %p401 = scmp.eq.s32.totalorder %s33, 0
      %p402 = por %p400, %p401
      %p403 = scmp.ne.s32.totalorder %s391, %s392
      %p404 = scmp.eq.s32.totalorder %s34, 1
      %p405 = por %p403, %p404
      %p407 = scmp.ne.s32.totalorder %s392, %s406
      %p408 = scmp.eq.s32.totalorder %s34, 0
      %p409 = por %p407, %p408
      %s410 = ssub.s32 %s35, %s47
      %s411 = ssub.s32 %s36, %s43
      %s412 = sor.u32 %s410, %s411
      %p413 = scmp.eq.s32.totalorder %s412, 0
      %s415 = sadd.s32 %s414, 1
      %s416 = scalar_select %p413, %s414, %s415
      %p419 = pneg %p413
      %p420 = scmp.eq.s32.totalorder %s28, 1
      %p421 = por %p419, %p420
      %p422 = scmp.ne.s32.totalorder %s414, %s417
      %p423 = scmp.eq.s32.totalorder %s28, 0
      %p424 = por %p422, %p423
      %p425 = scmp.ne.s32.totalorder %s414, %s417
      %p426 = scmp.eq.s32.totalorder %s33, 1
      %p427 = por %p425, %p426
      %p428 = scmp.ne.s32.totalorder %s417, %s418
      %p429 = scmp.eq.s32.totalorder %s33, 0
      %p430 = por %p428, %p429
      %p431 = scmp.ne.s32.totalorder %s417, %s418
      %p432 = scmp.eq.s32.totalorder %s34, 1
      %p433 = por %p431, %p432
      %p435 = scmp.ne.s32.totalorder %s418, %s434
      %p436 = scmp.eq.s32.totalorder %s34, 0
      %p437 = por %p435, %p436
      %p438 = scmp.le.s32.totalorder 1, %s28
      %p439 = scmp.lt.s32.totalorder %s28, 3
      %p440 = pnand %p438, %p439
      %p441 = pneg %p440
      // Predicated region
      $region9: #{tpu_custom_call.1} parent=5 // pred_check
        _
      $region10: #{tpu_custom_call.1} parent=5 // pred_check_branch
        %443 = sbr.rel (%p440) target = $region12
      $region11: #{tpu_custom_call.1} parent=5 // pred_region
        %s444 = ssub.s32 %s28, 1
        // Predicated region
        $region13: #{tpu_custom_call.1} parent=11 // pred_check
          %p445 = pneg %p87
        $region14: #{tpu_custom_call.1} parent=11 // pred_check_branch
          %447 = sbr.rel (%p445) target = $region16
        $region15: #{tpu_custom_call.1} parent=11 // pred_region
          _
        $region16: #{tpu_custom_call.1} parent=11 // pred_fallthru
          _
        // Predicated region
        $region17: #{tpu_custom_call.1} parent=11 // pred_check
          %p448 = pneg %p108
        $region18: #{tpu_custom_call.1} parent=11 // pred_check_branch
          %450 = sbr.rel (%p448) target = $region20
        $region19: #{tpu_custom_call.1} parent=11 // pred_region
          _
        $region20: #{tpu_custom_call.1} parent=11 // pred_fallthru
          _
        // Predicated region
        $region21: #{tpu_custom_call.1} parent=11 // pred_check
          %p451 = pneg %p129
        $region22: #{tpu_custom_call.1} parent=11 // pred_check_branch
          %453 = sbr.rel (%p451) target = $region24
        $region23: #{tpu_custom_call.1} parent=11 // pred_region
          _
        $region24: #{tpu_custom_call.1} parent=11 // pred_fallthru
          _
        // Predicated region
        $region25: #{tpu_custom_call.1} parent=11 // pred_check
          %p454 = pneg %p150
        $region26: #{tpu_custom_call.1} parent=11 // pred_check_branch
          %456 = sbr.rel (%p454) target = $region28
        $region27: #{tpu_custom_call.1} parent=11 // pred_region
          _
        $region28: #{tpu_custom_call.1} parent=11 // pred_fallthru
          _
        // Predicated region
        $region29: #{tpu_custom_call.1} parent=11 // pred_check
          %p457 = pneg %p171
        $region30: #{tpu_custom_call.1} parent=11 // pred_check_branch
          %459 = sbr.rel (%p457) target = $region32
        $region31: #{tpu_custom_call.1} parent=11 // pred_region
          _
        $region32: #{tpu_custom_call.1} parent=11 // pred_fallthru
          _
        // Predicated region
        $region33: #{tpu_custom_call.1} parent=11 // pred_check
          %p460 = pneg %p192
        $region34: #{tpu_custom_call.1} parent=11 // pred_check_branch
          %462 = sbr.rel (%p460) target = $region36
        $region35: #{tpu_custom_call.1} parent=11 // pred_region
          %s464 = ssub.s32 16, 16
          %465 = vsyncadd [#allocation5], %s464
          %s467 = sshll.u32 [#allocation4], 4
          %s468 = int_to_ptr.vmem [resolvable:$true] %s467
          %470 = dma.hbm_to_vmem [thread:$0]  %s6, 16, %s468, [#allocation5]
        $region36: #{tpu_custom_call.1} parent=11 // pred_fallthru
          _
        // Predicated region
        $region37: #{tpu_custom_call.1} parent=11 // pred_check
          %p471 = pneg %p213
        $region38: #{tpu_custom_call.1} parent=11 // pred_check_branch
          %473 = sbr.rel (%p471) target = $region40
        $region39: #{tpu_custom_call.1} parent=11 // pred_region
          _
        $region40: #{tpu_custom_call.1} parent=11 // pred_fallthru
          _
        // Predicated region
        $region41: #{tpu_custom_call.1} parent=11 // pred_check
          %p474 = pneg %p234
        $region42: #{tpu_custom_call.1} parent=11 // pred_check_branch
          %476 = sbr.rel (%p474) target = $region44
        $region43: #{tpu_custom_call.1} parent=11 // pred_region
          %s478 = ssub.s32 16, 16
          %479 = vsyncadd [#allocation8], %s478
          %s481 = sshll.u32 [#allocation7], 4
          %s482 = int_to_ptr.vmem [resolvable:$true] %s481
          %484 = dma.hbm_to_vmem [thread:$0]  %s8, 16, %s482, [#allocation8]
        $region44: #{tpu_custom_call.1} parent=11 // pred_fallthru
          _
        // Predicated region
        $region45: #{tpu_custom_call.1} parent=11 // pred_check
          %p485 = pneg %p255
        $region46: #{tpu_custom_call.1} parent=11 // pred_check_branch
          %487 = sbr.rel (%p485) target = $region48
        $region47: #{tpu_custom_call.1} parent=11 // pred_region
          %s489 = ssub.s32 16, 16
          %490 = vsyncadd [#allocation8], %s489
          %s492 = sshll.u32 [#allocation9], 4
          %s493 = int_to_ptr.vmem [resolvable:$true] %s492
          %495 = dma.hbm_to_vmem [thread:$0]  %s9, 16, %s493, [#allocation8]
        $region48: #{tpu_custom_call.1} parent=11 // pred_fallthru
          _
        // Predicated region
        $region49: #{tpu_custom_call.1} parent=11 // pred_check
          %p496 = pneg %p276
        $region50: #{tpu_custom_call.1} parent=11 // pred_check_branch
          %498 = sbr.rel (%p496) target = $region52
        $region51: #{tpu_custom_call.1} parent=11 // pred_region
          _
        $region52: #{tpu_custom_call.1} parent=11 // pred_fallthru
          _
        // Predicated region
        $region53: #{tpu_custom_call.1} parent=11 // pred_check
          %p499 = pneg %p297
        $region54: #{tpu_custom_call.1} parent=11 // pred_check_branch
          %501 = sbr.rel (%p499) target = $region56
        $region55: #{tpu_custom_call.1} parent=11 // pred_region
          _
        $region56: #{tpu_custom_call.1} parent=11 // pred_fallthru
          _
        // Predicated region
        $region57: #{tpu_custom_call.1} parent=11 // pred_check
          %p502 = pneg %p318
        $region58: #{tpu_custom_call.1} parent=11 // pred_check_branch
          %504 = sbr.rel (%p502) target = $region60
        $region59: #{tpu_custom_call.1} parent=11 // pred_region
          _
        $region60: #{tpu_custom_call.1} parent=11 // pred_fallthru
          _
        // Predicated region
        $region61: #{tpu_custom_call.1} parent=11 // pred_check
          %p505 = pneg %p339
        $region62: #{tpu_custom_call.1} parent=11 // pred_check_branch
          %507 = sbr.rel (%p505) target = $region64
        $region63: #{tpu_custom_call.1} parent=11 // pred_region
          _
        $region64: #{tpu_custom_call.1} parent=11 // pred_fallthru
          _
        // Predicated region
        $region65: #{tpu_custom_call.1} parent=11 // pred_check
          %p508 = pneg %p360
        $region66: #{tpu_custom_call.1} parent=11 // pred_check_branch
          %510 = sbr.rel (%p508) target = $region68
        $region67: #{tpu_custom_call.1} parent=11 // pred_region
          _
        $region68: #{tpu_custom_call.1} parent=11 // pred_fallthru
          _
        // Predicated region
        $region69: #{tpu_custom_call.1} parent=11 // pred_check
          %p511 = pneg %p381
        $region70: #{tpu_custom_call.1} parent=11 // pred_check_branch
          %513 = sbr.rel (%p511) target = $region72
        $region71: #{tpu_custom_call.1} parent=11 // pred_region
          _
        $region72: #{tpu_custom_call.1} parent=11 // pred_fallthru
          _
        // Predicated region
        $region73: #{tpu_custom_call.1} parent=11 // pred_check
          %p514 = pneg %p402
        $region74: #{tpu_custom_call.1} parent=11 // pred_check_branch
          %516 = sbr.rel (%p514) target = $region76
        $region75: #{tpu_custom_call.1} parent=11 // pred_region
          _
        $region76: #{tpu_custom_call.1} parent=11 // pred_fallthru
          _
      $region12: #{tpu_custom_call.1} parent=5 // pred_fallthru
        _
      %p517 = scmp.lt.s32.totalorder %s28, 2
      // Predicated region
      $region77: #{tpu_custom_call.1} parent=5 // pred_check
        %p518 = pneg %p517
      $region78: #{tpu_custom_call.1} parent=5 // pred_check_branch
        %520 = sbr.rel (%p518) target = $region80
      $region79: #{tpu_custom_call.1} parent=5 // pred_region
        // Predicated region
        $region81: #{tpu_custom_call.1} parent=79 // pred_check
          %p521 = pneg %p60
        $region82: #{tpu_custom_call.1} parent=79 // pred_check_branch
          %523 = sbr.rel (%p521) target = $region84
        $region83: #{tpu_custom_call.1} parent=79 // pred_region
          %p524 = scmp.lt.s32.totalorder %s35, 1
          %s525 = scalar_select %p524, %s35, 1
          %s526 = smul.addr %s525, 8
          %s527 = scalar_lea.vmem %s0, %s526
        $region84: #{tpu_custom_call.1} parent=79 // pred_fallthru
          _
      $region80: #{tpu_custom_call.1} parent=5 // pred_fallthru
        _
      %p528 = scmp.le.s32.totalorder 1, %s28
      %p529 = scmp.lt.s32.totalorder %s28, 3
      %p530 = pnand %p528, %p529
      %p531 = pneg %p530
      // Predicated region
      $region85: #{tpu_custom_call.1} parent=5 // pred_check
        _
      $region86: #{tpu_custom_call.1} parent=5 // pred_check_branch
        %533 = sbr.rel (%p530) target = $region88
      $region87: #{tpu_custom_call.1} parent=5 // pred_region
        %s534 = ssub.s32 %s28, 1
        // Predicated region
        $region89: #{tpu_custom_call.1} parent=87 // pred_check
          %p535 = pneg %p192
        $region90: #{tpu_custom_call.1} parent=87 // pred_check_branch
          %537 = sbr.rel (%p535) target = $region92
        $region91: #{tpu_custom_call.1} parent=87 // pred_region
          %538 = dma.done [#allocation5], 16
        $region92: #{tpu_custom_call.1} parent=87 // pred_fallthru
          _
        // Predicated region
        $region93: #{tpu_custom_call.1} parent=87 // pred_check
          %p539 = pneg %p234
        $region94: #{tpu_custom_call.1} parent=87 // pred_check_branch
          %541 = sbr.rel (%p539) target = $region96
        $region95: #{tpu_custom_call.1} parent=87 // pred_region
          %542 = dma.done [#allocation8], 16
        $region96: #{tpu_custom_call.1} parent=87 // pred_fallthru
          _
        // Predicated region
        $region97: #{tpu_custom_call.1} parent=87 // pred_check
          %p543 = pneg %p255
        $region98: #{tpu_custom_call.1} parent=87 // pred_check_branch
          %545 = sbr.rel (%p543) target = $region100
        $region99: #{tpu_custom_call.1} parent=87 // pred_region
          %546 = dma.done [#allocation8], 16
        $region100: #{tpu_custom_call.1} parent=87 // pred_fallthru
          _
        %p547 = scmp.lt.s32.totalorder %s37, 1
        %s548 = scalar_select %p547, %s37, 1
        %s549 = smul.addr %s548, 8
        %s550 = scalar_lea.vmem %s0, %s549
        %p551 = pneg %p66
        %p552 = pneg %p63
        %p553 = pneg %p87
        %p554 = pneg %p84
        %p555 = pneg %p108
        %p556 = pneg %p105
        %p557 = pneg %p129
        %p558 = pneg %p126
        %p559 = pneg %p150
        %p560 = pneg %p147
        %p561 = pneg %p171
        %p562 = pneg %p168
        %p563 = pneg %p192
        %p564 = pneg %p189
        %p565 = pneg %p213
        %p566 = pneg %p210
        %p567 = pneg %p234
        %p568 = pneg %p231
        %p569 = pneg %p255
        %p570 = pneg %p252
        %p571 = pneg %p276
        %p572 = pneg %p273
        %p573 = pneg %p297
        %p574 = pneg %p294
        %p575 = pneg %p318
        %p576 = pneg %p315
        %p577 = pneg %p339
        %p578 = pneg %p336
        %p579 = pneg %p360
        %p580 = pneg %p357
        %p581 = pneg %p381
        %p582 = pneg %p378
        %p583 = pneg %p402
        %p584 = pneg %p399
        %p585 = pneg %p430
        %p586 = pneg %p427
        %s587 = sand.u32 %s417, 1
        %s588 = scalar_lea.sflag [#allocation6], %s587
        %s589 = sand.u32 %s417, 1
        %s590 = smul.addr %s589, 8
        %s591 = scalar_lea.vmem [#allocation10], %s590
        %p592 = scmp.lt.s32.totalorder %s37, 1
        %s593 = scalar_select %p592, %s37, 1
        %s594 = smul.addr %s593, 8
        %s595 = scalar_lea.vmem %s0, %s594
        %p597 = scmp.eq.s32.totalorder %s38, 0
        // Predicated region
        $region101: #{tpu_custom_call.1} parent=87 // pred_check
          %p598 = pneg %p597
        $region102: #{tpu_custom_call.1} parent=87 // pred_check_branch
          %600 = sbr.rel (%p598) target = $region104
        $region103: #{tpu_custom_call.1} parent=87 // pred_region
          %v601 = vld [vmem:[%s595] sm:$0xff]
          %v602 = vpack.c.bf16 %v601, %v601
          %v603 = vld [vmem:[%s3] sm:$0xf]
          %v604 = vld [vmem:[%s3 + $0x4] sm:$0xf]
          %v605 = vld [vmem:[%s3 + $0x8] sm:$0xf]
          %v606 = vld [vmem:[%s3 + $0xc] sm:$0xf]
          %v607 = vld [vmem:[%s4] sm:$0x1]
          %v609 = vlaneseq
          %v610 = vshrl.u32 %v609, 7
          %v611 = vsub.s32 0, %v610
          %v612 = vrot.slane %v607, %v611
          %v618 = vunpack.c.l.b16 %v603
          %v619 = vunpack.c.l.b16 %v604
          %v620 = vunpack.c.l.b16 %v605
          %v621 = vunpack.c.l.b16 %v606
          %v622 = vpack.c.b16 %v619, %v618
          %v623 = vpack.c.b16 %v621, %v620
          %vm626 = vcmask 261120
          %v628 = vsel %vm626, %v602, 0
          %630 = vmatprep.subr.bf16.mxu0 0
          %631 = vmatpush1.bf16.msra.mxu0 %v622
          %632 = vmatprep.subr.bf16.mxu0 0
          %633 = vmatpush1.bf16.msra.mxu0 %v623
          %634 = vmatprep.subr.bf16.mxu0 0
          %635 = vmatpush1.bf16.msra.mxu0 0
          %636 = vmatprep.subr.bf16.mxu0 0
          %637 = vmatpush1.bf16.msra.mxu0 0
          %638 = vmatprep.subr.bf16.mxu0 0
          %639 = vmatpush1.bf16.msra.mxu0 0
          %640 = vmatprep.subr.bf16.mxu0 0
          %641 = vmatpush1.bf16.msra.mxu0 0
          %642 = vmatprep.subr.bf16.mxu0 0
          %643 = vmatpush1.bf16.msra.mxu0 0
          %644 = vmatprep.subr.bf16.mxu0 0
          %645 = vmatpush1.bf16.msra.mxu0 0
          %646 = vmatprep.subr.bf16.mxu0 0
          %647 = vmatpush1.bf16.msra.mxu0 0
          %648 = vmatprep.subr.bf16.mxu0 0
          %649 = vmatpush1.bf16.msra.mxu0 0
          %650 = vmatprep.subr.bf16.mxu0 0
          %651 = vmatpush1.bf16.msra.mxu0 0
          %652 = vmatprep.subr.bf16.mxu0 0
          %653 = vmatpush1.bf16.msra.mxu0 0
          %654 = vmatprep.subr.bf16.mxu0 0
          %655 = vmatpush1.bf16.msra.mxu0 0
          %656 = vmatprep.subr.bf16.mxu0 0
          %657 = vmatpush1.bf16.msra.mxu0 0
          %658 = vmatprep.subr.bf16.mxu0 0
          %659 = vmatpush1.bf16.msra.mxu0 0
          %660 = vmatprep.subr.bf16.mxu0 0
          %661 = vmatpush1.bf16.msra.mxu0 0
          %662 = vmatprep.mubr.bf16.mxu0 0
          %663 = vmatmul.mubr.bf16.gmra.mrb[0].mxu0 %v628
          %v664 = vpop.f32.mrb[0].mxu0
          %v665 = vadd.f32 %v612, %v664
          %v666 = vpop.f32.mrb[0].mxu0
          %v667 = vpop.f32.mrb[0].mxu0
          %v668 = vpop.f32.mrb[0].mxu0
          %669 = vdwg.mxu0
          %v670 = vld [vmem:[%s5] sm:$0xf]
          %v671 = vld [vmem:[%s5 + $0x4] sm:$0xf]
          %v672 = vld [vmem:[%s5 + $0x8] sm:$0xf]
          %v673 = vld [vmem:[%s5 + $0xc] sm:$0xf]
          %v674 = vld [vmem:[#allocation4] sm:$0x1]
          %v676 = vlaneseq
          %v677 = vshrl.u32 %v676, 7
          %v678 = vsub.s32 0, %v677
          %v679 = vrot.slane %v674, %v678
          %v685 = vunpack.c.l.b16 %v670
          %v686 = vunpack.c.l.b16 %v671
          %v687 = vunpack.c.l.b16 %v672
          %v688 = vunpack.c.l.b16 %v673
          %v689 = vpack.c.b16 %v686, %v685
          %v690 = vpack.c.b16 %v688, %v687
          %693 = vmatprep.subr.bf16.mxu0 0
          %694 = vmatpush1.bf16.msra.mxu0 %v689
          %695 = vmatprep.subr.bf16.mxu0 0
          %696 = vmatpush1.bf16.msra.mxu0 %v690
          %697 = vmatprep.subr.bf16.mxu0 0
          %698 = vmatpush1.bf16.msra.mxu0 0
          %699 = vmatprep.subr.bf16.mxu0 0
          %700 = vmatpush1.bf16.msra.mxu0 0
          %701 = vmatprep.subr.bf16.mxu0 0
          %702 = vmatpush1.bf16.msra.mxu0 0
          %703 = vmatprep.subr.bf16.mxu0 0
          %704 = vmatpush1.bf16.msra.mxu0 0
          %705 = vmatprep.subr.bf16.mxu0 0
          %706 = vmatpush1.bf16.msra.mxu0 0
          %707 = vmatprep.subr.bf16.mxu0 0
          %708 = vmatpush1.bf16.msra.mxu0 0
          %709 = vmatprep.subr.bf16.mxu0 0
          %710 = vmatpush1.bf16.msra.mxu0 0
          %711 = vmatprep.subr.bf16.mxu0 0
          %712 = vmatpush1.bf16.msra.mxu0 0
          %713 = vmatprep.subr.bf16.mxu0 0
          %714 = vmatpush1.bf16.msra.mxu0 0
          %715 = vmatprep.subr.bf16.mxu0 0
          %716 = vmatpush1.bf16.msra.mxu0 0
          %717 = vmatprep.subr.bf16.mxu0 0
          %718 = vmatpush1.bf16.msra.mxu0 0
          %719 = vmatprep.subr.bf16.mxu0 0
          %720 = vmatpush1.bf16.msra.mxu0 0
          %721 = vmatprep.subr.bf16.mxu0 0
          %722 = vmatpush1.bf16.msra.mxu0 0
          %723 = vmatprep.subr.bf16.mxu0 0
          %724 = vmatpush1.bf16.msra.mxu0 0
          %725 = vmatprep.mubr.bf16.mxu0 0
          %726 = vmatmul.mubr.bf16.gmra.mrb[0].mxu0 %v628
          %v727 = vpop.f32.mrb[0].mxu0
          %v728 = vadd.f32 %v679, %v727
          %v729 = vpop.f32.mrb[0].mxu0
          %v730 = vpop.f32.mrb[0].mxu0
          %v731 = vpop.f32.mrb[0].mxu0
          %732 = vdwg.mxu0
          %v733 = vpack.c.bf16 %v665, %v665
          %vm734 = vcmask 257024
          %735 = vst.msk [vmem:[#allocation2] sm:$0xf] %vm734, %v733
          %v736 = vpack.c.bf16 %v728, %v728
          %737 = vst.msk [vmem:[#allocation3] sm:$0xf] %vm734, %v736
        $region104: #{tpu_custom_call.1} parent=87 // pred_fallthru
          _
        %s738 = smul.u32 %s38, 8
        %s739 = scalar_lea.vmem %s595, %s738
        %v740 = vld [vmem:[%s739] sm:$0xff]
        %v741 = vpack.c.bf16 %v740, %v740
        %v742 = vld [vmem:[%s1] sm:$0xf]
        %v743 = vld [vmem:[%s1 + $0x4] sm:$0xf]
        %v744 = vld [vmem:[%s1 + $0x8] sm:$0xf]
        %v745 = vld [vmem:[%s1 + $0xc] sm:$0xf]
        %v746 = vld [vmem:[%s2] sm:$0x1]
        %v748 = vlaneseq
        %v749 = vshrl.u32 %v748, 7
        %v750 = vsub.s32 0, %v749
        %v751 = vrot.slane %v746, %v750
        %v757 = vunpack.c.l.b16 %v742
        %v758 = vunpack.c.l.b16 %v743
        %v759 = vunpack.c.l.b16 %v744
        %v760 = vunpack.c.l.b16 %v745
        %v761 = vpack.c.b16 %v758, %v757
        %v762 = vpack.c.b16 %v760, %v759
        %vm765 = vcmask 261120
        %v767 = vsel %vm765, %v741, 0
        %769 = vmatprep.subr.bf16.mxu0 0
        %770 = vmatpush1.bf16.msra.mxu0 %v761
        %771 = vmatprep.subr.bf16.mxu0 0
        %772 = vmatpush1.bf16.msra.mxu0 %v762
        %773 = vmatprep.subr.bf16.mxu0 0
        %774 = vmatpush1.bf16.msra.mxu0 0
        %775 = vmatprep.subr.bf16.mxu0 0
        %776 = vmatpush1.bf16.msra.mxu0 0
        %777 = vmatprep.subr.bf16.mxu0 0
        %778 = vmatpush1.bf16.msra.mxu0 0
        %779 = vmatprep.subr.bf16.mxu0 0
        %780 = vmatpush1.bf16.msra.mxu0 0
        %781 = vmatprep.subr.bf16.mxu0 0
        %782 = vmatpush1.bf16.msra.mxu0 0
        %783 = vmatprep.subr.bf16.mxu0 0
        %784 = vmatpush1.bf16.msra.mxu0 0
        %785 = vmatprep.subr.bf16.mxu0 0
        %786 = vmatpush1.bf16.msra.mxu0 0
        %787 = vmatprep.subr.bf16.mxu0 0
        %788 = vmatpush1.bf16.msra.mxu0 0
        %789 = vmatprep.subr.bf16.mxu0 0
        %790 = vmatpush1.bf16.msra.mxu0 0
        %791 = vmatprep.subr.bf16.mxu0 0
        %792 = vmatpush1.bf16.msra.mxu0 0
        %793 = vmatprep.subr.bf16.mxu0 0
        %794 = vmatpush1.bf16.msra.mxu0 0
        %795 = vmatprep.subr.bf16.mxu0 0
        %796 = vmatpush1.bf16.msra.mxu0 0
        %797 = vmatprep.subr.bf16.mxu0 0
        %798 = vmatpush1.bf16.msra.mxu0 0
        %799 = vmatprep.subr.bf16.mxu0 0
        %800 = vmatpush1.bf16.msra.mxu0 0
        %801 = vmatprep.mubr.bf16.mxu0 0
        %802 = vmatmul.mubr.bf16.gmra.mrb[0].mxu0 %v767
        %v803 = vpop.f32.mrb[0].mxu0
        %v804 = vadd.f32 %v751, %v803
        %v805 = vpop.f32.mrb[0].mxu0
        %v806 = vpop.f32.mrb[0].mxu0
        %v807 = vpop.f32.mrb[0].mxu0
        %808 = vdwg.mxu0
        %v809 = vpack.c.bf16 %v804, %v804
        %v810 = vld [vmem:[#allocation2] sm:$0xf]
        %v812 = vsel %vm765, %v809, 0
        %v815 = vsel %vm765, %v810, 0
        %817 = vmatprep.subr.bf16.mxu0 0
        %818 = vmatpush1.bf16.xpose.msra.mxu0 %v815
        %819 = vmatprep.subr.bf16.mxu0 0
        %820 = vmatpush1.bf16.xpose.msra.mxu0 0
        %821 = vmatprep.subr.bf16.mxu0 0
        %822 = vmatpush1.bf16.xpose.msra.mxu0 0
        %823 = vmatprep.subr.bf16.mxu0 0
        %824 = vmatpush1.bf16.xpose.msra.mxu0 0
        %825 = vmatprep.subr.bf16.mxu0 0
        %826 = vmatpush1.bf16.xpose.msra.mxu0 0
        %827 = vmatprep.subr.bf16.mxu0 0
        %828 = vmatpush1.bf16.xpose.msra.mxu0 0
        %829 = vmatprep.subr.bf16.mxu0 0
        %830 = vmatpush1.bf16.xpose.msra.mxu0 0
        %831 = vmatprep.subr.bf16.mxu0 0
        %832 = vmatpush1.bf16.xpose.msra.mxu0 0
        %833 = vmatprep.subr.bf16.mxu0 0
        %834 = vmatpush1.bf16.xpose.msra.mxu0 0
        %835 = vmatprep.subr.bf16.mxu0 0
        %836 = vmatpush1.bf16.xpose.msra.mxu0 0
        %837 = vmatprep.subr.bf16.mxu0 0
        %838 = vmatpush1.bf16.xpose.msra.mxu0 0
        %839 = vmatprep.subr.bf16.mxu0 0
        %840 = vmatpush1.bf16.xpose.msra.mxu0 0
        %841 = vmatprep.subr.bf16.mxu0 0
        %842 = vmatpush1.bf16.xpose.msra.mxu0 0
        %843 = vmatprep.subr.bf16.mxu0 0
        %844 = vmatpush1.bf16.xpose.msra.mxu0 0
        %845 = vmatprep.subr.bf16.mxu0 0
        %846 = vmatpush1.bf16.xpose.msra.mxu0 0
        %847 = vmatprep.subr.bf16.mxu0 0
        %848 = vmatpush1.bf16.xpose.msra.mxu0 0
        %849 = vmatprep.mubr.bf16.mxu0 0
        %850 = vmatmul.mubr.bf16.gmra.mrb[0].mxu0 %v812
        %v851 = vpop.f32.mrb[0].mxu0
        %v852 = vadd.f32 0.0, %v851
        %v853 = vpop.f32.mrb[0].mxu0
        %v854 = vpop.f32.mrb[0].mxu0
        %v855 = vpop.f32.mrb[0].mxu0
        %856 = vdwg.mxu0
        %vm857 = vcmask 64512
        %v858 = vsel %vm857, %v852, -inf
        %859 = vmax.xlane.f32.xlu0 %v858
        %v860 = vpop.xlane.xlu0 %859
        %v861 = vsub.f32 %v852, %v860
        %v862 = vmul.f32 %v861, 1.442695
        %v863 = vpow.pop %v862
        %v864 = vsel %vm857, %v863, 0.0
        %865 = vadd.xlane.f32.xlu0 %v864
        %v866 = vpop.xlane.xlu0 %865
        %v867 = vrcp.pop %v866
        %v868 = vmul.f32 %v863, %v867
        %v869 = vpack.c.bf16 %v868, %v868
        %v870 = vld [vmem:[#allocation3] sm:$0xf]
        %v872 = vsel %vm857, %v869, 0
        %vm874 = vcmask 1043456
        %v876 = vsel %vm874, %v870, 0
        %878 = vmatprep.subr.bf16.mxu0 0
        %879 = vmatpush1.bf16.msra.mxu0 %v876
        %880 = vmatprep.subr.bf16.mxu0 0
        %881 = vmatpush1.bf16.msra.mxu0 0
        %882 = vmatprep.subr.bf16.mxu0 0
        %883 = vmatpush1.bf16.msra.mxu0 0
        %884 = vmatprep.subr.bf16.mxu0 0
        %885 = vmatpush1.bf16.msra.mxu0 0
        %886 = vmatprep.subr.bf16.mxu0 0
        %887 = vmatpush1.bf16.msra.mxu0 0
        %888 = vmatprep.subr.bf16.mxu0 0
        %889 = vmatpush1.bf16.msra.mxu0 0
        %890 = vmatprep.subr.bf16.mxu0 0
        %891 = vmatpush1.bf16.msra.mxu0 0
        %892 = vmatprep.subr.bf16.mxu0 0
        %893 = vmatpush1.bf16.msra.mxu0 0
        %894 = vmatprep.subr.bf16.mxu0 0
        %895 = vmatpush1.bf16.msra.mxu0 0
        %896 = vmatprep.subr.bf16.mxu0 0
        %897 = vmatpush1.bf16.msra.mxu0 0
        %898 = vmatprep.subr.bf16.mxu0 0
        %899 = vmatpush1.bf16.msra.mxu0 0
        %900 = vmatprep.subr.bf16.mxu0 0
        %901 = vmatpush1.bf16.msra.mxu0 0
        %902 = vmatprep.subr.bf16.mxu0 0
        %903 = vmatpush1.bf16.msra.mxu0 0
        %904 = vmatprep.subr.bf16.mxu0 0
        %905 = vmatpush1.bf16.msra.mxu0 0
        %906 = vmatprep.subr.bf16.mxu0 0
        %907 = vmatpush1.bf16.msra.mxu0 0
        %908 = vmatprep.subr.bf16.mxu0 0
        %909 = vmatpush1.bf16.msra.mxu0 0
        %910 = vmatprep.mubr.bf16.mxu0 0
        %911 = vmatmul.mubr.bf16.gmra.mrb[0].mxu0 %v872
        %v912 = vpop.f32.mrb[0].mxu0
        %v913 = vadd.f32 0.0, %v912
        %v914 = vpop.f32.mrb[0].mxu0
        %v915 = vpop.f32.mrb[0].mxu0
        %v916 = vpop.f32.mrb[0].mxu0
        %917 = vdwg.mxu0
        %v918 = vpack.c.bf16 %v913, %v913
        %v919 = vld [vmem:[%s7] sm:$0xf]
        %v920 = vld [vmem:[%s7 + $0x4] sm:$0xf]
        %v921 = vld [vmem:[%s7 + $0x8] sm:$0xf]
        %v922 = vld [vmem:[%s7 + $0xc] sm:$0xf]
        %v923 = vld [vmem:[#allocation7] sm:$0x1]
        %v925 = vlaneseq
        %v926 = vshrl.u32 %v925, 7
        %v927 = vsub.s32 0, %v926
        %v928 = vrot.slane %v923, %v927
        %v934 = vunpack.c.l.b16 %v919
        %v935 = vunpack.c.l.b16 %v920
        %v936 = vunpack.c.l.b16 %v921
        %v937 = vunpack.c.l.b16 %v922
        %v938 = vpack.c.b16 %v935, %v934
        %v939 = vpack.c.b16 %v937, %v936
        %v943 = vsel %vm765, %v918, 0
        %945 = vmatprep.subr.bf16.mxu0 0
        %946 = vmatpush1.bf16.msra.mxu0 %v938
        %947 = vmatprep.subr.bf16.mxu0 0
        %948 = vmatpush1.bf16.msra.mxu0 %v939
        %949 = vmatprep.subr.bf16.mxu0 0
        %950 = vmatpush1.bf16.msra.mxu0 0
        %951 = vmatprep.subr.bf16.mxu0 0
        %952 = vmatpush1.bf16.msra.mxu0 0
        %953 = vmatprep.subr.bf16.mxu0 0
        %954 = vmatpush1.bf16.msra.mxu0 0
        %955 = vmatprep.subr.bf16.mxu0 0
        %956 = vmatpush1.bf16.msra.mxu0 0
        %957 = vmatprep.subr.bf16.mxu0 0
        %958 = vmatpush1.bf16.msra.mxu0 0
        %959 = vmatprep.subr.bf16.mxu0 0
        %960 = vmatpush1.bf16.msra.mxu0 0
        %961 = vmatprep.subr.bf16.mxu0 0
        %962 = vmatpush1.bf16.msra.mxu0 0
        %963 = vmatprep.subr.bf16.mxu0 0
        %964 = vmatpush1.bf16.msra.mxu0 0
        %965 = vmatprep.subr.bf16.mxu0 0
        %966 = vmatpush1.bf16.msra.mxu0 0
        %967 = vmatprep.subr.bf16.mxu0 0
        %968 = vmatpush1.bf16.msra.mxu0 0
        %969 = vmatprep.subr.bf16.mxu0 0
        %970 = vmatpush1.bf16.msra.mxu0 0
        %971 = vmatprep.subr.bf16.mxu0 0
        %972 = vmatpush1.bf16.msra.mxu0 0
        %973 = vmatprep.subr.bf16.mxu0 0
        %974 = vmatpush1.bf16.msra.mxu0 0
        %975 = vmatprep.subr.bf16.mxu0 0
        %976 = vmatpush1.bf16.msra.mxu0 0
        %977 = vmatprep.mubr.bf16.mxu0 0
        %978 = vmatmul.mubr.bf16.gmra.mrb[0].mxu0 %v943
        %v979 = vpop.f32.mrb[0].mxu0
        %v980 = vadd.f32 %v928, %v979
        %v981 = vpop.f32.mrb[0].mxu0
        %v982 = vpop.f32.mrb[0].mxu0
        %v983 = vpop.f32.mrb[0].mxu0
        %984 = vdwg.mxu0
        %v985 = vadd.f32 %v980, %v740
        %v986 = vld [vmem:[#allocation9] sm:$0x1]
        %v987 = vld [vmem:[%s10] sm:$0x1]
        %v988 = vsel %vm765, %v985, 0.0
        %989 = vadd.xlane.f32.xlu0 %v988
        %v990 = vpop.xlane.xlu0 %989
        %v991 = vrcp.pop 32.0
        %v992 = vmul.f32 %v990, %v991
        %v993 = vsub.f32 %v985, %v992
        %v994 = vmul.f32 %v993, %v993
        %v995 = vsel %vm765, %v994, 0.0
        %996 = vadd.xlane.f32.xlu0 %v995
        %v997 = vpop.xlane.xlu0 %996
        %v998 = vmul.f32 %v997, %v991
        %v999 = vadd.f32 %v998, 1e-12
        %v1000 = vrsqrt.pop %v999
        %v1001 = vmul.f32 %v993, %v1000
        %v1003 = vlaneseq
        %v1004 = vshrl.u32 %v1003, 7
        %v1005 = vsub.s32 0, %v1004
        %v1006 = vrot.slane %v986, %v1005
        %v1008 = vmul.f32 %v1001, %v1006
        %v1010 = vlaneseq
        %v1011 = vshrl.u32 %v1010, 7
        %v1012 = vsub.s32 0, %v1011
        %v1013 = vrot.slane %v987, %v1012
        %v1015 = vadd.f32 %v1008, %v1013
        %v1016 = vpack.c.bf16 %v1015, %v1015
        %v1017 = vld [vmem:[%s11] sm:$0xf]
        %v1018 = vld [vmem:[%s11 + $0x4] sm:$0xf]
        %v1019 = vld [vmem:[%s11 + $0x8] sm:$0xf]
        %v1020 = vld [vmem:[%s11 + $0xc] sm:$0xf]
        %v1021 = vld [vmem:[%s12] sm:$0x1]
        %v1023 = vlaneseq
        %v1024 = vshrl.u32 %v1023, 7
        %v1025 = vsub.s32 0, %v1024
        %v1026 = vrot.slane %v1021, %v1025
        %v1032 = vunpack.c.l.b16 %v1017
        %v1033 = vunpack.c.l.b16 %v1018
        %v1034 = vunpack.c.l.b16 %v1019
        %v1035 = vunpack.c.l.b16 %v1020
        %v1036 = vpack.c.b16 %v1033, %v1032
        %v1037 = vpack.c.b16 %v1035, %v1034
        %v1041 = vsel %vm765, %v1016, 0
        %1043 = vmatprep.subr.bf16.mxu0 0
        %1044 = vmatpush1.bf16.msra.mxu0 %v1036
        %1045 = vmatprep.subr.bf16.mxu0 0
        %1046 = vmatpush1.bf16.msra.mxu0 %v1037
        %1047 = vmatprep.subr.bf16.mxu0 0
        %1048 = vmatpush1.bf16.msra.mxu0 0
        %1049 = vmatprep.subr.bf16.mxu0 0
        %1050 = vmatpush1.bf16.msra.mxu0 0
        %1051 = vmatprep.subr.bf16.mxu0 0
        %1052 = vmatpush1.bf16.msra.mxu0 0
        %1053 = vmatprep.subr.bf16.mxu0 0
        %1054 = vmatpush1.bf16.msra.mxu0 0
        %1055 = vmatprep.subr.bf16.mxu0 0
        %1056 = vmatpush1.bf16.msra.mxu0 0
        %1057 = vmatprep.subr.bf16.mxu0 0
        %1058 = vmatpush1.bf16.msra.mxu0 0
        %1059 = vmatprep.subr.bf16.mxu0 0
        %1060 = vmatpush1.bf16.msra.mxu0 0
        %1061 = vmatprep.subr.bf16.mxu0 0
        %1062 = vmatpush1.bf16.msra.mxu0 0
        %1063 = vmatprep.subr.bf16.mxu0 0
        %1064 = vmatpush1.bf16.msra.mxu0 0
        %1065 = vmatprep.subr.bf16.mxu0 0
        %1066 = vmatpush1.bf16.msra.mxu0 0
        %1067 = vmatprep.subr.bf16.mxu0 0
        %1068 = vmatpush1.bf16.msra.mxu0 0
        %1069 = vmatprep.subr.bf16.mxu0 0
        %1070 = vmatpush1.bf16.msra.mxu0 0
        %1071 = vmatprep.subr.bf16.mxu0 0
        %1072 = vmatpush1.bf16.msra.mxu0 0
        %1073 = vmatprep.subr.bf16.mxu0 0
        %1074 = vmatpush1.bf16.msra.mxu0 0
        %1075 = vmatprep.mubr.bf16.mxu0 0
        %1076 = vmatmul.mubr.bf16.gmra.mrb[0].mxu0 %v1041
        %v1077 = vpop.f32.mrb[0].mxu0
        %v1078 = vadd.f32 %v1026, %v1077
        %v1079 = vpop.f32.mrb[0].mxu0
        %v1080 = vpop.f32.mrb[0].mxu0
        %v1081 = vpop.f32.mrb[0].mxu0
        %1082 = vdwg.mxu0
        %v1083 = vmul.f32 %v1078, 0.5
        %v1084 = vmul.f32 %v1078, 0.044715
        %v1085 = vmul.f32 %v1084, %v1078
        %v1086 = vmul.f32 %v1085, %v1078
        %v1087 = vadd.f32 %v1078, %v1086
        %v1088 = vmul.f32 %v1087, 0.7978846
        %v1089 = vtanh.pop %v1088
        %v1090 = vadd.f32 %v1089, 1.0
        %v1091 = vmul.f32 %v1083, %v1090
        %v1092 = vpack.c.bf16 %v1091, %v1091
        %v1093 = vld [vmem:[%s13] sm:$0xf]
        %v1094 = vld [vmem:[%s13 + $0x4] sm:$0xf]
        %v1095 = vld [vmem:[%s13 + $0x8] sm:$0xf]
        %v1096 = vld [vmem:[%s13 + $0xc] sm:$0xf]
        %v1097 = vld [vmem:[%s13 + $0x10] sm:$0xf]
        %v1098 = vld [vmem:[%s13 + $0x14] sm:$0xf]
        %v1099 = vld [vmem:[%s13 + $0x18] sm:$0xf]
        %v1100 = vld [vmem:[%s13 + $0x1c] sm:$0xf]
        %v1101 = vld [vmem:[%s13 + $0x20] sm:$0xf]
        %v1102 = vld [vmem:[%s13 + $0x24] sm:$0xf]
        %v1103 = vld [vmem:[%s13 + $0x28] sm:$0xf]
        %v1104 = vld [vmem:[%s13 + $0x2c] sm:$0xf]
        %v1105 = vld [vmem:[%s13 + $0x30] sm:$0xf]
        %v1106 = vld [vmem:[%s13 + $0x34] sm:$0xf]
        %v1107 = vld [vmem:[%s13 + $0x38] sm:$0xf]
        %v1108 = vld [vmem:[%s13 + $0x3c] sm:$0xf]
        %v1109 = vld [vmem:[%s14] sm:$0x1]
        %v1111 = vlaneseq
        %v1112 = vshrl.u32 %v1111, 7
        %v1113 = vsub.s32 0, %v1112
        %v1114 = vrot.slane %v1109, %v1113
        %v1132 = vunpack.c.l.b16 %v1093
        %v1133 = vunpack.c.l.b16 %v1094
        %v1134 = vunpack.c.l.b16 %v1095
        %v1135 = vunpack.c.l.b16 %v1096
        %v1136 = vunpack.c.l.b16 %v1097
        %v1137 = vunpack.c.l.b16 %v1098
        %v1138 = vunpack.c.l.b16 %v1099
        %v1139 = vunpack.c.l.b16 %v1100
        %v1140 = vunpack.c.l.b16 %v1101
        %v1141 = vunpack.c.l.b16 %v1102
        %v1142 = vunpack.c.l.b16 %v1103
        %v1143 = vunpack.c.l.b16 %v1104
        %v1144 = vunpack.c.l.b16 %v1105
        %v1145 = vunpack.c.l.b16 %v1106
        %v1146 = vunpack.c.l.b16 %v1107
        %v1147 = vunpack.c.l.b16 %v1108
        %v1148 = vpack.c.b16 %v1133, %v1132
        %v1149 = vpack.c.b16 %v1135, %v1134
        %v1150 = vpack.c.b16 %v1137, %v1136
        %v1151 = vpack.c.b16 %v1139, %v1138
        %v1152 = vpack.c.b16 %v1141, %v1140
        %v1153 = vpack.c.b16 %v1143, %v1142
        %v1154 = vpack.c.b16 %v1145, %v1144
        %v1155 = vpack.c.b16 %v1147, %v1146
        %1164 = vmatprep.subr.bf16.mxu0 0
        %1165 = vmatpush1.bf16.msra.mxu0 %v1148
        %1166 = vmatprep.subr.bf16.mxu0 0
        %1167 = vmatpush1.bf16.msra.mxu0 %v1149
        %1168 = vmatprep.subr.bf16.mxu0 0
        %1169 = vmatpush1.bf16.msra.mxu0 %v1150
        %1170 = vmatprep.subr.bf16.mxu0 0
        %1171 = vmatpush1.bf16.msra.mxu0 %v1151
        %1172 = vmatprep.subr.bf16.mxu0 0
        %1173 = vmatpush1.bf16.msra.mxu0 %v1152
        %1174 = vmatprep.subr.bf16.mxu0 0
        %1175 = vmatpush1.bf16.msra.mxu0 %v1153
        %1176 = vmatprep.subr.bf16.mxu0 0
        %1177 = vmatpush1.bf16.msra.mxu0 %v1154
        %1178 = vmatprep.subr.bf16.mxu0 0
        %1179 = vmatpush1.bf16.msra.mxu0 %v1155
        %1180 = vmatprep.subr.bf16.mxu0 0
        %1181 = vmatpush1.bf16.msra.mxu0 0
        %1182 = vmatprep.subr.bf16.mxu0 0
        %1183 = vmatpush1.bf16.msra.mxu0 0
        %1184 = vmatprep.subr.bf16.mxu0 0
        %1185 = vmatpush1.bf16.msra.mxu0 0
        %1186 = vmatprep.subr.bf16.mxu0 0
        %1187 = vmatpush1.bf16.msra.mxu0 0
        %1188 = vmatprep.subr.bf16.mxu0 0
        %1189 = vmatpush1.bf16.msra.mxu0 0
        %1190 = vmatprep.subr.bf16.mxu0 0
        %1191 = vmatpush1.bf16.msra.mxu0 0
        %1192 = vmatprep.subr.bf16.mxu0 0
        %1193 = vmatpush1.bf16.msra.mxu0 0
        %1194 = vmatprep.subr.bf16.mxu0 0
        %1195 = vmatpush1.bf16.msra.mxu0 0
        %1196 = vmatprep.mubr.bf16.mxu0 0
        %1197 = vmatmul.mubr.bf16.gmra.mrb[0].mxu0 %v1092
        %v1198 = vpop.f32.mrb[0].mxu0
        %v1199 = vadd.f32 %v1114, %v1198
        %v1200 = vpop.f32.mrb[0].mxu0
        %v1201 = vpop.f32.mrb[0].mxu0
        %v1202 = vpop.f32.mrb[0].mxu0
        %1203 = vdwg.mxu0
        %v1204 = vadd.f32 %v1199, %v1015
        %v1205 = vld [vmem:[%s15] sm:$0x1]
        %v1206 = vld [vmem:[%s16] sm:$0x1]
        %v1207 = vsel %vm765, %v1204, 0.0
        %1208 = vadd.xlane.f32.xlu0 %v1207
        %v1209 = vpop.xlane.xlu0 %1208
        %v1210 = vmul.f32 %v1209, %v991
        %v1211 = vsub.f32 %v1204, %v1210
        %v1212 = vmul.f32 %v1211, %v1211
        %v1213 = vsel %vm765, %v1212, 0.0
        %1214 = vadd.xlane.f32.xlu0 %v1213
        %v1215 = vpop.xlane.xlu0 %1214
        %v1216 = vmul.f32 %v1215, %v991
        %v1217 = vadd.f32 %v1216, 1e-12
        %v1218 = vrsqrt.pop %v1217
        %v1219 = vmul.f32 %v1211, %v1218
        %v1221 = vlaneseq
        %v1222 = vshrl.u32 %v1221, 7
        %v1223 = vsub.s32 0, %v1222
        %v1224 = vrot.slane %v1205, %v1223
        %v1226 = vmul.f32 %v1219, %v1224
        %v1228 = vlaneseq
        %v1229 = vshrl.u32 %v1228, 7
        %v1230 = vsub.s32 0, %v1229
        %v1231 = vrot.slane %v1206, %v1230
        %v1233 = vadd.f32 %v1226, %v1231
        %1234 = vst.msk [vmem:[%s591] sm:$0xff] %vm765, %v1233
        %s1235 = sand.u32 %s417, 1
        %s1236 = scalar_lea.sflag [#allocation6], %s1235
        %s1237 = sand.u32 %s417, 1
        %s1238 = smul.addr %s1237, 8
        %s1239 = scalar_lea.vmem [#allocation10], %s1238
        // Predicated region
        $region105: #{tpu_custom_call.1} parent=87 // pred_check
          %p1240 = pneg %p427
        $region106: #{tpu_custom_call.1} parent=87 // pred_check_branch
          %1242 = sbr.rel (%p1240) target = $region108
        $region107: #{tpu_custom_call.1} parent=87 // pred_region
          %s1244 = ssub.s32 128, 128
          %1245 = vsyncadd %s1236, %s1244
          %s1246 = sadd.s32 %s38, %s37
          %s1247 = smul.addr %s1246, 128
          %s1248 = scalar_lea.hbm %s17, %s1247
          %s1250 = sshll.u32 %s1239, 4
          %s1251 = int_to_ptr.vmem [resolvable:$true] %s1250
          %1253 = dma.vmem_to_hbm [thread:$0]  %s1251, 128, %s1248, %s1236
        $region108: #{tpu_custom_call.1} parent=87 // pred_fallthru
          _
      $region88: #{tpu_custom_call.1} parent=5 // pred_fallthru
        _
      %p1254 = scmp.le.s32.totalorder 2, %s28
      // Predicated region
      $region109: #{tpu_custom_call.1} parent=5 // pred_check
        %p1255 = pneg %p1254
      $region110: #{tpu_custom_call.1} parent=5 // pred_check_branch
        %1257 = sbr.rel (%p1255) target = $region112
      $region111: #{tpu_custom_call.1} parent=5 // pred_region
        %s1258 = ssub.s32 %s28, 2
        // Predicated region
        $region113: #{tpu_custom_call.1} parent=111 // pred_check
          %p1259 = pneg %p433
        $region114: #{tpu_custom_call.1} parent=111 // pred_check_branch
          %1261 = sbr.rel (%p1259) target = $region116
        $region115: #{tpu_custom_call.1} parent=111 // pred_region
          %s1262 = sand.u32 %s418, 1
          %s1263 = scalar_lea.sflag [#allocation6], %s1262
          %s1264 = sand.u32 %s418, 1
          %s1265 = smul.addr %s1264, 8
          %s1266 = scalar_lea.vmem [#allocation10], %s1265
          %1267 = dma.done %s1263, 128
        $region116: #{tpu_custom_call.1} parent=111 // pred_fallthru
          _
      $region112: #{tpu_custom_call.1} parent=5 // pred_fallthru
        _
    $region6: #{tpu_custom_call.1} parent=1 // loop_footer
      %s32 = sadd.s32 1, %s28
    $region7: #{tpu_custom_call.1} parent=1 // loop_footer_branch
      %27 = sbr.rel target = $region3
    $region8: #{tpu_custom_call.1} parent=1 // loop_exit
      _
    %1268 = vsyncpa [#allocation5], 1
    %s1269 = scalar_lea.sflag [#allocation5], 1
    %1270 = vsyncpa %s1269, 1
    %1271 = vsyncpa [#allocation8], 1
    %1272 = vsyncpa [#allocation6], 1
    %s1273 = scalar_lea.sflag [#allocation6], 1
    %1274 = vsyncpa %s1273, 1

// kernel: tpu_custom_call.1
$region0: #{tpu_custom_call.1}
  #allocation0 [shape = 'u32[]', space=smem, size = 0x4, offset = 0x4, fixed_abs, tag = 'smem constant byte address 0x4 - core index']
  #allocation1 [shape = 'u32[144,128]{1,0:T(1,128)}', space=vmem, size = 0x12000, scoped, tag = 'internal scratch']
  #allocation2 [shape = 'bf16[8,32]{1,0:T(8,128)(2,1)}', space=vmem, size = 0x800, scoped, tag = 'scratch operand']
  #allocation3 [shape = 'bf16[8,32]{1,0:T(8,128)(2,1)}', space=vmem, size = 0x800, scoped, tag = 'scratch operand']
  %s0 = inlined_call_operand.vmem [shape: f32[2,8,32], index: 0, kind: input, shape index: {}]
  %s1 = inlined_call_operand.vmem [shape: bf16[32,32], index: 1, kind: input, shape index: {}]
  %s2 = inlined_call_operand.vmem [shape: f32[1,32], index: 2, kind: input, shape index: {}]
  %s3 = inlined_call_operand.vmem [shape: bf16[32,32], index: 3, kind: input, shape index: {}]
  %s4 = inlined_call_operand.vmem [shape: f32[1,32], index: 4, kind: input, shape index: {}]
  %s5 = inlined_call_operand.vmem [shape: bf16[32,32], index: 5, kind: input, shape index: {}]
  %s6 = inlined_call_operand.hbm [shape: f32[1,32], index: 6, kind: input, shape index: {}]
  %s7 = inlined_call_operand.vmem [shape: bf16[32,32], index: 7, kind: input, shape index: {}]
  %s8 = inlined_call_operand.hbm [shape: f32[1,32], index: 8, kind: input, shape index: {}]
  %s9 = inlined_call_operand.hbm [shape: f32[1,32], index: 9, kind: input, shape index: {}]
  %s10 = inlined_call_operand.vmem [shape: f32[1,32], index: 10, kind: input, shape index: {}]
  %s11 = inlined_call_operand.vmem [shape: bf16[32,128], index: 11, kind: input, shape index: {}]
  %s12 = inlined_call_operand.vmem [shape: f32[1,128], index: 12, kind: input, shape index: {}]
  %s13 = inlined_call_operand.vmem [shape: bf16[128,32], index: 13, kind: input, shape index: {}]
  %s14 = inlined_call_operand.vmem [shape: f32[1,32], index: 14, kind: input, shape index: {}]
  %s15 = inlined_call_operand.vmem [shape: f32[1,32], index: 15, kind: input, shape index: {}]
  %s16 = inlined_call_operand.vmem [shape: f32[1,32], index: 16, kind: input, shape index: {}]
  %s17 = inlined_call_operand.hbm [shape: f32[2,8,32], index: 17, kind: output, shape index: {}]
  %s18 = sld [smem:[#allocation0]]
  $region117: #{tpu_custom_call.1} parent=0
    _
  %s20 = ssub.s32 1, %s18
  %s21 = scalar_select 0, %s20, %s18
  $region1: #{tpu_custom_call.1} parent=0
    #allocation4 [shape = 'u8[512]{0}', space=vmem, size = 0x400, scoped, tag = 'input window, operand 6, single buffered']
    #allocation5 [shape = 's32[2]{0}', space=sflag, size = 0x8, scoped, tag = 'scoped memory for tpu_custom_call.1']
    #allocation6 [shape = 's32[2]{0}', space=sflag, size = 0x8, scoped, tag = 'scoped memory for tpu_custom_call.1']
    #allocation7 [shape = 'u8[512]{0}', space=vmem, size = 0x400, scoped, tag = 'input window, operand 8, single buffered']
    #allocation8 [shape = 's32[1]{0}', space=sflag, size = 0x4, scoped, tag = 'scoped memory for tpu_custom_call.1']
    #allocation9 [shape = 'u8[512]{0}', space=vmem, size = 0x400, scoped, tag = 'input window, operand 9, single buffered']
    #allocation10 [shape = 'u8[8192]{0}', space=vmem, size = 0x2000, scoped, tag = 'output window, operand 0']
    %22 = vsyncpa [#allocation5], 0
    %23 = vsyncpa [#allocation8], 0
    %24 = vsyncpa [#allocation6], 0
    %s25 = scalar_lea.sflag [#allocation6], 1
    %26 = vsyncpa %s25, 0
    loop: start=0, step=1, limit=4
    $region2: #{tpu_custom_call.1} parent=1 // loop_pre_header
      _
    $region3: #{tpu_custom_call.1} parent=1 // loop_header
      %s28 = sphi 0, %s32
      %p29 = scmp.ge.s32.totalorder %s28, 4
      %s35 = sphi 0, %s47
      %s36 = sphi 0, %s43
      %s37 = sphi 0, %s35
      %s38 = sphi 0, %s36
      %s39 = sphi 0, %s37
      %s40 = sphi 0, %s38
      %s50 = sphi 0, %s52
      %s53 = sphi 0, %s50
      %s54 = sphi 0, %s53
      %s70 = sphi 0, %s54
      %s74 = sphi 0, %s74
      %s76 = sphi 0, %s74
      %s77 = sphi 0, %s76
      %s91 = sphi 0, %s77
      %s95 = sphi 0, %s95
      %s97 = sphi 0, %s95
      %s98 = sphi 0, %s97
      %s112 = sphi 0, %s98
      %s116 = sphi 0, %s116
      %s118 = sphi 0, %s116
      %s119 = sphi 0, %s118
      %s133 = sphi 0, %s119
      %s137 = sphi 0, %s137
      %s139 = sphi 0, %s137
      %s140 = sphi 0, %s139
      %s154 = sphi 0, %s140
      %s158 = sphi 0, %s158
      %s160 = sphi 0, %s158
      %s161 = sphi 0, %s160
      %s175 = sphi 0, %s161
      %s179 = sphi 0, %s179
      %s181 = sphi 0, %s179
      %s182 = sphi 0, %s181
      %s196 = sphi 0, %s182
      %s200 = sphi 0, %s200
      %s202 = sphi 0, %s200
      %s203 = sphi 0, %s202
      %s217 = sphi 0, %s203
      %s221 = sphi 0, %s221
      %s223 = sphi 0, %s221
      %s224 = sphi 0, %s223
      %s238 = sphi 0, %s224
      %s242 = sphi 0, %s242
      %s244 = sphi 0, %s242
      %s245 = sphi 0, %s244
      %s259 = sphi 0, %s245
      %s263 = sphi 0, %s263
      %s265 = sphi 0, %s263
      %s266 = sphi 0, %s265
      %s280 = sphi 0, %s266
      %s284 = sphi 0, %s284
      %s286 = sphi 0, %s284
      %s287 = sphi 0, %s286
      %s301 = sphi 0, %s287
      %s305 = sphi 0, %s305
      %s307 = sphi 0, %s305
      %s308 = sphi 0, %s307
      %s322 = sphi 0, %s308
      %s326 = sphi 0, %s326
      %s328 = sphi 0, %s326
      %s329 = sphi 0, %s328
      %s343 = sphi 0, %s329
      %s347 = sphi 0, %s347
      %s349 = sphi 0, %s347
      %s350 = sphi 0, %s349
      %s364 = sphi 0, %s350
      %s368 = sphi 0, %s368
      %s370 = sphi 0, %s368
      %s371 = sphi 0, %s370
      %s385 = sphi 0, %s371
      %s389 = sphi 0, %s389
      %s391 = sphi 0, %s389
      %s392 = sphi 0, %s391
      %s406 = sphi 0, %s392
      %s414 = sphi 0, %s416
      %s417 = sphi 0, %s414
      %s418 = sphi 0, %s417
      %s434 = sphi 0, %s418
    $region4: #{tpu_custom_call.1} parent=1 // loop_header_branch
      %31 = sbr.rel (%p29) target = $region8
    $region5: #{tpu_custom_call.1} parent=1 // loop_body
      %s33 = ssub.s32 %s28, 1
      %s34 = ssub.s32 %s28, 2
      %s41 = sadd.s32 1, %s36
      %p42 = scmp.ge.s32.totalorder %s41, 1
      %s43 = scalar_select %p42, 0, %s41
      %s44 = sadd.s32 1, %s35
      %s45 = scalar_select %p42, %s44, %s35
      %p46 = scmp.ge.s32.totalorder %s45, 2
      %s47 = scalar_select %p46, 0, %s45
      %s48 = ssub.s32 %s35, %s47
      %p49 = scmp.eq.s32.totalorder %s48, 0
      %s51 = sadd.s32 %s50, 1
      %s52 = scalar_select %p49, %s50, %s51
      %p55 = pneg %p49
      %p56 = scmp.eq.s32.totalorder %s28, 1
      %p57 = por %p55, %p56
      %p58 = scmp.ne.s32.totalorder %s50, %s53
      %p59 = scmp.eq.s32.totalorder %s28, 0
      %p60 = por %p58, %p59
      %p61 = scmp.ne.s32.totalorder %s50, %s53
      %p62 = scmp.eq.s32.totalorder %s33, 1
      %p63 = por %p61, %p62
      %p64 = scmp.ne.s32.totalorder %s53, %s54
      %p65 = scmp.eq.s32.totalorder %s33, 0
      %p66 = por %p64, %p65
      %p67 = scmp.ne.s32.totalorder %s53, %s54
      %p68 = scmp.eq.s32.totalorder %s34, 1
      %p69 = por %p67, %p68
      %p71 = scmp.ne.s32.totalorder %s54, %s70
      %p72 = scmp.eq.s32.totalorder %s34, 0
      %p73 = por %p71, %p72
      %s75 = sadd.s32 %s74, 1
      %p78 = scmp.eq.s32.totalorder %s28, 1
      %p79 = scmp.ne.s32.totalorder %s74, %s76
      %p80 = scmp.eq.s32.totalorder %s28, 0
      %p81 = por %p79, %p80
      %p82 = scmp.ne.s32.totalorder %s74, %s76
      %p83 = scmp.eq.s32.totalorder %s33, 1
      %p84 = por %p82, %p83
      %p85 = scmp.ne.s32.totalorder %s76, %s77
      %p86 = scmp.eq.s32.totalorder %s33, 0
      %p87 = por %p85, %p86
      %p88 = scmp.ne.s32.totalorder %s76, %s77
      %p89 = scmp.eq.s32.totalorder %s34, 1
      %p90 = por %p88, %p89
      %p92 = scmp.ne.s32.totalorder %s77, %s91
      %p93 = scmp.eq.s32.totalorder %s34, 0
      %p94 = por %p92, %p93
      %s96 = sadd.s32 %s95, 1
      %p99 = scmp.eq.s32.totalorder %s28, 1
      %p100 = scmp.ne.s32.totalorder %s95, %s97
      %p101 = scmp.eq.s32.totalorder %s28, 0
      %p102 = por %p100, %p101
      %p103 = scmp.ne.s32.totalorder %s95, %s97
      %p104 = scmp.eq.s32.totalorder %s33, 1
      %p105 = por %p103, %p104
      %p106 = scmp.ne.s32.totalorder %s97, %s98
      %p107 = scmp.eq.s32.totalorder %s33, 0
      %p108 = por %p106, %p107
      %p109 = scmp.ne.s32.totalorder %s97, %s98
      %p110 = scmp.eq.s32.totalorder %s34, 1
      %p111 = por %p109, %p110
      %p113 = scmp.ne.s32.totalorder %s98, %s112
      %p114 = scmp.eq.s32.totalorder %s34, 0
      %p115 = por %p113, %p114
      %s117 = sadd.s32 %s116, 1
      %p120 = scmp.eq.s32.totalorder %s28, 1
      %p121 = scmp.ne.s32.totalorder %s116, %s118
      %p122 = scmp.eq.s32.totalorder %s28, 0
      %p123 = por %p121, %p122
      %p124 = scmp.ne.s32.totalorder %s116, %s118
      %p125 = scmp.eq.s32.totalorder %s33, 1
      %p126 = por %p124, %p125
      %p127 = scmp.ne.s32.totalorder %s118, %s119
      %p128 = scmp.eq.s32.totalorder %s33, 0
      %p129 = por %p127, %p128
      %p130 = scmp.ne.s32.totalorder %s118, %s119
      %p131 = scmp.eq.s32.totalorder %s34, 1
      %p132 = por %p130, %p131
      %p134 = scmp.ne.s32.totalorder %s119, %s133
      %p135 = scmp.eq.s32.totalorder %s34, 0
      %p136 = por %p134, %p135
      %s138 = sadd.s32 %s137, 1
      %p141 = scmp.eq.s32.totalorder %s28, 1
      %p142 = scmp.ne.s32.totalorder %s137, %s139
      %p143 = scmp.eq.s32.totalorder %s28, 0
      %p144 = por %p142, %p143
      %p145 = scmp.ne.s32.totalorder %s137, %s139
      %p146 = scmp.eq.s32.totalorder %s33, 1
      %p147 = por %p145, %p146
      %p148 = scmp.ne.s32.totalorder %s139, %s140
      %p149 = scmp.eq.s32.totalorder %s33, 0
      %p150 = por %p148, %p149
      %p151 = scmp.ne.s32.totalorder %s139, %s140
      %p152 = scmp.eq.s32.totalorder %s34, 1
      %p153 = por %p151, %p152
      %p155 = scmp.ne.s32.totalorder %s140, %s154
      %p156 = scmp.eq.s32.totalorder %s34, 0
      %p157 = por %p155, %p156
      %s159 = sadd.s32 %s158, 1
      %p162 = scmp.eq.s32.totalorder %s28, 1
      %p163 = scmp.ne.s32.totalorder %s158, %s160
      %p164 = scmp.eq.s32.totalorder %s28, 0
      %p165 = por %p163, %p164
      %p166 = scmp.ne.s32.totalorder %s158, %s160
      %p167 = scmp.eq.s32.totalorder %s33, 1
      %p168 = por %p166, %p167
      %p169 = scmp.ne.s32.totalorder %s160, %s161
      %p170 = scmp.eq.s32.totalorder %s33, 0
      %p171 = por %p169, %p170
      %p172 = scmp.ne.s32.totalorder %s160, %s161
      %p173 = scmp.eq.s32.totalorder %s34, 1
      %p174 = por %p172, %p173
      %p176 = scmp.ne.s32.totalorder %s161, %s175
      %p177 = scmp.eq.s32.totalorder %s34, 0
      %p178 = por %p176, %p177
      %s180 = sadd.s32 %s179, 1
      %p183 = scmp.eq.s32.totalorder %s28, 1
      %p184 = scmp.ne.s32.totalorder %s179, %s181
      %p185 = scmp.eq.s32.totalorder %s28, 0
      %p186 = por %p184, %p185
      %p187 = scmp.ne.s32.totalorder %s179, %s181
      %p188 = scmp.eq.s32.totalorder %s33, 1
      %p189 = por %p187, %p188
      %p190 = scmp.ne.s32.totalorder %s181, %s182
      %p191 = scmp.eq.s32.totalorder %s33, 0
      %p192 = por %p190, %p191
      %p193 = scmp.ne.s32.totalorder %s181, %s182
      %p194 = scmp.eq.s32.totalorder %s34, 1
      %p195 = por %p193, %p194
      %p197 = scmp.ne.s32.totalorder %s182, %s196
      %p198 = scmp.eq.s32.totalorder %s34, 0
      %p199 = por %p197, %p198
      %s201 = sadd.s32 %s200, 1
      %p204 = scmp.eq.s32.totalorder %s28, 1
      %p205 = scmp.ne.s32.totalorder %s200, %s202
      %p206 = scmp.eq.s32.totalorder %s28, 0
      %p207 = por %p205, %p206
      %p208 = scmp.ne.s32.totalorder %s200, %s202
      %p209 = scmp.eq.s32.totalorder %s33, 1
      %p210 = por %p208, %p209
      %p211 = scmp.ne.s32.totalorder %s202, %s203
      %p212 = scmp.eq.s32.totalorder %s33, 0
      %p213 = por %p211, %p212
      %p214 = scmp.ne.s32.totalorder %s202, %s203
      %p215 = scmp.eq.s32.totalorder %s34, 1
      %p216 = por %p214, %p215
      %p218 = scmp.ne.s32.totalorder %s203, %s217
      %p219 = scmp.eq.s32.totalorder %s34, 0
      %p220 = por %p218, %p219
      %s222 = sadd.s32 %s221, 1
      %p225 = scmp.eq.s32.totalorder %s28, 1
      %p226 = scmp.ne.s32.totalorder %s221, %s223
      %p227 = scmp.eq.s32.totalorder %s28, 0
      %p228 = por %p226, %p227
      %p229 = scmp.ne.s32.totalorder %s221, %s223
      %p230 = scmp.eq.s32.totalorder %s33, 1
      %p231 = por %p229, %p230
      %p232 = scmp.ne.s32.totalorder %s223, %s224
      %p233 = scmp.eq.s32.totalorder %s33, 0
      %p234 = por %p232, %p233
      %p235 = scmp.ne.s32.totalorder %s223, %s224
      %p236 = scmp.eq.s32.totalorder %s34, 1
      %p237 = por %p235, %p236
      %p239 = scmp.ne.s32.totalorder %s224, %s238
      %p240 = scmp.eq.s32.totalorder %s34, 0
      %p241 = por %p239, %p240
      %s243 = sadd.s32 %s242, 1
      %p246 = scmp.eq.s32.totalorder %s28, 1
      %p247 = scmp.ne.s32.totalorder %s242, %s244
      %p248 = scmp.eq.s32.totalorder %s28, 0
      %p249 = por %p247, %p248
      %p250 = scmp.ne.s32.totalorder %s242, %s244
      %p251 = scmp.eq.s32.totalorder %s33, 1
      %p252 = por %p250, %p251
      %p253 = scmp.ne.s32.totalorder %s244, %s245
      %p254 = scmp.eq.s32.totalorder %s33, 0
      %p255 = por %p253, %p254
      %p256 = scmp.ne.s32.totalorder %s244, %s245
      %p257 = scmp.eq.s32.totalorder %s34, 1
      %p258 = por %p256, %p257
      %p260 = scmp.ne.s32.totalorder %s245, %s259
      %p261 = scmp.eq.s32.totalorder %s34, 0
      %p262 = por %p260, %p261
      %s264 = sadd.s32 %s263, 1
      %p267 = scmp.eq.s32.totalorder %s28, 1
      %p268 = scmp.ne.s32.totalorder %s263, %s265
      %p269 = scmp.eq.s32.totalorder %s28, 0
      %p270 = por %p268, %p269
      %p271 = scmp.ne.s32.totalorder %s263, %s265
      %p272 = scmp.eq.s32.totalorder %s33, 1
      %p273 = por %p271, %p272
      %p274 = scmp.ne.s32.totalorder %s265, %s266
      %p275 = scmp.eq.s32.totalorder %s33, 0
      %p276 = por %p274, %p275
      %p277 = scmp.ne.s32.totalorder %s265, %s266
      %p278 = scmp.eq.s32.totalorder %s34, 1
      %p279 = por %p277, %p278
      %p281 = scmp.ne.s32.totalorder %s266, %s280
      %p282 = scmp.eq.s32.totalorder %s34, 0
      %p283 = por %p281, %p282
      %s285 = sadd.s32 %s284, 1
      %p288 = scmp.eq.s32.totalorder %s28, 1
      %p289 = scmp.ne.s32.totalorder %s284, %s286
      %p290 = scmp.eq.s32.totalorder %s28, 0
      %p291 = por %p289, %p290
      %p292 = scmp.ne.s32.totalorder %s284, %s286
      %p293 = scmp.eq.s32.totalorder %s33, 1
      %p294 = por %p292, %p293
      %p295 = scmp.ne.s32.totalorder %s286, %s287
      %p296 = scmp.eq.s32.totalorder %s33, 0
      %p297 = por %p295, %p296
      %p298 = scmp.ne.s32.totalorder %s286, %s287
      %p299 = scmp.eq.s32.totalorder %s34, 1
      %p300 = por %p298, %p299
      %p302 = scmp.ne.s32.totalorder %s287, %s301
      %p303 = scmp.eq.s32.totalorder %s34, 0
      %p304 = por %p302, %p303
      %s306 = sadd.s32 %s305, 1
      %p309 = scmp.eq.s32.totalorder %s28, 1
      %p310 = scmp.ne.s32.totalorder %s305, %s307
      %p311 = scmp.eq.s32.totalorder %s28, 0
      %p312 = por %p310, %p311
      %p313 = scmp.ne.s32.totalorder %s305, %s307
      %p314 = scmp.eq.s32.totalorder %s33, 1
      %p315 = por %p313, %p314
      %p316 = scmp.ne.s32.totalorder %s307, %s308
      %p317 = scmp.eq.s32.totalorder %s33, 0
      %p318 = por %p316, %p317
      %p319 = scmp.ne.s32.totalorder %s307, %s308
      %p320 = scmp.eq.s32.totalorder %s34, 1
      %p321 = por %p319, %p320
      %p323 = scmp.ne.s32.totalorder %s308, %s322
      %p324 = scmp.eq.s32.totalorder %s34, 0
      %p325 = por %p323, %p324
      %s327 = sadd.s32 %s326, 1
      %p330 = scmp.eq.s32.totalorder %s28, 1
      %p331 = scmp.ne.s32.totalorder %s326, %s328
      %p332 = scmp.eq.s32.totalorder %s28, 0
      %p333 = por %p331, %p332
      %p334 = scmp.ne.s32.totalorder %s326, %s328
      %p335 = scmp.eq.s32.totalorder %s33, 1
      %p336 = por %p334, %p335
      %p337 = scmp.ne.s32.totalorder %s328, %s329
      %p338 = scmp.eq.s32.totalorder %s33, 0
      %p339 = por %p337, %p338
      %p340 = scmp.ne.s32.totalorder %s328, %s329
      %p341 = scmp.eq.s32.totalorder %s34, 1
      %p342 = por %p340, %p341
      %p344 = scmp.ne.s32.totalorder %s329, %s343
      %p345 = scmp.eq.s32.totalorder %s34, 0
      %p346 = por %p344, %p345
      %s348 = sadd.s32 %s347, 1
      %p351 = scmp.eq.s32.totalorder %s28, 1
      %p352 = scmp.ne.s32.totalorder %s347, %s349
      %p353 = scmp.eq.s32.totalorder %s28, 0
      %p354 = por %p352, %p353
      %p355 = scmp.ne.s32.totalorder %s347, %s349
      %p356 = scmp.eq.s32.totalorder %s33, 1
      %p357 = por %p355, %p356
      %p358 = scmp.ne.s32.totalorder %s349, %s350
      %p359 = scmp.eq.s32.totalorder %s33, 0
      %p360 = por %p358, %p359
      %p361 = scmp.ne.s32.totalorder %s349, %s350
      %p362 = scmp.eq.s32.totalorder %s34, 1
      %p363 = por %p361, %p362
      %p365 = scmp.ne.s32.totalorder %s350, %s364
      %p366 = scmp.eq.s32.totalorder %s34, 0
      %p367 = por %p365, %p366
      %s369 = sadd.s32 %s368, 1
      %p372 = scmp.eq.s32.totalorder %s28, 1
      %p373 = scmp.ne.s32.totalorder %s368, %s370
      %p374 = scmp.eq.s32.totalorder %s28, 0
      %p375 = por %p373, %p374
      %p376 = scmp.ne.s32.totalorder %s368, %s370
      %p377 = scmp.eq.s32.totalorder %s33, 1
      %p378 = por %p376, %p377
      %p379 = scmp.ne.s32.totalorder %s370, %s371
      %p380 = scmp.eq.s32.totalorder %s33, 0
      %p381 = por %p379, %p380
      %p382 = scmp.ne.s32.totalorder %s370, %s371
      %p383 = scmp.eq.s32.totalorder %s34, 1
      %p384 = por %p382, %p383
      %p386 = scmp.ne.s32.totalorder %s371, %s385
      %p387 = scmp.eq.s32.totalorder %s34, 0
      %p388 = por %p386, %p387
      %s390 = sadd.s32 %s389, 1
      %p393 = scmp.eq.s32.totalorder %s28, 1
      %p394 = scmp.ne.s32.totalorder %s389, %s391
      %p395 = scmp.eq.s32.totalorder %s28, 0
      %p396 = por %p394, %p395
      %p397 = scmp.ne.s32.totalorder %s389, %s391
      %p398 = scmp.eq.s32.totalorder %s33, 1
      %p399 = por %p397, %p398
      %p400 = scmp.ne.s32.totalorder %s391, %s392
      %p401 = scmp.eq.s32.totalorder %s33, 0
      %p402 = por %p400, %p401
      %p403 = scmp.ne.s32.totalorder %s391, %s392
      %p404 = scmp.eq.s32.totalorder %s34, 1
      %p405 = por %p403, %p404
      %p407 = scmp.ne.s32.totalorder %s392, %s406
      %p408 = scmp.eq.s32.totalorder %s34, 0
      %p409 = por %p407, %p408
      %s410 = ssub.s32 %s35, %s47
      %s411 = ssub.s32 %s36, %s43
      %s412 = sor.u32 %s410, %s411
      %p413 = scmp.eq.s32.totalorder %s412, 0
      %s415 = sadd.s32 %s414, 1
      %s416 = scalar_select %p413, %s414, %s415
      %p419 = pneg %p413
      %p420 = scmp.eq.s32.totalorder %s28, 1
      %p421 = por %p419, %p420
      %p422 = scmp.ne.s32.totalorder %s414, %s417
      %p423 = scmp.eq.s32.totalorder %s28, 0
      %p424 = por %p422, %p423
      %p425 = scmp.ne.s32.totalorder %s414, %s417
      %p426 = scmp.eq.s32.totalorder %s33, 1
      %p427 = por %p425, %p426
      %p428 = scmp.ne.s32.totalorder %s417, %s418
      %p429 = scmp.eq.s32.totalorder %s33, 0
      %p430 = por %p428, %p429
      %p431 = scmp.ne.s32.totalorder %s417, %s418
      %p432 = scmp.eq.s32.totalorder %s34, 1
      %p433 = por %p431, %p432
      %p435 = scmp.ne.s32.totalorder %s418, %s434
      %p436 = scmp.eq.s32.totalorder %s34, 0
      %p437 = por %p435, %p436
      %p438 = scmp.le.s32.totalorder 1, %s28
      %p439 = scmp.lt.s32.totalorder %s28, 3
      %p440 = pnand %p438, %p439
      %p441 = pneg %p440
      // Predicated region
      $region9: #{tpu_custom_call.1} parent=5 // pred_check
        _
      $region10: #{tpu_custom_call.1} parent=5 // pred_check_branch
        %443 = sbr.rel (%p440) target = $region12
      $region11: #{tpu_custom_call.1} parent=5 // pred_region
        %s444 = ssub.s32 %s28, 1
        // Predicated region
        $region13: #{tpu_custom_call.1} parent=11 // pred_check
          %p445 = pneg %p87
        $region14: #{tpu_custom_call.1} parent=11 // pred_check_branch
          %447 = sbr.rel (%p445) target = $region16
        $region15: #{tpu_custom_call.1} parent=11 // pred_region
          _
        $region16: #{tpu_custom_call.1} parent=11 // pred_fallthru
          _
        // Predicated region
        $region17: #{tpu_custom_call.1} parent=11 // pred_check
          %p448 = pneg %p108
        $region18: #{tpu_custom_call.1} parent=11 // pred_check_branch
          %450 = sbr.rel (%p448) target = $region20
        $region19: #{tpu_custom_call.1} parent=11 // pred_region
          _
        $region20: #{tpu_custom_call.1} parent=11 // pred_fallthru
          _
        // Predicated region
        $region21: #{tpu_custom_call.1} parent=11 // pred_check
          %p451 = pneg %p129
        $region22: #{tpu_custom_call.1} parent=11 // pred_check_branch
          %453 = sbr.rel (%p451) target = $region24
        $region23: #{tpu_custom_call.1} parent=11 // pred_region
          _
        $region24: #{tpu_custom_call.1} parent=11 // pred_fallthru
          _
        // Predicated region
        $region25: #{tpu_custom_call.1} parent=11 // pred_check
          %p454 = pneg %p150
        $region26: #{tpu_custom_call.1} parent=11 // pred_check_branch
          %456 = sbr.rel (%p454) target = $region28
        $region27: #{tpu_custom_call.1} parent=11 // pred_region
          _
        $region28: #{tpu_custom_call.1} parent=11 // pred_fallthru
          _
        // Predicated region
        $region29: #{tpu_custom_call.1} parent=11 // pred_check
          %p457 = pneg %p171
        $region30: #{tpu_custom_call.1} parent=11 // pred_check_branch
          %459 = sbr.rel (%p457) target = $region32
        $region31: #{tpu_custom_call.1} parent=11 // pred_region
          _
        $region32: #{tpu_custom_call.1} parent=11 // pred_fallthru
          _
        // Predicated region
        $region33: #{tpu_custom_call.1} parent=11 // pred_check
          %p460 = pneg %p192
        $region34: #{tpu_custom_call.1} parent=11 // pred_check_branch
          %462 = sbr.rel (%p460) target = $region36
        $region35: #{tpu_custom_call.1} parent=11 // pred_region
          %s464 = ssub.s32 16, 16
          %465 = vsyncadd [#allocation5], %s464
          %s467 = sshll.u32 [#allocation4], 4
          %s468 = int_to_ptr.vmem [resolvable:$true] %s467
          %470 = dma.hbm_to_vmem [thread:$0]  %s6, 16, %s468, [#allocation5]
        $region36: #{tpu_custom_call.1} parent=11 // pred_fallthru
          _
        // Predicated region
        $region37: #{tpu_custom_call.1} parent=11 // pred_check
          %p471 = pneg %p213
        $region38: #{tpu_custom_call.1} parent=11 // pred_check_branch
          %473 = sbr.rel (%p471) target = $region40
        $region39: #{tpu_custom_call.1} parent=11 // pred_region
          _
        $region40: #{tpu_custom_call.1} parent=11 // pred_fallthru
          _
        // Predicated region
        $region41: #{tpu_custom_call.1} parent=11 // pred_check
          %p474 = pneg %p234
        $region42: #{tpu_custom_call.1} parent=11 // pred_check_branch
          %476 = sbr.rel (%p474) target = $region44
        $region43: #{tpu_custom_call.1} parent=11 // pred_region
          %s478 = ssub.s32 16, 16
          %479 = vsyncadd [#allocation8], %s478
          %s481 = sshll.u32 [#allocation7], 4
          %s482 = int_to_ptr.vmem [resolvable:$true] %s481
          %484 = dma.hbm_to_vmem [thread:$0]  %s8, 16, %s482, [#allocation8]
        $region44: #{tpu_custom_call.1} parent=11 // pred_fallthru
          _
        // Predicated region
        $region45: #{tpu_custom_call.1} parent=11 // pred_check
          %p485 = pneg %p255
        $region46: #{tpu_custom_call.1} parent=11 // pred_check_branch
          %487 = sbr.rel (%p485) target = $region48
        $region47: #{tpu_custom_call.1} parent=11 // pred_region
          %s489 = ssub.s32 16, 16
          %490 = vsyncadd [#allocation8], %s489
          %s492 = sshll.u32 [#allocation9], 4
          %s493 = int_to_ptr.vmem [resolvable:$true] %s492
          %495 = dma.hbm_to_vmem [thread:$0]  %s9, 16, %s493, [#allocation8]
        $region48: #{tpu_custom_call.1} parent=11 // pred_fallthru
          _
        // Predicated region
        $region49: #{tpu_custom_call.1} parent=11 // pred_check
          %p496 = pneg %p276
        $region50: #{tpu_custom_call.1} parent=11 // pred_check_branch
          %498 = sbr.rel (%p496) target = $region52
        $region51: #{tpu_custom_call.1} parent=11 // pred_region
          _
        $region52: #{tpu_custom_call.1} parent=11 // pred_fallthru
          _
        // Predicated region
        $region53: #{tpu_custom_call.1} parent=11 // pred_check
          %p499 = pneg %p297
        $region54: #{tpu_custom_call.1} parent=11 // pred_check_branch
          %501 = sbr.rel (%p499) target = $region56
        $region55: #{tpu_custom_call.1} parent=11 // pred_region
          _
        $region56: #{tpu_custom_call.1} parent=11 // pred_fallthru
          _
        // Predicated region
        $region57: #{tpu_custom_call.1} parent=11 // pred_check
          %p502 = pneg %p318
        $region58: #{tpu_custom_call.1} parent=11 // pred_check_branch
          %504 = sbr.rel (%p502) target = $region60
        $region59: #{tpu_custom_call.1} parent=11 // pred_region
          _
        $region60: #{tpu_custom_call.1} parent=11 // pred_fallthru
          _
        // Predicated region
        $region61: #{tpu_custom_call.1} parent=11 // pred_check
          %p505 = pneg %p339
        $region62: #{tpu_custom_call.1} parent=11 // pred_check_branch
          %507 = sbr.rel (%p505) target = $region64
        $region63: #{tpu_custom_call.1} parent=11 // pred_region
          _
        $region64: #{tpu_custom_call.1} parent=11 // pred_fallthru
          _
        // Predicated region
        $region65: #{tpu_custom_call.1} parent=11 // pred_check
          %p508 = pneg %p360
        $region66: #{tpu_custom_call.1} parent=11 // pred_check_branch
          %510 = sbr.rel (%p508) target = $region68
        $region67: #{tpu_custom_call.1} parent=11 // pred_region
          _
        $region68: #{tpu_custom_call.1} parent=11 // pred_fallthru
          _
        // Predicated region
        $region69: #{tpu_custom_call.1} parent=11 // pred_check
          %p511 = pneg %p381
        $region70: #{tpu_custom_call.1} parent=11 // pred_check_branch
          %513 = sbr.rel (%p511) target = $region72
        $region71: #{tpu_custom_call.1} parent=11 // pred_region
          _
        $region72: #{tpu_custom_call.1} parent=11 // pred_fallthru
          _
        // Predicated region
        $region73: #{tpu_custom_call.1} parent=11 // pred_check
          %p514 = pneg %p402
        $region74: #{tpu_custom_call.1} parent=11 // pred_check_branch
          %516 = sbr.rel (%p514) target = $region76
        $region75: #{tpu_custom_call.1} parent=11 // pred_region
          _
        $region76: #{tpu_custom_call.1} parent=11 // pred_fallthru
          _
      $region12: #{tpu_custom_call.1} parent=5 // pred_fallthru
        _
      %p517 = scmp.lt.s32.totalorder %s28, 2
      // Predicated region
      $region77: #{tpu_custom_call.1} parent=5 // pred_check
        %p518 = pneg %p517
      $region78: #{tpu_custom_call.1} parent=5 // pred_check_branch
        %520 = sbr.rel (%p518) target = $region80
      $region79: #{tpu_custom_call.1} parent=5 // pred_region
        // Predicated region
        $region81: #{tpu_custom_call.1} parent=79 // pred_check
          %p521 = pneg %p60
        $region82: #{tpu_custom_call.1} parent=79 // pred_check_branch
          %523 = sbr.rel (%p521) target = $region84
        $region83: #{tpu_custom_call.1} parent=79 // pred_region
          %p524 = scmp.lt.s32.totalorder %s35, 1
          %s525 = scalar_select %p524, %s35, 1
          %s526 = smul.addr %s525, 8
          %s527 = scalar_lea.vmem %s0, %s526
        $region84: #{tpu_custom_call.1} parent=79 // pred_fallthru
          _
      $region80: #{tpu_custom_call.1} parent=5 // pred_fallthru
        _
      %p528 = scmp.le.s32.totalorder 1, %s28
      %p529 = scmp.lt.s32.totalorder %s28, 3
      %p530 = pnand %p528, %p529
      %p531 = pneg %p530
      // Predicated region
      $region85: #{tpu_custom_call.1} parent=5 // pred_check
        _
      $region86: #{tpu_custom_call.1} parent=5 // pred_check_branch
        %533 = sbr.rel (%p530) target = $region88
      $region87: #{tpu_custom_call.1} parent=5 // pred_region
        %s534 = ssub.s32 %s28, 1
        // Predicated region
        $region89: #{tpu_custom_call.1} parent=87 // pred_check
          %p535 = pneg %p192
        $region90: #{tpu_custom_call.1} parent=87 // pred_check_branch
          %537 = sbr.rel (%p535) target = $region92
        $region91: #{tpu_custom_call.1} parent=87 // pred_region
          %538 = dma.done [#allocation5], 16
        $region92: #{tpu_custom_call.1} parent=87 // pred_fallthru
          _
        // Predicated region
        $region93: #{tpu_custom_call.1} parent=87 // pred_check
          %p539 = pneg %p234
        $region94: #{tpu_custom_call.1} parent=87 // pred_check_branch
          %541 = sbr.rel (%p539) target = $region96
        $region95: #{tpu_custom_call.1} parent=87 // pred_region
          %542 = dma.done [#allocation8], 16
        $region96: #{tpu_custom_call.1} parent=87 // pred_fallthru
          _
        // Predicated region
        $region97: #{tpu_custom_call.1} parent=87 // pred_check
          %p543 = pneg %p255
        $region98: #{tpu_custom_call.1} parent=87 // pred_check_branch
          %545 = sbr.rel (%p543) target = $region100
        $region99: #{tpu_custom_call.1} parent=87 // pred_region
          %546 = dma.done [#allocation8], 16
        $region100: #{tpu_custom_call.1} parent=87 // pred_fallthru
          _
        %p547 = scmp.lt.s32.totalorder %s37, 1
        %s548 = scalar_select %p547, %s37, 1
        %s549 = smul.addr %s548, 8
        %s550 = scalar_lea.vmem %s0, %s549
        %p551 = pneg %p66
        %p552 = pneg %p63
        %p553 = pneg %p87
        %p554 = pneg %p84
        %p555 = pneg %p108
        %p556 = pneg %p105
        %p557 = pneg %p129
        %p558 = pneg %p126
        %p559 = pneg %p150
        %p560 = pneg %p147
        %p561 = pneg %p171
        %p562 = pneg %p168
        %p563 = pneg %p192
        %p564 = pneg %p189
        %p565 = pneg %p213
        %p566 = pneg %p210
        %p567 = pneg %p234
        %p568 = pneg %p231
        %p569 = pneg %p255
        %p570 = pneg %p252
        %p571 = pneg %p276
        %p572 = pneg %p273
        %p573 = pneg %p297
        %p574 = pneg %p294
        %p575 = pneg %p318
        %p576 = pneg %p315
        %p577 = pneg %p339
        %p578 = pneg %p336
        %p579 = pneg %p360
        %p580 = pneg %p357
        %p581 = pneg %p381
        %p582 = pneg %p378
        %p583 = pneg %p402
        %p584 = pneg %p399
        %p585 = pneg %p430
        %p586 = pneg %p427
        %s587 = sand.u32 %s417, 1
        %s588 = scalar_lea.sflag [#allocation6], %s587
        %s589 = sand.u32 %s417, 1
        %s590 = smul.addr %s589, 8
        %s591 = scalar_lea.vmem [#allocation10], %s590
        %p592 = scmp.lt.s32.totalorder %s37, 1
        %s593 = scalar_select %p592, %s37, 1
        %s594 = smul.addr %s593, 8
        %s595 = scalar_lea.vmem %s0, %s594
        %p597 = scmp.eq.s32.totalorder %s38, 0
        // Predicated region
        $region101: #{tpu_custom_call.1} parent=87 // pred_check
          %p598 = pneg %p597
        $region102: #{tpu_custom_call.1} parent=87 // pred_check_branch
          %600 = sbr.rel (%p598) target = $region104
        $region103: #{tpu_custom_call.1} parent=87 // pred_region
          %v601 = vld [vmem:[%s595] sm:$0xff]
          %v602 = vpack.c.bf16 %v601, %v601
          %v603 = vld [vmem:[%s3] sm:$0xf]
          %v604 = vld [vmem:[%s3 + $0x4] sm:$0xf]
          %v605 = vld [vmem:[%s3 + $0x8] sm:$0xf]
          %v606 = vld [vmem:[%s3 + $0xc] sm:$0xf]
          %v607 = vld [vmem:[%s4] sm:$0x1]
          %v609 = vlaneseq
          %v610 = vshrl.u32 %v609, 7
          %v611 = vsub.s32 0, %v610
          %v612 = vrot.slane %v607, %v611
          %v618 = vunpack.c.l.b16 %v603
          %v619 = vunpack.c.l.b16 %v604
          %v620 = vunpack.c.l.b16 %v605
          %v621 = vunpack.c.l.b16 %v606
          %v622 = vpack.c.b16 %v619, %v618
          %v623 = vpack.c.b16 %v621, %v620
          %vm626 = vcmask 261120
          %v628 = vsel %vm626, %v602, 0
          %630 = vmatprep.subr.bf16.mxu0 0
          %631 = vmatpush1.bf16.msra.mxu0 %v622
          %632 = vmatprep.subr.bf16.mxu0 0
          %633 = vmatpush1.bf16.msra.mxu0 %v623
          %634 = vmatprep.subr.bf16.mxu0 0
          %635 = vmatpush1.bf16.msra.mxu0 0
          %636 = vmatprep.subr.bf16.mxu0 0
          %637 = vmatpush1.bf16.msra.mxu0 0
          %638 = vmatprep.subr.bf16.mxu0 0
          %639 = vmatpush1.bf16.msra.mxu0 0
          %640 = vmatprep.subr.bf16.mxu0 0
          %641 = vmatpush1.bf16.msra.mxu0 0
          %642 = vmatprep.subr.bf16.mxu0 0
          %643 = vmatpush1.bf16.msra.mxu0 0
          %644 = vmatprep.subr.bf16.mxu0 0
          %645 = vmatpush1.bf16.msra.mxu0 0
          %646 = vmatprep.subr.bf16.mxu0 0
          %647 = vmatpush1.bf16.msra.mxu0 0
          %648 = vmatprep.subr.bf16.mxu0 0
          %649 = vmatpush1.bf16.msra.mxu0 0
          %650 = vmatprep.subr.bf16.mxu0 0
          %651 = vmatpush1.bf16.msra.mxu0 0
          %652 = vmatprep.subr.bf16.mxu0 0
          %653 = vmatpush1.bf16.msra.mxu0 0
          %654 = vmatprep.subr.bf16.mxu0 0
          %655 = vmatpush1.bf16.msra.mxu0 0
          %656 = vmatprep.subr.bf16.mxu0 0
          %657 = vmatpush1.bf16.msra.mxu0 0
          %658 = vmatprep.subr.bf16.mxu0 0
          %659 = vmatpush1.bf16.msra.mxu0 0
          %660 = vmatprep.subr.bf16.mxu0 0
          %661 = vmatpush1.bf16.msra.mxu0 0
          %662 = vmatprep.mubr.bf16.mxu0 0
          %663 = vmatmul.mubr.bf16.gmra.mrb[0].mxu0 %v628
          %v664 = vpop.f32.mrb[0].mxu0
          %v665 = vadd.f32 %v612, %v664
          %v666 = vpop.f32.mrb[0].mxu0
          %v667 = vpop.f32.mrb[0].mxu0
          %v668 = vpop.f32.mrb[0].mxu0
          %669 = vdwg.mxu0
          %v670 = vld [vmem:[%s5] sm:$0xf]
          %v671 = vld [vmem:[%s5 + $0x4] sm:$0xf]
          %v672 = vld [vmem:[%s5 + $0x8] sm:$0xf]
          %v673 = vld [vmem:[%s5 + $0xc] sm:$0xf]
          %v674 = vld [vmem:[#allocation4] sm:$0x1]
          %v676 = vlaneseq
          %v677 = vshrl.u32 %v676, 7
          %v678 = vsub.s32 0, %v677
          %v679 = vrot.slane %v674, %v678
          %v685 = vunpack.c.l.b16 %v670
          %v686 = vunpack.c.l.b16 %v671
          %v687 = vunpack.c.l.b16 %v672
          %v688 = vunpack.c.l.b16 %v673
          %v689 = vpack.c.b16 %v686, %v685
          %v690 = vpack.c.b16 %v688, %v687
          %693 = vmatprep.subr.bf16.mxu0 0
          %694 = vmatpush1.bf16.msra.mxu0 %v689
          %695 = vmatprep.subr.bf16.mxu0 0
          %696 = vmatpush1.bf16.msra.mxu0 %v690
          %697 = vmatprep.subr.bf16.mxu0 0
          %698 = vmatpush1.bf16.msra.mxu0 0
          %699 = vmatprep.subr.bf16.mxu0 0
          %700 = vmatpush1.bf16.msra.mxu0 0
          %701 = vmatprep.subr.bf16.mxu0 0
          %702 = vmatpush1.bf16.msra.mxu0 0
          %703 = vmatprep.subr.bf16.mxu0 0
          %704 = vmatpush1.bf16.msra.mxu0 0
          %705 = vmatprep.subr.bf16.mxu0 0
          %706 = vmatpush1.bf16.msra.mxu0 0
          %707 = vmatprep.subr.bf16.mxu0 0
          %708 = vmatpush1.bf16.msra.mxu0 0
          %709 = vmatprep.subr.bf16.mxu0 0
          %710 = vmatpush1.bf16.msra.mxu0 0
          %711 = vmatprep.subr.bf16.mxu0 0
          %712 = vmatpush1.bf16.msra.mxu0 0
          %713 = vmatprep.subr.bf16.mxu0 0
          %714 = vmatpush1.bf16.msra.mxu0 0
          %715 = vmatprep.subr.bf16.mxu0 0
          %716 = vmatpush1.bf16.msra.mxu0 0
          %717 = vmatprep.subr.bf16.mxu0 0
          %718 = vmatpush1.bf16.msra.mxu0 0
          %719 = vmatprep.subr.bf16.mxu0 0
          %720 = vmatpush1.bf16.msra.mxu0 0
          %721 = vmatprep.subr.bf16.mxu0 0
          %722 = vmatpush1.bf16.msra.mxu0 0
          %723 = vmatprep.subr.bf16.mxu0 0
          %724 = vmatpush1.bf16.msra.mxu0 0
          %725 = vmatprep.mubr.bf16.mxu0 0
          %726 = vmatmul.mubr.bf16.gmra.mrb[0].mxu0 %v628
          %v727 = vpop.f32.mrb[0].mxu0
          %v728 = vadd.f32 %v679, %v727
          %v729 = vpop.f32.mrb[0].mxu0
          %v730 = vpop.f32.mrb[0].mxu0
          %v731 = vpop.f32.mrb[0].mxu0
          %732 = vdwg.mxu0
          %v733 = vpack.c.bf16 %v665, %v665
          %vm734 = vcmask 257024
          %735 = vst.msk [vmem:[#allocation2] sm:$0xf] %vm734, %v733
          %v736 = vpack.c.bf16 %v728, %v728
          %737 = vst.msk [vmem:[#allocation3] sm:$0xf] %vm734, %v736
        $region104: #{tpu_custom_call.1} parent=87 // pred_fallthru
          _
        %s738 = smul.u32 %s38, 8
        %s739 = scalar_lea.vmem %s595, %s738
        %v740 = vld [vmem:[%s739] sm:$0xff]
        %v741 = vpack.c.bf16 %v740, %v740
        %v742 = vld [vmem:[%s1] sm:$0xf]
        %v743 = vld [vmem:[%s1 + $0x4] sm:$0xf]
        %v744 = vld [vmem:[%s1 + $0x8] sm:$0xf]
        %v745 = vld [vmem:[%s1 + $0xc] sm:$0xf]
        %v746 = vld [vmem:[%s2] sm:$0x1]
        %v748 = vlaneseq
        %v749 = vshrl.u32 %v748, 7
        %v750 = vsub.s32 0, %v749
        %v751 = vrot.slane %v746, %v750
        %v757 = vunpack.c.l.b16 %v742
        %v758 = vunpack.c.l.b16 %v743
        %v759 = vunpack.c.l.b16 %v744
        %v760 = vunpack.c.l.b16 %v745
        %v761 = vpack.c.b16 %v758, %v757
        %v762 = vpack.c.b16 %v760, %v759
        %vm765 = vcmask 261120
        %v767 = vsel %vm765, %v741, 0
        %769 = vmatprep.subr.bf16.mxu0 0
        %770 = vmatpush1.bf16.msra.mxu0 %v761
        %771 = vmatprep.subr.bf16.mxu0 0
        %772 = vmatpush1.bf16.msra.mxu0 %v762
        %773 = vmatprep.subr.bf16.mxu0 0
        %774 = vmatpush1.bf16.msra.mxu0 0
        %775 = vmatprep.subr.bf16.mxu0 0
        %776 = vmatpush1.bf16.msra.mxu0 0
        %777 = vmatprep.subr.bf16.mxu0 0
        %778 = vmatpush1.bf16.msra.mxu0 0
        %779 = vmatprep.subr.bf16.mxu0 0
        %780 = vmatpush1.bf16.msra.mxu0 0
        %781 = vmatprep.subr.bf16.mxu0 0
        %782 = vmatpush1.bf16.msra.mxu0 0
        %783 = vmatprep.subr.bf16.mxu0 0
        %784 = vmatpush1.bf16.msra.mxu0 0
        %785 = vmatprep.subr.bf16.mxu0 0
        %786 = vmatpush1.bf16.msra.mxu0 0
        %787 = vmatprep.subr.bf16.mxu0 0
        %788 = vmatpush1.bf16.msra.mxu0 0
        %789 = vmatprep.subr.bf16.mxu0 0
        %790 = vmatpush1.bf16.msra.mxu0 0
        %791 = vmatprep.subr.bf16.mxu0 0
        %792 = vmatpush1.bf16.msra.mxu0 0
        %793 = vmatprep.subr.bf16.mxu0 0
        %794 = vmatpush1.bf16.msra.mxu0 0
        %795 = vmatprep.subr.bf16.mxu0 0
        %796 = vmatpush1.bf16.msra.mxu0 0
        %797 = vmatprep.subr.bf16.mxu0 0
        %798 = vmatpush1.bf16.msra.mxu0 0
        %799 = vmatprep.subr.bf16.mxu0 0
        %800 = vmatpush1.bf16.msra.mxu0 0
        %801 = vmatprep.mubr.bf16.mxu0 0
        %802 = vmatmul.mubr.bf16.gmra.mrb[0].mxu0 %v767
        %v803 = vpop.f32.mrb[0].mxu0
        %v804 = vadd.f32 %v751, %v803
        %v805 = vpop.f32.mrb[0].mxu0
        %v806 = vpop.f32.mrb[0].mxu0
        %v807 = vpop.f32.mrb[0].mxu0
        %808 = vdwg.mxu0
        %v809 = vpack.c.bf16 %v804, %v804
        %v810 = vld [vmem:[#allocation2] sm:$0xf]
        %v812 = vsel %vm765, %v809, 0
        %v815 = vsel %vm765, %v810, 0
        %817 = vmatprep.subr.bf16.mxu0 0
        %818 = vmatpush1.bf16.xpose.msra.mxu0 %v815
        %819 = vmatprep.subr.bf16.mxu0 0
        %820 = vmatpush1.bf16.xpose.msra.mxu0 0
        %821 = vmatprep.subr.bf16.mxu0 0
        %822 = vmatpush1.bf16.xpose.msra.mxu0 0
        %823 = vmatprep.subr.bf16.mxu0 0
        %824 = vmatpush1.bf16.xpose.msra.mxu0 0
        %825 = vmatprep.subr.bf16.mxu0 0
        %826 = vmatpush1.bf16.xpose.msra.mxu0 0
        %827 = vmatprep.subr.bf16.mxu0 0
        %828 = vmatpush1.bf16.xpose.msra.mxu0 0
        %829 = vmatprep.subr.bf16.mxu0 0
        %830 = vmatpush1.bf16.xpose.msra.mxu0 0
        %831 = vmatprep.subr.bf16.mxu0 0
        %832 = vmatpush1.bf16.xpose.msra.mxu0 0
        %833 = vmatprep.subr.bf16.mxu0 0
        %834 = vmatpush1.bf16.xpose.msra.mxu0 0
        %835 = vmatprep.subr.bf16.mxu0 0
        %836 = vmatpush1.bf16.xpose.msra.mxu0 0
        %837 = vmatprep.subr.bf16.mxu0 0
        %838 = vmatpush1.bf16.xpose.msra.mxu0 0
        %839 = vmatprep.subr.bf16.mxu0 0
        %840 = vmatpush1.bf16.xpose.msra.mxu0 0
        %841 = vmatprep.subr.bf16.mxu0 0
        %842 = vmatpush1.bf16.xpose.msra.mxu0 0
        %843 = vmatprep.subr.bf16.mxu0 0
        %844 = vmatpush1.bf16.xpose.msra.mxu0 0
        %845 = vmatprep.subr.bf16.mxu0 0
        %846 = vmatpush1.bf16.xpose.msra.mxu0 0
        %847 = vmatprep.subr.bf16.mxu0 0
        %848 = vmatpush1.bf16.xpose.msra.mxu0 0
        %849 = vmatprep.mubr.bf16.mxu0 0
        %850 = vmatmul.mubr.bf16.gmra.mrb[0].mxu0 %v812
        %v851 = vpop.f32.mrb[0].mxu0
        %v852 = vadd.f32 0.0, %v851
        %v853 = vpop.f32.mrb[0].mxu0
        %v854 = vpop.f32.mrb[0].mxu0
        %v855 = vpop.f32.mrb[0].mxu0
        %856 = vdwg.mxu0
        %vm857 = vcmask 64512
        %v858 = vsel %vm857, %v852, -inf
        %859 = vmax.xlane.f32.xlu0 %v858
        %v860 = vpop.xlane.xlu0 %859
        %v861 = vsub.f32 %v852, %v860
        %v862 = vmul.f32 %v861, 1.442695
        %v863 = vpow.pop %v862
        %v864 = vsel %vm857, %v863, 0.0
        %865 = vadd.xlane.f32.xlu0 %v864
        %v866 = vpop.xlane.xlu0 %865
        %v867 = vrcp.pop %v866
        %v868 = vmul.f32 %v863, %v867
        %v869 = vpack.c.bf16 %v868, %v868
        %v870 = vld [vmem:[#allocation3] sm:$0xf]
        %v872 = vsel %vm857, %v869, 0
        %vm874 = vcmask 1043456
        %v876 = vsel %vm874, %v870, 0
        %878 = vmatprep.subr.bf16.mxu0 0
        %879 = vmatpush1.bf16.msra.mxu0 %v876
        %880 = vmatprep.subr.bf16.mxu0 0
        %881 = vmatpush1.bf16.msra.mxu0 0
        %882 = vmatprep.subr.bf16.mxu0 0
        %883 = vmatpush1.bf16.msra.mxu0 0
        %884 = vmatprep.subr.bf16.mxu0 0
        %885 = vmatpush1.bf16.msra.mxu0 0
        %886 = vmatprep.subr.bf16.mxu0 0
        %887 = vmatpush1.bf16.msra.mxu0 0
        %888 = vmatprep.subr.bf16.mxu0 0
        %889 = vmatpush1.bf16.msra.mxu0 0
        %890 = vmatprep.subr.bf16.mxu0 0
        %891 = vmatpush1.bf16.msra.mxu0 0
        %892 = vmatprep.subr.bf16.mxu0 0
        %893 = vmatpush1.bf16.msra.mxu0 0
        %894 = vmatprep.subr.bf16.mxu0 0
        %895 = vmatpush1.bf16.msra.mxu0 0
        %896 = vmatprep.subr.bf16.mxu0 0
        %897 = vmatpush1.bf16.msra.mxu0 0
        %898 = vmatprep.subr.bf16.mxu0 0
        %899 = vmatpush1.bf16.msra.mxu0 0
        %900 = vmatprep.subr.bf16.mxu0 0
        %901 = vmatpush1.bf16.msra.mxu0 0
        %902 = vmatprep.subr.bf16.mxu0 0
        %903 = vmatpush1.bf16.msra.mxu0 0
        %904 = vmatprep.subr.bf16.mxu0 0
        %905 = vmatpush1.bf16.msra.mxu0 0
        %906 = vmatprep.subr.bf16.mxu0 0
        %907 = vmatpush1.bf16.msra.mxu0 0
        %908 = vmatprep.subr.bf16.mxu0 0
        %909 = vmatpush1.bf16.msra.mxu0 0
        %910 = vmatprep.mubr.bf16.mxu0 0
        %911 = vmatmul.mubr.bf16.gmra.mrb[0].mxu0 %v872
        %v912 = vpop.f32.mrb[0].mxu0
        %v913 = vadd.f32 0.0, %v912
        %v914 = vpop.f32.mrb[0].mxu0
        %v915 = vpop.f32.mrb[0].mxu0
        %v916 = vpop.f32.mrb[0].mxu0
        %917 = vdwg.mxu0
        %v918 = vpack.c.bf16 %v913, %v913
        %v919 = vld [vmem:[%s7] sm:$0xf]
        %v920 = vld [vmem:[%s7 + $0x4] sm:$0xf]
        %v921 = vld [vmem:[%s7 + $0x8] sm:$0xf]
        %v922 = vld [vmem:[%s7 + $0xc] sm:$0xf]
        %v923 = vld [vmem:[#allocation7] sm:$0x1]
        %v925 = vlaneseq
        %v926 = vshrl.u32 %v925, 7
        %v927 = vsub.s32 0, %v926
        %v928 = vrot.slane %v923, %v927
        %v934 = vunpack.c.l.b16 %v919
        %v935 = vunpack.c.l.b16 %v920
        %v936 = vunpack.c.l.b16 %v921
        %v937 = vunpack.c.l.b16 %v922
        %v938 = vpack.c.b16 %v935, %v934
        %v939 = vpack.c.b16 %v937, %v936
        %v943 = vsel %vm765, %v918, 0
        %945 = vmatprep.subr.bf16.mxu0 0
        %946 = vmatpush1.bf16.msra.mxu0 %v938
        %947 = vmatprep.subr.bf16.mxu0 0
        %948 = vmatpush1.bf16.msra.mxu0 %v939
        %949 = vmatprep.subr.bf16.mxu0 0
        %950 = vmatpush1.bf16.msra.mxu0 0
        %951 = vmatprep.subr.bf16.mxu0 0
        %952 = vmatpush1.bf16.msra.mxu0 0
        %953 = vmatprep.subr.bf16.mxu0 0
        %954 = vmatpush1.bf16.msra.mxu0 0
        %955 = vmatprep.subr.bf16.mxu0 0
        %956 = vmatpush1.bf16.msra.mxu0 0
        %957 = vmatprep.subr.bf16.mxu0 0
        %958 = vmatpush1.bf16.msra.mxu0 0
        %959 = vmatprep.subr.bf16.mxu0 0
        %960 = vmatpush1.bf16.msra.mxu0 0
        %961 = vmatprep.subr.bf16.mxu0 0
        %962 = vmatpush1.bf16.msra.mxu0 0
        %963 = vmatprep.subr.bf16.mxu0 0
        %964 = vmatpush1.bf16.msra.mxu0 0
        %965 = vmatprep.subr.bf16.mxu0 0
        %966 = vmatpush1.bf16.msra.mxu0 0
        %967 = vmatprep.subr.bf16.mxu0 0
        %968 = vmatpush1.bf16.msra.mxu0 0
        %969 = vmatprep.subr.bf16.mxu0 0
        %970 = vmatpush1.bf16.msra.mxu0 0
        %971 = vmatprep.subr.bf16.mxu0 0
        %972 = vmatpush1.bf16.msra.mxu0 0
        %973 = vmatprep.subr.bf16.mxu0 0
        %974 = vmatpush1.bf16.msra.mxu0 0
        %975 = vmatprep.subr.bf16.mxu0 0
        %976 = vmatpush1.bf16.msra.mxu0 0
        %977 = vmatprep.mubr.bf16.mxu0 0
        %978 = vmatmul.mubr.bf16.gmra.mrb[0].mxu0 %v943
        %v979 = vpop.f32.mrb[0].mxu0
        %v980 = vadd.f32 %v928, %v979
        %v981 = vpop.f32.mrb[0].mxu0
        %v982 = vpop.f32.mrb[0].mxu0
        %v983 = vpop.f32.mrb[0].mxu0
        %984 = vdwg.mxu0
        %v985 = vadd.f32 %v980, %v740
        %v986 = vld [vmem:[#allocation9] sm:$0x1]
        %v987 = vld [vmem:[%s10] sm:$0x1]
        %v988 = vsel %vm765, %v985, 0.0
        %989 = vadd.xlane.f32.xlu0 %v988
        %v990 = vpop.xlane.xlu0 %989
        %v991 = vrcp.pop 32.0
        %v992 = vmul.f32 %v990, %v991
        %v993 = vsub.f32 %v985, %v992
        %v994 = vmul.f32 %v993, %v993
        %v995 = vsel %vm765, %v994, 0.0
        %996 = vadd.xlane.f32.xlu0 %v995
        %v997 = vpop.xlane.xlu0 %996
        %v998 = vmul.f32 %v997, %v991
        %v999 = vadd.f32 %v998, 1e-12
        %v1000 = vrsqrt.pop %v999
        %v1001 = vmul.f32 %v993, %v1000
        %v1003 = vlaneseq
        %v1004 = vshrl.u32 %v1003, 7
        %v1005 = vsub.s32 0, %v1004
        %v1006 = vrot.slane %v986, %v1005
        %v1008 = vmul.f32 %v1001, %v1006
        %v1010 = vlaneseq
        %v1011 = vshrl.u32 %v1010, 7
        %v1012 = vsub.s32 0, %v1011
        %v1013 = vrot.slane %v987, %v1012
        %v1015 = vadd.f32 %v1008, %v1013
        %v1016 = vpack.c.bf16 %v1015, %v1015
        %v1017 = vld [vmem:[%s11] sm:$0xf]
        %v1018 = vld [vmem:[%s11 + $0x4] sm:$0xf]
        %v1019 = vld [vmem:[%s11 + $0x8] sm:$0xf]
        %v1020 = vld [vmem:[%s11 + $0xc] sm:$0xf]
        %v1021 = vld [vmem:[%s12] sm:$0x1]
        %v1023 = vlaneseq
        %v1024 = vshrl.u32 %v1023, 7
        %v1025 = vsub.s32 0, %v1024
        %v1026 = vrot.slane %v1021, %v1025
        %v1032 = vunpack.c.l.b16 %v1017
        %v1033 = vunpack.c.l.b16 %v1018
        %v1034 = vunpack.c.l.b16 %v1019
        %v1035 = vunpack.c.l.b16 %v1020
        %v1036 = vpack.c.b16 %v1033, %v1032
        %v1037 = vpack.c.b16 %v1035, %v1034
        %v1041 = vsel %vm765, %v1016, 0
        %1043 = vmatprep.subr.bf16.mxu0 0
        %1044 = vmatpush1.bf16.msra.mxu0 %v1036
        %1045 = vmatprep.subr.bf16.mxu0 0
        %1046 = vmatpush1.bf16.msra.mxu0 %v1037
        %1047 = vmatprep.subr.bf16.mxu0 0
        %1048 = vmatpush1.bf16.msra.mxu0 0
        %1049 = vmatprep.subr.bf16.mxu0 0
        %1050 = vmatpush1.bf16.msra.mxu0 0
        %1051 = vmatprep.subr.bf16.mxu0 0
        %1052 = vmatpush1.bf16.msra.mxu0 0
        %1053 = vmatprep.subr.bf16.mxu0 0
        %1054 = vmatpush1.bf16.msra.mxu0 0
        %1055 = vmatprep.subr.bf16.mxu0 0
        %1056 = vmatpush1.bf16.msra.mxu0 0
        %1057 = vmatprep.subr.bf16.mxu0 0
        %1058 = vmatpush1.bf16.msra.mxu0 0
        %1059 = vmatprep.subr.bf16.mxu0 0
        %1060 = vmatpush1.bf16.msra.mxu0 0
        %1061 = vmatprep.subr.bf16.mxu0 0
        %1062 = vmatpush1.bf16.msra.mxu0 0
        %1063 = vmatprep.subr.bf16.mxu0 0
        %1064 = vmatpush1.bf16.msra.mxu0 0
        %1065 = vmatprep.subr.bf16.mxu0 0
        %1066 = vmatpush1.bf16.msra.mxu0 0
        %1067 = vmatprep.subr.bf16.mxu0 0
        %1068 = vmatpush1.bf16.msra.mxu0 0
        %1069 = vmatprep.subr.bf16.mxu0 0
        %1070 = vmatpush1.bf16.msra.mxu0 0
        %1071 = vmatprep.subr.bf16.mxu0 0
        %1072 = vmatpush1.bf16.msra.mxu0 0
        %1073 = vmatprep.subr.bf16.mxu0 0
        %1074 = vmatpush1.bf16.msra.mxu0 0
        %1075 = vmatprep.mubr.bf16.mxu0 0
        %1076 = vmatmul.mubr.bf16.gmra.mrb[0].mxu0 %v1041
        %v1077 = vpop.f32.mrb[0].mxu0
        %v1078 = vadd.f32 %v1026, %v1077
        %v1079 = vpop.f32.mrb[0].mxu0
        %v1080 = vpop.f32.mrb[0].mxu0
        %v1081 = vpop.f32.mrb[0].mxu0
        %1082 = vdwg.mxu0
        %v1083 = vmul.f32 %v1078, 0.5
        %v1084 = vmul.f32 %v1078, 0.044715
        %v1085 = vmul.f32 %v1084, %v1078
        %v1086 = vmul.f32 %v1085, %v1078
        %v1087 = vadd.f32 %v1078, %v1086
        %v1088 = vmul.f32 %v1087, 0.7978846
        %v1089 = vtanh.pop %v1088
        %v1090 = vadd.f32 %v1089, 1.0
        %v1091 = vmul.f32 %v1083, %v1090
        %v1092 = vpack.c.bf16 %v1091, %v1091
        %v1093 = vld [vmem:[%s13] sm:$0xf]
        %v1094 = vld [vmem:[%s13 + $0x4] sm:$0xf]
        %v1095 = vld [vmem:[%s13 + $0x8] sm:$0xf]
        %v1096 = vld [vmem:[%s13 + $0xc] sm:$0xf]
        %v1097 = vld [vmem:[%s13 + $0x10] sm:$0xf]
        %v1098 = vld [vmem:[%s13 + $0x14] sm:$0xf]
        %v1099 = vld [vmem:[%s13 + $0x18] sm:$0xf]
        %v1100 = vld [vmem:[%s13 + $0x1c] sm:$0xf]
        %v1101 = vld [vmem:[%s13 + $0x20] sm:$0xf]
        %v1102 = vld [vmem:[%s13 + $0x24] sm:$0xf]
        %v1103 = vld [vmem:[%s13 + $0x28] sm:$0xf]
        %v1104 = vld [vmem:[%s13 + $0x2c] sm:$0xf]
        %v1105 = vld [vmem:[%s13 + $0x30] sm:$0xf]
        %v1106 = vld [vmem:[%s13 + $0x34] sm:$0xf]
        %v1107 = vld [vmem:[%s13 + $0x38] sm:$0xf]
        %v1108 = vld [vmem:[%s13 + $0x3c] sm:$0xf]
        %v1109 = vld [vmem:[%s14] sm:$0x1]
        %v1111 = vlaneseq
        %v1112 = vshrl.u32 %v1111, 7
        %v1113 = vsub.s32 0, %v1112
        %v1114 = vrot.slane %v1109, %v1113
        %v1132 = vunpack.c.l.b16 %v1093
        %v1133 = vunpack.c.l.b16 %v1094
        %v1134 = vunpack.c.l.b16 %v1095
        %v1135 = vunpack.c.l.b16 %v1096
        %v1136 = vunpack.c.l.b16 %v1097
        %v1137 = vunpack.c.l.b16 %v1098
        %v1138 = vunpack.c.l.b16 %v1099
        %v1139 = vunpack.c.l.b16 %v1100
        %v1140 = vunpack.c.l.b16 %v1101
        %v1141 = vunpack.c.l.b16 %v1102
        %v1142 = vunpack.c.l.b16 %v1103
        %v1143 = vunpack.c.l.b16 %v1104
        %v1144 = vunpack.c.l.b16 %v1105
        %v1145 = vunpack.c.l.b16 %v1106
        %v1146 = vunpack.c.l.b16 %v1107
        %v1147 = vunpack.c.l.b16 %v1108
        %v1148 = vpack.c.b16 %v1133, %v1132
        %v1149 = vpack.c.b16 %v1135, %v1134
        %v1150 = vpack.c.b16 %v1137, %v1136
        %v1151 = vpack.c.b16 %v1139, %v1138
        %v1152 = vpack.c.b16 %v1141, %v1140
        %v1153 = vpack.c.b16 %v1143, %v1142
        %v1154 = vpack.c.b16 %v1145, %v1144
        %v1155 = vpack.c.b16 %v1147, %v1146
        %1164 = vmatprep.subr.bf16.mxu0 0
        %1165 = vmatpush1.bf16.msra.mxu0 %v1148
        %1166 = vmatprep.subr.bf16.mxu0 0
        %1167 = vmatpush1.bf16.msra.mxu0 %v1149
        %1168 = vmatprep.subr.bf16.mxu0 0
        %1169 = vmatpush1.bf16.msra.mxu0 %v1150
        %1170 = vmatprep.subr.bf16.mxu0 0
        %1171 = vmatpush1.bf16.msra.mxu0 %v1151
        %1172 = vmatprep.subr.bf16.mxu0 0
        %1173 = vmatpush1.bf16.msra.mxu0 %v1152
        %1174 = vmatprep.subr.bf16.mxu0 0
        %1175 = vmatpush1.bf16.msra.mxu0 %v1153
        %1176 = vmatprep.subr.bf16.mxu0 0
        %1177 = vmatpush1.bf16.msra.mxu0 %v1154
        %1178 = vmatprep.subr.bf16.mxu0 0
        %1179 = vmatpush1.bf16.msra.mxu0 %v1155
        %1180 = vmatprep.subr.bf16.mxu0 0
        %1181 = vmatpush1.bf16.msra.mxu0 0
        %1182 = vmatprep.subr.bf16.mxu0 0
        %1183 = vmatpush1.bf16.msra.mxu0 0
        %1184 = vmatprep.subr.bf16.mxu0 0
        %1185 = vmatpush1.bf16.msra.mxu0 0
        %1186 = vmatprep.subr.bf16.mxu0 0
        %1187 = vmatpush1.bf16.msra.mxu0 0
        %1188 = vmatprep.subr.bf16.mxu0 0
        %1189 = vmatpush1.bf16.msra.mxu0 0
        %1190 = vmatprep.subr.bf16.mxu0 0
        %1191 = vmatpush1.bf16.msra.mxu0 0
        %1192 = vmatprep.subr.bf16.mxu0 0
        %1193 = vmatpush1.bf16.msra.mxu0 0
        %1194 = vmatprep.subr.bf16.mxu0 0
        %1195 = vmatpush1.bf16.msra.mxu0 0
        %1196 = vmatprep.mubr.bf16.mxu0 0
        %1197 = vmatmul.mubr.bf16.gmra.mrb[0].mxu0 %v1092
        %v1198 = vpop.f32.mrb[0].mxu0
        %v1199 = vadd.f32 %v1114, %v1198
        %v1200 = vpop.f32.mrb[0].mxu0
        %v1201 = vpop.f32.mrb[0].mxu0
        %v1202 = vpop.f32.mrb[0].mxu0
        %1203 = vdwg.mxu0
        %v1204 = vadd.f32 %v1199, %v1015
        %v1205 = vld [vmem:[%s15] sm:$0x1]
        %v1206 = vld [vmem:[%s16] sm:$0x1]
        %v1207 = vsel %vm765, %v1204, 0.0
        %1208 = vadd.xlane.f32.xlu0 %v1207
        %v1209 = vpop.xlane.xlu0 %1208
        %v1210 = vmul.f32 %v1209, %v991
        %v1211 = vsub.f32 %v1204, %v1210
        %v1212 = vmul.f32 %v1211, %v1211
        %v1213 = vsel %vm765, %v1212, 0.0
        %1214 = vadd.xlane.f32.xlu0 %v1213
        %v1215 = vpop.xlane.xlu0 %1214
        %v1216 = vmul.f32 %v1215, %v991
        %v1217 = vadd.f32 %v1216, 1e-12
        %v1218 = vrsqrt.pop %v1217
        %v1219 = vmul.f32 %v1211, %v1218
        %v1221 = vlaneseq
        %v1222 = vshrl.u32 %v1221, 7
        %v1223 = vsub.s32 0, %v1222
        %v1224 = vrot.slane %v1205, %v1223
        %v1226 = vmul.f32 %v1219, %v1224
        %v1228 = vlaneseq
        %v1229 = vshrl.u32 %v1228, 7
        %v1230 = vsub.s32 0, %v1229
        %v1231 = vrot.slane %v1206, %v1230
        %v1233 = vadd.f32 %v1226, %v1231
        %1234 = vst.msk [vmem:[%s591] sm:$0xff] %vm765, %v1233
        %s1235 = sand.u32 %s417, 1
        %s1236 = scalar_lea.sflag [#allocation6], %s1235
        %s1237 = sand.u32 %s417, 1
        %s1238 = smul.addr %s1237, 8
        %s1239 = scalar_lea.vmem [#allocation10], %s1238
        // Predicated region
        $region105: #{tpu_custom_call.1} parent=87 // pred_check
          %p1240 = pneg %p427
        $region106: #{tpu_custom_call.1} parent=87 // pred_check_branch
          %1242 = sbr.rel (%p1240) target = $region108
        $region107: #{tpu_custom_call.1} parent=87 // pred_region
          %s1244 = ssub.s32 128, 128
          %1245 = vsyncadd %s1236, %s1244
          %s1246 = sadd.s32 %s38, %s37
          %s1247 = smul.addr %s1246, 128
          %s1248 = scalar_lea.hbm %s17, %s1247
          %s1250 = sshll.u32 %s1239, 4
          %s1251 = int_to_ptr.vmem [resolvable:$true] %s1250
          %1253 = dma.vmem_to_hbm [thread:$0]  %s1251, 128, %s1248, %s1236
        $region108: #{tpu_custom_call.1} parent=87 // pred_fallthru
          _
      $region88: #{tpu_custom_call.1} parent=5 // pred_fallthru
        _
      %p1254 = scmp.le.s32.totalorder 2, %s28
      // Predicated region
      $region109: #{tpu_custom_call.1} parent=5 // pred_check
        %p1255 = pneg %p1254
      $region110: #{tpu_custom_call.1} parent=5 // pred_check_branch
        %1257 = sbr.rel (%p1255) target = $region112
      $region111: #{tpu_custom_call.1} parent=5 // pred_region
        %s1258 = ssub.s32 %s28, 2
        // Predicated region
        $region113: #{tpu_custom_call.1} parent=111 // pred_check
          %p1259 = pneg %p433
        $region114: #{tpu_custom_call.1} parent=111 // pred_check_branch
          %1261 = sbr.rel (%p1259) target = $region116
        $region115: #{tpu_custom_call.1} parent=111 // pred_region
          %s1262 = sand.u32 %s418, 1
          %s1263 = scalar_lea.sflag [#allocation6], %s1262
          %s1264 = sand.u32 %s418, 1
          %s1265 = smul.addr %s1264, 8
          %s1266 = scalar_lea.vmem [#allocation10], %s1265
          %1267 = dma.done %s1263, 128
        $region116: #{tpu_custom_call.1} parent=111 // pred_fallthru
          _
      $region112: #{tpu_custom_call.1} parent=5 // pred_fallthru
        _
    $region6: #{tpu_custom_call.1} parent=1 // loop_footer
      %s32 = sadd.s32 1, %s28
    $region7: #{tpu_custom_call.1} parent=1 // loop_footer_branch
      %27 = sbr.rel target = $region3
    $region8: #{tpu_custom_call.1} parent=1 // loop_exit
      _
    %1268 = vsyncpa [#allocation5], 1
    %s1269 = scalar_lea.sflag [#allocation5], 1
    %1270 = vsyncpa %s1269, 1
    %1271 = vsyncpa [#allocation8], 1
    %1272 = vsyncpa [#allocation6], 1
    %s1273 = scalar_lea.sflag [#allocation6], 1
    %1274 = vsyncpa %s1273, 1

</llo_original>
